<compile_context>
chip_gen: v6e
topology: v6e:2x2x1
jax: 0.10.0
libtpu: 0.0.40
codegen_flags: <defaults>
</compile_context>

<pallas_src>
import math

import numpy as np
import jax
import jax.numpy as jnp
from jax import lax
from jax.experimental import pallas as pl
from jax.experimental.pallas import tpu as pltpu


# ---------------------------------------------------------------------------
# small helpers
# ---------------------------------------------------------------------------

def _round_up(x, m):
    return (x + m - 1) // m * m


def _tiled_bytes(shape, dtype):
    """VMEM footprint of one buffer after (8, 128) tiling of the two minor dims."""
    shape = tuple(int(s) for s in shape)
    lead = 1
    for s in shape[:-2]:
        lead *= s
    sub = _round_up(shape[-2], 8)
    lane = _round_up(shape[-1], 128)
    return lead * sub * lane * np.dtype(dtype).itemsize


def _vmem_limit(*bufs):
    """Explicit scoped-VMEM limit: double-buffered blocks + slack, capped below v7x's
    64 MiB physical VMEM."""
    need = 2 * sum(_tiled_bytes(s, d) for s, d in bufs) + (8 << 20)
    return int(min(max(need, 16 << 20), 48 << 20))


# ---------------------------------------------------------------------------
# Pallas kernel: 1x1-latent ConvTranspose2d == plain matmul (+ fused BN statistics)
# ---------------------------------------------------------------------------

def _matmul_stats_kernel(a_ref, b_ref, y_ref, sum_ref, sq_ref):
    y = jnp.dot(a_ref[...], b_ref[...], preferred_element_type=jnp.float32)
    y_ref[...] = y.astype(y_ref.dtype)
    sum_ref[...] = jnp.broadcast_to(jnp.sum(y, axis=0, keepdims=True), sum_ref.shape)
    sq_ref[...] = jnp.broadcast_to(jnp.sum(y * y, axis=0, keepdims=True), sq_ref.shape)


def pallas_matmul_stats(a, b, out_dtype=jnp.bfloat16):
    m, k = a.shape
    k2, n_cols = b.shape
    assert k2 == k and n_cols % 128 == 0
    vmem = _vmem_limit(((m, k), a.dtype), ((k, n_cols), b.dtype),
                       ((m, n_cols), out_dtype),
                       ((8, n_cols), jnp.float32), ((8, n_cols), jnp.float32))
    return pl.pallas_call(
        _matmul_stats_kernel,
        out_shape=(jax.ShapeDtypeStruct((m, n_cols), out_dtype),
                   jax.ShapeDtypeStruct((8, n_cols), jnp.float32),
                   jax.ShapeDtypeStruct((8, n_cols), jnp.float32)),
        grid=(1,),
        in_specs=[pl.BlockSpec((m, k), lambda i: (0, 0)),
                  pl.BlockSpec((k, n_cols), lambda i: (0, 0))],
        out_specs=(pl.BlockSpec((m, n_cols), lambda i: (0, 0)),
                   pl.BlockSpec((8, n_cols), lambda i: (0, 0)),
                   pl.BlockSpec((8, n_cols), lambda i: (0, 0))),
        compiler_params=pltpu.CompilerParams(
            dimension_semantics=("arbitrary",), vmem_limit_bytes=vmem),
    )(a, b)


# ---------------------------------------------------------------------------
# Pallas kernel: fused sub-pixel ConvTranspose2d (k=4, s=2, p=1)
#   out[n, 2r+a, 2c+b, co] = sum_{d,e,ci} x[n, r+d, c+e, ci] * Wtap[d, e, ci, (a,b,co)]
#   -> per sample: loop over output rows r, 9 tap matmuls accumulated in f32, with either
#      fused BN sum/sumsq partials (intermediate layers) or fused tanh (final layer).
# ---------------------------------------------------------------------------

def _make_deconv_kernel(rh, rw, win, n_cols, with_stats, with_tanh):
    def compute_row(xp_ref, w_ref, r):
        acc = jnp.zeros((rw, n_cols), jnp.float32)
        for dh in range(win):
            row = xp_ref[0, r + dh]                      # (wp, cin), dynamic major index
            for dw in range(win):
                acc = acc + jnp.dot(row[dw:dw + rw, :], w_ref[dh * win + dw],
                                    preferred_element_type=jnp.float32)
        return acc

    if with_stats:
        def kernel(xp_ref, w_ref, y_ref, sum_ref, sq_ref):
            def body(r, carry):
                ssum, ssq = carry
                acc = compute_row(xp_ref, w_ref, r)
                y_ref[0, r] = acc.astype(y_ref.dtype)
                return (ssum + jnp.sum(acc, axis=0, keepdims=True),
                        ssq + jnp.sum(acc * acc, axis=0, keepdims=True))

            zero = jnp.zeros((1, n_cols), jnp.float32)
            ssum, ssq = lax.fori_loop(0, rh, body, (zero, zero))
            # de-revisited per-sample partials: block index == grid index -> 'parallel' OK
            sum_ref[0] = jnp.broadcast_to(ssum, (8, n_cols))
            sq_ref[0] = jnp.broadcast_to(ssq, (8, n_cols))
        return kernel

    def kernel(xp_ref, w_ref, y_ref):
        def body(r, carry):
            acc = compute_row(xp_ref, w_ref, r)
            if with_tanh:
                acc = jnp.tanh(acc)
            y_ref[0, r] = acc.astype(y_ref.dtype)
            return carry

        lax.fori_loop(0, rh, body, jnp.int32(0))
    return kernel


def pallas_deconv(xp, w_slab, rh, rw, *, with_stats, with_tanh, out_dtype):
    """xp: (N, rh+2, rw+2, Cin) halo-padded bf16 activation (NHWC).
    w_slab: (win*win, Cin, n_cols) bf16 tap weights, n_cols = s*s*cpad (multiple of 128).
    Returns y (N, rh, rw, n_cols) plus (optionally) per-sample BN sum/sumsq partials."""
    n, hp, wp, cin = xp.shape
    n_taps, cin_w, n_cols = w_slab.shape
    win = int(round(math.sqrt(n_taps)))
    assert win * win == n_taps and cin_w == cin
    assert hp == rh + win - 1 and wp == rw + win - 1
    assert n_cols % 128 == 0, "pad output channels so stores are lane-dense"

    kernel = _make_deconv_kernel(rh, rw, win, n_cols, with_stats, with_tanh)

    y_sds = jax.ShapeDtypeStruct((n, rh, rw, n_cols), out_dtype)
    y_spec = pl.BlockSpec((1, rh, rw, n_cols), lambda i: (i, 0, 0, 0))
    vmem_bufs = [((1, hp, wp, cin), xp.dtype),
                 ((n_taps, cin, n_cols), w_slab.dtype),
                 ((1, rh, rw, n_cols), out_dtype)]
    if with_stats:
        stat_sds = jax.ShapeDtypeStruct((n, 8, n_cols), jnp.float32)
        stat_spec = pl.BlockSpec((1, 8, n_cols), lambda i: (i, 0, 0))
        out_shape = (y_sds, stat_sds, stat_sds)
        out_specs = (y_spec, stat_spec, stat_spec)
        vmem_bufs += [((1, 8, n_cols), jnp.float32)] * 2
    else:
        out_shape = y_sds
        out_specs = y_spec

    return pl.pallas_call(
        kernel,
        out_shape=out_shape,
        grid=(n,),
        in_specs=[pl.BlockSpec((1, hp, wp, cin), lambda i: (i, 0, 0, 0)),
                  # grid-invariant weight slab (constant index_map -> fetched once)
                  pl.BlockSpec((n_taps, cin, n_cols), lambda i: (0, 0, 0))],
        out_specs=out_specs,
        compiler_params=pltpu.CompilerParams(
            dimension_semantics=("parallel",),           # batch axis -> v7x's 2 TCs
            vmem_limit_bytes=_vmem_limit(*vmem_bufs)),
    )(xp, w_slab)


# ---------------------------------------------------------------------------
# Host-side glue (trace-time weight rewriting + one fused XLA epilogue per layer)
# ---------------------------------------------------------------------------

def _subpixel_weight_slab(w_t, k, stride, padding, cpad):
    """PyTorch ConvTranspose2d weight (Cin, Cout, kH, kW) -> (win*win, Cin, s*s*cpad)
    tap slabs whose columns are ordered (phase_a, phase_b, channel), channel padded to cpad."""
    cin, cout = int(w_t.shape[0]), int(w_t.shape[1])
    # output phase a (oh = s*r + a) gets kernel taps kh with (a+p-kh) % s == 0, at offset
    # d = (a+p-kh)//s (input row r + d)
    taps = [[((a + padding - kh) // stride, kh)
             for kh in range(k) if (a + padding - kh) % stride == 0]
            for a in range(stride)]
    d_all = [d for t in taps for d, _ in t]
    d_min, d_max = min(d_all), max(d_all)
    win = d_max - d_min + 1
    sel = np.zeros((win, win, stride, stride, k, k), np.float32)
    for a in range(stride):
        for b in range(stride):
            for dh, kh in taps[a]:
                for dw, kw in taps[b]:
                    sel[dh - d_min, dw - d_min, a, b, kh, kw] = 1.0
    wf = jnp.einsum("DEabkl,iokl->DEiabo", jnp.asarray(sel), w_t)
    wf = wf.reshape(win * win, cin, stride * stride, cout)
    wf = jnp.pad(wf, ((0, 0), (0, 0), (0, 0), (0, cpad - cout)))
    return wf.reshape(win * win, cin, stride * stride * cpad), win, d_min, d_max


def _bn_scale_shift(csum, csq, cnt, gamma, beta, eps):
    mean = csum / cnt
    # biased (training-mode BatchNorm) variance from f32 accumulators; clamped at 0 to
    # guard rsqrt against E[x^2]-E[x]^2 cancellation.
    var = jnp.maximum(csq / cnt - mean * mean, 0.0)
    inv_std = lax.rsqrt(var + eps)
    scale = gamma * inv_std
    shift = beta - mean * scale
    return scale, shift


def _bn_relu_shuffle_pad(y, scale, shift, gh, gw, cout, cpad):
    """BN affine + ReLU + sub-pixel shuffle + 1-px halo pad for the next layer's 3x3 window.
    Deliberately ONE fused XLA pass (elementwise + pure data movement): a single read of y
    and a single write of the next layer's input, instead of a standalone Pallas affine
    kernel followed by a separate transpose/pad HBM round trip."""
    n, rh, rw = y.shape[0], y.shape[1], y.shape[2]
    y6 = y.reshape(n, rh, rw, gh, gw, cpad)[..., :cout].astype(jnp.float32)
    z = jnp.maximum(y6 * scale + shift, 0.0).astype(jnp.bfloat16)
    z = jnp.transpose(z, (0, 1, 3, 2, 4, 5)).reshape(n, rh * gh, rw * gw, cout)
    return jnp.pad(z, ((0, 0), (1, 1), (1, 1), (0, 0)))


def _pixel_shuffle(y, gh, gw, cout, cpad):
    n, rh, rw = y.shape[0], y.shape[1], y.shape[2]
    z = y.reshape(n, rh, rw, gh, gw, cpad)[..., :cout]
    return jnp.transpose(z, (0, 1, 3, 2, 4, 5)).reshape(n, rh * gh, rw * gw, cout)


def generator_forward(x_nchw, params, eps=1e-5):
    """Forward pass of the DCGAN Generator. Input NCHW latent (N, C, 1, 1), output NCHW."""
    layers = params["layers"]
    n = x_nchw.shape[0]
    assert x_nchw.shape[2] == 1 and x_nchw.shape[3] == 1, "DCGAN latent must be 1x1"

    # ----- layer 0: ConvTranspose2d(k=4, s=1, p=0) on a 1x1 latent == pure matmul -----
    l0 = layers[0]
    w_t = l0["w"]
    cin, cout, k = int(w_t.shape[0]), int(w_t.shape[1]), int(w_t.shape[2])
    assert l0["stride"] == 1 and l0["padding"] == 0
    g = k * k
    cpad = _round_up(cout, 128 // math.gcd(g, 128))       # lane-dense output columns
    w_mat = jnp.transpose(w_t, (0, 2, 3, 1))               # (Cin, kh, kw, Cout)
    w_mat = jnp.pad(w_mat, ((0, 0), (0, 0), (0, 0), (0, cpad - cout)))
    w_mat = w_mat.reshape(cin, g * cpad).astype(jnp.bfloat16)

    x_lat = x_nchw.reshape(n, cin).astype(jnp.bfloat16)
    y, ssum, ssq = pallas_matmul_stats(x_lat, w_mat)
    cnt = float(n * g)                                     # N * Ho * Wo (Ho = Wo = k)
    csum = ssum[0].reshape(g, cpad)[:, :cout].sum(axis=0)
    csq = ssq[0].reshape(g, cpad)[:, :cout].sum(axis=0)
    scale, shift = _bn_scale_shift(csum, csq, cnt, l0["gamma"], l0["beta"], eps)
    x = _bn_relu_shuffle_pad(y.reshape(n, 1, 1, g * cpad), scale, shift, k, k, cout, cpad)
    h = w = k

    # ----- layers 1..L-1: ConvTranspose2d(k=4, s=2, p=1) (+BN+ReLU, final +Tanh) -----
    for li in range(1, len(layers)):
        layer = layers[li]
        last = li == len(layers) - 1
        w_t = layer["w"]
        cin, cout, k = int(w_t.shape[0]), int(w_t.shape[1]), int(w_t.shape[2])
        stride, padding = layer["stride"], layer["padding"]
        g = stride * stride
        cpad = _round_up(cout, 128 // math.gcd(g, 128))
        w_slab, win, d_min, d_max = _subpixel_weight_slab(w_t, k, stride, padding, cpad)
        w_slab = w_slab.astype(jnp.bfloat16)

        rh, rw = h, w
        ho = (h - 1) * stride - 2 * padding + k
        wo = (w - 1) * stride - 2 * padding + k
        # exact pixel shuffle (no crop) and symmetric 1-px halo: true for k=4, s=2, p=1
        assert ho == rh * stride and wo == rw * stride
        assert d_min == -1 and d_max == 1 and win == 3
        assert x.shape == (n, rh + 2, rw + 2, cin)

        out = pallas_deconv(x, w_slab, rh, rw,
                            with_stats=not last, with_tanh=last,
                            out_dtype=jnp.float32 if last else jnp.bfloat16)
        if last:
            x = _pixel_shuffle(out, stride, stride, cout, cpad)        # (N, Ho, Wo, Cout) f32
        else:
            y, ssum, ssq = out
            cnt = float(n * ho * wo)
            csum = ssum[:, 0, :].sum(axis=0).reshape(g, cpad)[:, :cout].sum(axis=0)
            csq = ssq[:, 0, :].sum(axis=0).reshape(g, cpad)[:, :cout].sum(axis=0)
            scale, shift = _bn_scale_shift(csum, csq, cnt, layer["gamma"], layer["beta"], eps)
            x = _bn_relu_shuffle_pad(y, scale, shift, stride, stride, cout, cpad)
        h, w = ho, wo

    return jnp.transpose(x.astype(jnp.float32), (0, 3, 1, 2))          # -> NCHW


# ---------------------------------------------------------------------------
# Deterministic parameter init (small synthetic shapes)
# ---------------------------------------------------------------------------

def init_params(key, input_size=16, feature_maps_size=8, channel_size=3):
    fm = feature_maps_size
    cfgs = [
        # (cin, cout, k, stride, padding, has_bn)
        (input_size, fm * 8, 4, 1, 0, True),
        (fm * 8, fm * 4, 4, 2, 1, True),
        (fm * 4, fm * 2, 4, 2, 1, True),
        (fm * 2, fm, 4, 2, 1, True),
        (fm, channel_size, 4, 2, 1, False),
    ]
    layers = []
    for cin, cout, k, s, p, has_bn in cfgs:
        key, kw_, kg, kb = jax.random.split(key, 4)
        layer = {
            # PyTorch ConvTranspose2d weight layout: (Cin, Cout, kH, kW)
            "w": 0.02 * jax.random.normal(kw_, (cin, cout, k, k), jnp.float32),
            "stride": s,
            "padding": p,
        }
        if has_bn:
            layer["gamma"] = 1.0 + 0.02 * jax.random.normal(kg, (cout,), jnp.float32)
            layer["beta"] = 0.02 * jax.random.normal(kb, (cout,), jnp.float32)
        layers.append(layer)
    return {"layers": layers}


if __name__ == "__main__":
    key = jax.random.PRNGKey(0)
    kp, kx = jax.random.split(key)

    # small config: input_size=16, feature_maps=8, channels=3, batch=2, 1x1 latent
    params = init_params(kp, input_size=16, feature_maps_size=8, channel_size=3)
    x = jax.random.normal(kx, (2, 16, 1, 1), jnp.float32)   # NCHW latent

    fwd = jax.jit(lambda inp: generator_forward(inp, params))
    out = jax.block_until_ready(fwd(x))

    assert out.shape == (2, 3, 64, 64), out.shape
    assert bool(jnp.all(jnp.isfinite(out)))
    assert bool(jnp.all(jnp.abs(out) <= 1.0 + 1e-6))         # tanh range
    print("KERNEL_OK")
</pallas_src>

<mosaic_0001>
module attributes {stable_mosaic.version = 11 : i64} {
  func.func @_matmul_stats_kernel(%arg0: i32, %arg1: memref<2x16xbf16, #tpu.memory_space<vmem>>, %arg2: memref<16x1024xbf16, #tpu.memory_space<vmem>>, %arg3: memref<2x1024xbf16, #tpu.memory_space<vmem>>, %arg4: memref<8x1024xf32, #tpu.memory_space<vmem>>, %arg5: memref<8x1024xf32, #tpu.memory_space<vmem>>) attributes {dimension_semantics = [#tpu.dimension_semantics<arbitrary>], iteration_bounds = array<i64: 1>, scalar_prefetch = 0 : i64, scratch_operands = 0 : i64, tpu.core_type = #tpu.core_type<tc>, window_params = [{pipeline_mode = #tpu.pipeline_mode<synchronous>, transform_indices = @transform_0, window_bounds = array<i64: 2, 16>}, {pipeline_mode = #tpu.pipeline_mode<synchronous>, transform_indices = @transform_1, window_bounds = array<i64: 16, 1024>}, {pipeline_mode = #tpu.pipeline_mode<synchronous>, transform_indices = @transform_2, window_bounds = array<i64: 2, 1024>}, {pipeline_mode = #tpu.pipeline_mode<synchronous>, transform_indices = @transform_3, window_bounds = array<i64: 8, 1024>}, {pipeline_mode = #tpu.pipeline_mode<synchronous>, transform_indices = @transform_4, window_bounds = array<i64: 8, 1024>}]} {
    %c0 = arith.constant 0 : index
    %c0_0 = arith.constant 0 : index
    %0 = vector.load %arg1[%c0, %c0_0] : memref<2x16xbf16, #tpu.memory_space<vmem>>, vector<2x16xbf16>
    %c0_1 = arith.constant 0 : index
    %c0_2 = arith.constant 0 : index
    %1 = vector.load %arg2[%c0_1, %c0_2] : memref<16x1024xbf16, #tpu.memory_space<vmem>>, vector<16x1024xbf16>
    %cst = arith.constant dense<0.000000e+00> : vector<2x1024xf32>
    %2 = tpu.matmul %0, %1, %cst {dimension_numbers = #tpu.dot_dimension_numbers<[1], [0], [0], [1], [0, 0, 1, 1], [], []>} : vector<2x16xbf16>, vector<16x1024xbf16>, vector<2x1024xf32> -> vector<2x1024xf32>
    %3 = arith.truncf %2 : vector<2x1024xf32> to vector<2x1024xbf16>
    %c0_3 = arith.constant 0 : index
    %c0_4 = arith.constant 0 : index
    %4 = vector.load %arg3[%c0_3, %c0_4] : memref<2x1024xbf16, #tpu.memory_space<vmem>>, vector<2x1024xbf16>
    tpu.vector_store %arg3[%c0_3, %c0_4], %3 {strides = array<i32>} : memref<2x1024xbf16, #tpu.memory_space<vmem>>, vector<2x1024xbf16>,
    %cst_5 = arith.constant dense<0.000000e+00> : vector<1024xf32>
    %5 = vector.multi_reduction <add>, %2, %cst_5 [0] : vector<2x1024xf32> to vector<1024xf32>
    %6 = vector.shape_cast %5 : vector<1024xf32> to vector<1x1024xf32>
    %7 = vector.shape_cast %6 : vector<1x1024xf32> to vector<1x1024xf32>
    %8 = vector.broadcast %7 : vector<1x1024xf32> to vector<8x1024xf32>
    %c0_6 = arith.constant 0 : index
    %c0_7 = arith.constant 0 : index
    %9 = vector.load %arg4[%c0_6, %c0_7] : memref<8x1024xf32, #tpu.memory_space<vmem>>, vector<8x1024xf32>
    tpu.vector_store %arg4[%c0_6, %c0_7], %8 {strides = array<i32>} : memref<8x1024xf32, #tpu.memory_space<vmem>>, vector<8x1024xf32>,
    %10 = arith.mulf %2, %2 : vector<2x1024xf32>
    %cst_8 = arith.constant dense<0.000000e+00> : vector<1024xf32>
    %11 = vector.multi_reduction <add>, %10, %cst_8 [0] : vector<2x1024xf32> to vector<1024xf32>
    %12 = vector.shape_cast %11 : vector<1024xf32> to vector<1x1024xf32>
    %13 = vector.shape_cast %12 : vector<1x1024xf32> to vector<1x1024xf32>
    %14 = vector.broadcast %13 : vector<1x1024xf32> to vector<8x1024xf32>
    %c0_9 = arith.constant 0 : index
    %c0_10 = arith.constant 0 : index
    %15 = vector.load %arg5[%c0_9, %c0_10] : memref<8x1024xf32, #tpu.memory_space<vmem>>, vector<8x1024xf32>
    tpu.vector_store %arg5[%c0_9, %c0_10], %14 {strides = array<i32>} : memref<8x1024xf32, #tpu.memory_space<vmem>>, vector<8x1024xf32>,
    return
  }
  func.func @transform_0(%arg0: i32) -> (i32, i32) {
    %c0_i32 = arith.constant 0 : i32
    %c0_i32_0 = arith.constant 0 : i32
    %c0_i32_1 = arith.constant 0 : i32
    return %c0_i32, %c0_i32_0 : i32, i32
  }
  func.func @transform_1(%arg0: i32) -> (i32, i32) {
    %c0_i32 = arith.constant 0 : i32
    %c0_i32_0 = arith.constant 0 : i32
    %c0_i32_1 = arith.constant 0 : i32
    return %c0_i32, %c0_i32_0 : i32, i32
  }
  func.func @transform_2(%arg0: i32) -> (i32, i32) {
    %c0_i32 = arith.constant 0 : i32
    %c0_i32_0 = arith.constant 0 : i32
    %c0_i32_1 = arith.constant 0 : i32
    return %c0_i32, %c0_i32_0 : i32, i32
  }
  func.func @transform_3(%arg0: i32) -> (i32, i32) {
    %c0_i32 = arith.constant 0 : i32
    %c0_i32_0 = arith.constant 0 : i32
    %c0_i32_1 = arith.constant 0 : i32
    return %c0_i32, %c0_i32_0 : i32, i32
  }
  func.func @transform_4(%arg0: i32) -> (i32, i32) {
    %c0_i32 = arith.constant 0 : i32
    %c0_i32_0 = arith.constant 0 : i32
    %c0_i32_1 = arith.constant 0 : i32
    return %c0_i32, %c0_i32_0 : i32, i32
  }
}

module attributes {stable_mosaic.version = 11 : i64} {
  func.func @kernel(%arg0: i32, %arg1: memref<1x6x6x64xbf16, #tpu.memory_space<vmem>>, %arg2: memref<9x64x128xbf16, #tpu.memory_space<vmem>>, %arg3: memref<1x4x4x128xbf16, #tpu.memory_space<vmem>>, %arg4: memref<1x8x128xf32, #tpu.memory_space<vmem>>, %arg5: memref<1x8x128xf32, #tpu.memory_space<vmem>>) attributes {dimension_semantics = [#tpu.dimension_semantics<parallel>], iteration_bounds = array<i64: 2>, scalar_prefetch = 0 : i64, scratch_operands = 0 : i64, tpu.core_type = #tpu.core_type<tc>, window_params = [{transform_indices = @transform_0, window_bounds = array<i64: 1, 6, 6, 64>}, {pipeline_mode = #tpu.pipeline_mode<synchronous>, transform_indices = @transform_1, window_bounds = array<i64: 9, 64, 128>}, {transform_indices = @transform_2, window_bounds = array<i64: 1, 4, 4, 128>}, {transform_indices = @transform_3, window_bounds = array<i64: 1, 8, 128>}, {transform_indices = @transform_4, window_bounds = array<i64: 1, 8, 128>}]} {
    %cst = arith.constant 0.000000e+00 : f32
    %0 = vector.broadcast %cst : f32 to vector<1x128xf32>
    %c0_i32 = arith.constant 0 : i32
    %c4_i32 = arith.constant 4 : i32
    %1 = arith.addi %c0_i32, %c4_i32 : i32
    %c1_i32 = arith.constant 1 : i32
    %2:2 = scf.for %arg6 = %c0_i32 to %1 step %c1_i32 iter_args(%arg7 = %0, %arg8 = %0) -> (vector<1x128xf32>, vector<1x128xf32>)  : i32 {
      %cst_6 = arith.constant 0.000000e+00 : f32
      %13 = vector.broadcast %cst_6 : f32 to vector<4x128xf32>
      %c0_i32_7 = arith.constant 0 : i32
      %14 = arith.addi %arg6, %c0_i32_7 : i32
      %c0_8 = arith.constant 0 : index
      %15 = arith.index_cast %14 : i32 to index
      %c0_9 = arith.constant 0 : index
      %c0_10 = arith.constant 0 : index
      %16 = vector.load %arg1[%c0_8, %15, %c0_9, %c0_10] : memref<1x6x6x64xbf16, #tpu.memory_space<vmem>>, vector<1x1x6x64xbf16>
      %17 = vector.shape_cast %16 : vector<1x1x6x64xbf16> to vector<6x64xbf16>
      %18 = vector.extract_strided_slice %17 {offsets = [0, 0], sizes = [4, 64], strides = [1, 1]} : vector<6x64xbf16> to vector<4x64xbf16>
      %c0_11 = arith.constant 0 : index
      %c0_12 = arith.constant 0 : index
      %c0_13 = arith.constant 0 : index
      %19 = vector.load %arg2[%c0_11, %c0_12, %c0_13] : memref<9x64x128xbf16, #tpu.memory_space<vmem>>, vector<1x64x128xbf16>
      %20 = vector.shape_cast %19 : vector<1x64x128xbf16> to vector<64x128xbf16>
      %cst_14 = arith.constant dense<0.000000e+00> : vector<4x128xf32>
      %21 = tpu.matmul %18, %20, %cst_14 {dimension_numbers = #tpu.dot_dimension_numbers<[1], [0], [0], [1], [0, 0, 1, 1], [], []>} : vector<4x64xbf16>, vector<64x128xbf16>, vector<4x128xf32> -> vector<4x128xf32>
      %22 = arith.addf %13, %21 : vector<4x128xf32>
      %23 = vector.extract_strided_slice %17 {offsets = [1, 0], sizes = [4, 64], strides = [1, 1]} : vector<6x64xbf16> to vector<4x64xbf16>
      %c1 = arith.constant 1 : index
      %c0_15 = arith.constant 0 : index
      %c0_16 = arith.constant 0 : index
      %24 = vector.load %arg2[%c1, %c0_15, %c0_16] : memref<9x64x128xbf16, #tpu.memory_space<vmem>>, vector<1x64x128xbf16>
      %25 = vector.shape_cast %24 : vector<1x64x128xbf16> to vector<64x128xbf16>
      %cst_17 = arith.constant dense<0.000000e+00> : vector<4x128xf32>
      %26 = tpu.matmul %23, %25, %cst_17 {dimension_numbers = #tpu.dot_dimension_numbers<[1], [0], [0], [1], [0, 0, 1, 1], [], []>} : vector<4x64xbf16>, vector<64x128xbf16>, vector<4x128xf32> -> vector<4x128xf32>
      %27 = arith.addf %22, %26 : vector<4x128xf32>
      %28 = vector.extract_strided_slice %17 {offsets = [2, 0], sizes = [4, 64], strides = [1, 1]} : vector<6x64xbf16> to vector<4x64xbf16>
      %c2 = arith.constant 2 : index
      %c0_18 = arith.constant 0 : index
      %c0_19 = arith.constant 0 : index
      %29 = vector.load %arg2[%c2, %c0_18, %c0_19] : memref<9x64x128xbf16, #tpu.memory_space<vmem>>, vector<1x64x128xbf16>
      %30 = vector.shape_cast %29 : vector<1x64x128xbf16> to vector<64x128xbf16>
      %cst_20 = arith.constant dense<0.000000e+00> : vector<4x128xf32>
      %31 = tpu.matmul %28, %30, %cst_20 {dimension_numbers = #tpu.dot_dimension_numbers<[1], [0], [0], [1], [0, 0, 1, 1], [], []>} : vector<4x64xbf16>, vector<64x128xbf16>, vector<4x128xf32> -> vector<4x128xf32>
      %32 = arith.addf %27, %31 : vector<4x128xf32>
      %c1_i32_21 = arith.constant 1 : i32
      %33 = arith.addi %arg6, %c1_i32_21 : i32
      %c0_22 = arith.constant 0 : index
      %34 = arith.index_cast %33 : i32 to index
      %c0_23 = arith.constant 0 : index
      %c0_24 = arith.constant 0 : index
      %35 = vector.load %arg1[%c0_22, %34, %c0_23, %c0_24] : memref<1x6x6x64xbf16, #tpu.memory_space<vmem>>, vector<1x1x6x64xbf16>
      %36 = vector.shape_cast %35 : vector<1x1x6x64xbf16> to vector<6x64xbf16>
      %37 = vector.extract_strided_slice %36 {offsets = [0, 0], sizes = [4, 64], strides = [1, 1]} : vector<6x64xbf16> to vector<4x64xbf16>
      %c3 = arith.constant 3 : index
      %c0_25 = arith.constant 0 : index
      %c0_26 = arith.constant 0 : index
      %38 = vector.load %arg2[%c3, %c0_25, %c0_26] : memref<9x64x128xbf16, #tpu.memory_space<vmem>>, vector<1x64x128xbf16>
      %39 = vector.shape_cast %38 : vector<1x64x128xbf16> to vector<64x128xbf16>
      %cst_27 = arith.constant dense<0.000000e+00> : vector<4x128xf32>
      %40 = tpu.matmul %37, %39, %cst_27 {dimension_numbers = #tpu.dot_dimension_numbers<[1], [0], [0], [1], [0, 0, 1, 1], [], []>} : vector<4x64xbf16>, vector<64x128xbf16>, vector<4x128xf32> -> vector<4x128xf32>
      %41 = arith.addf %32, %40 : vector<4x128xf32>
      %42 = vector.extract_strided_slice %36 {offsets = [1, 0], sizes = [4, 64], strides = [1, 1]} : vector<6x64xbf16> to vector<4x64xbf16>
      %c4 = arith.constant 4 : index
      %c0_28 = arith.constant 0 : index
      %c0_29 = arith.constant 0 : index
      %43 = vector.load %arg2[%c4, %c0_28, %c0_29] : memref<9x64x128xbf16, #tpu.memory_space<vmem>>, vector<1x64x128xbf16>
      %44 = vector.shape_cast %43 : vector<1x64x128xbf16> to vector<64x128xbf16>
      %cst_30 = arith.constant dense<0.000000e+00> : vector<4x128xf32>
      %45 = tpu.matmul %42, %44, %cst_30 {dimension_numbers = #tpu.dot_dimension_numbers<[1], [0], [0], [1], [0, 0, 1, 1], [], []>} : vector<4x64xbf16>, vector<64x128xbf16>, vector<4x128xf32> -> vector<4x128xf32>
      %46 = arith.addf %41, %45 : vector<4x128xf32>
      %47 = vector.extract_strided_slice %36 {offsets = [2, 0], sizes = [4, 64], strides = [1, 1]} : vector<6x64xbf16> to vector<4x64xbf16>
      %c5 = arith.constant 5 : index
      %c0_31 = arith.constant 0 : index
      %c0_32 = arith.constant 0 : index
      %48 = vector.load %arg2[%c5, %c0_31, %c0_32] : memref<9x64x128xbf16, #tpu.memory_space<vmem>>, vector<1x64x128xbf16>
      %49 = vector.shape_cast %48 : vector<1x64x128xbf16> to vector<64x128xbf16>
      %cst_33 = arith.constant dense<0.000000e+00> : vector<4x128xf32>
      %50 = tpu.matmul %47, %49, %cst_33 {dimension_numbers = #tpu.dot_dimension_numbers<[1], [0], [0], [1], [0, 0, 1, 1], [], []>} : vector<4x64xbf16>, vector<64x128xbf16>, vector<4x128xf32> -> vector<4x128xf32>
      %51 = arith.addf %46, %50 : vector<4x128xf32>
      %c2_i32 = arith.constant 2 : i32
      %52 = arith.addi %arg6, %c2_i32 : i32
      %c0_34 = arith.constant 0 : index
      %53 = arith.index_cast %52 : i32 to index
      %c0_35 = arith.constant 0 : index
      %c0_36 = arith.constant 0 : index
      %54 = vector.load %arg1[%c0_34, %53, %c0_35, %c0_36] : memref<1x6x6x64xbf16, #tpu.memory_space<vmem>>, vector<1x1x6x64xbf16>
      %55 = vector.shape_cast %54 : vector<1x1x6x64xbf16> to vector<6x64xbf16>
      %56 = vector.extract_strided_slice %55 {offsets = [0, 0], sizes = [4, 64], strides = [1, 1]} : vector<6x64xbf16> to vector<4x64xbf16>
      %c6 = arith.constant 6 : index
      %c0_37 = arith.constant 0 : index
      %c0_38 = arith.constant 0 : index
      %57 = vector.load %arg2[%c6, %c0_37, %c0_38] : memref<9x64x128xbf16, #tpu.memory_space<vmem>>, vector<1x64x128xbf16>
      %58 = vector.shape_cast %57 : vector<1x64x128xbf16> to vector<64x128xbf16>
      %cst_39 = arith.constant dense<0.000000e+00> : vector<4x128xf32>
      %59 = tpu.matmul %56, %58, %cst_39 {dimension_numbers = #tpu.dot_dimension_numbers<[1], [0], [0], [1], [0, 0, 1, 1], [], []>} : vector<4x64xbf16>, vector<64x128xbf16>, vector<4x128xf32> -> vector<4x128xf32>
      %60 = arith.addf %51, %59 : vector<4x128xf32>
      %61 = vector.extract_strided_slice %55 {offsets = [1, 0], sizes = [4, 64], strides = [1, 1]} : vector<6x64xbf16> to vector<4x64xbf16>
      %c7 = arith.constant 7 : index
      %c0_40 = arith.constant 0 : index
      %c0_41 = arith.constant 0 : index
      %62 = vector.load %arg2[%c7, %c0_40, %c0_41] : memref<9x64x128xbf16, #tpu.memory_space<vmem>>, vector<1x64x128xbf16>
      %63 = vector.shape_cast %62 : vector<1x64x128xbf16> to vector<64x128xbf16>
      %cst_42 = arith.constant dense<0.000000e+00> : vector<4x128xf32>
      %64 = tpu.matmul %61, %63, %cst_42 {dimension_numbers = #tpu.dot_dimension_numbers<[1], [0], [0], [1], [0, 0, 1, 1], [], []>} : vector<4x64xbf16>, vector<64x128xbf16>, vector<4x128xf32> -> vector<4x128xf32>
      %65 = arith.addf %60, %64 : vector<4x128xf32>
      %66 = vector.extract_strided_slice %55 {offsets = [2, 0], sizes = [4, 64], strides = [1, 1]} : vector<6x64xbf16> to vector<4x64xbf16>
      %c8 = arith.constant 8 : index
      %c0_43 = arith.constant 0 : index
      %c0_44 = arith.constant 0 : index
      %67 = vector.load %arg2[%c8, %c0_43, %c0_44] : memref<9x64x128xbf16, #tpu.memory_space<vmem>>, vector<1x64x128xbf16>
      %68 = vector.shape_cast %67 : vector<1x64x128xbf16> to vector<64x128xbf16>
      %cst_45 = arith.constant dense<0.000000e+00> : vector<4x128xf32>
      %69 = tpu.matmul %66, %68, %cst_45 {dimension_numbers = #tpu.dot_dimension_numbers<[1], [0], [0], [1], [0, 0, 1, 1], [], []>} : vector<4x64xbf16>, vector<64x128xbf16>, vector<4x128xf32> -> vector<4x128xf32>
      %70 = arith.addf %65, %69 : vector<4x128xf32>
      %71 = arith.truncf %70 : vector<4x128xf32> to vector<4x128xbf16>
      %c0_46 = arith.constant 0 : index
      %72 = arith.index_cast %arg6 : i32 to index
      %c0_47 = arith.constant 0 : index
      %c0_48 = arith.constant 0 : index
      %73 = vector.load %arg3[%c0_46, %72, %c0_47, %c0_48] : memref<1x4x4x128xbf16, #tpu.memory_space<vmem>>, vector<1x1x4x128xbf16>
      %74 = vector.shape_cast %73 : vector<1x1x4x128xbf16> to vector<4x128xbf16>
      %75 = vector.shape_cast %71 : vector<4x128xbf16> to vector<1x1x4x128xbf16>
      tpu.vector_store %arg3[%c0_46, %72, %c0_47, %c0_48], %75 {strides = array<i32>} : memref<1x4x4x128xbf16, #tpu.memory_space<vmem>>, vector<1x1x4x128xbf16>,
      %cst_49 = arith.constant dense<0.000000e+00> : vector<128xf32>
      %76 = vector.multi_reduction <add>, %70, %cst_49 [0] : vector<4x128xf32> to vector<128xf32>
      %77 = vector.shape_cast %76 : vector<128xf32> to vector<1x128xf32>
      %78 = arith.addf %arg7, %77 : vector<1x128xf32>
      %79 = arith.mulf %70, %70 : vector<4x128xf32>
      %cst_50 = arith.constant dense<0.000000e+00> : vector<128xf32>
      %80 = vector.multi_reduction <add>, %79, %cst_50 [0] : vector<4x128xf32> to vector<128xf32>
      %81 = vector.shape_cast %80 : vector<128xf32> to vector<1x128xf32>
      %82 = arith.addf %arg8, %81 : vector<1x128xf32>
      scf.yield %78, %82 : vector<1x128xf32>, vector<1x128xf32>
    }
    %c4_i32_0 = arith.constant 4 : i32
    %3 = vector.shape_cast %2#0 : vector<1x128xf32> to vector<1x128xf32>
    %4 = vector.broadcast %3 : vector<1x128xf32> to vector<8x128xf32>
    %c0 = arith.constant 0 : index
    %c0_1 = arith.constant 0 : index
    %c0_2 = arith.constant 0 : index
    %5 = vector.load %arg4[%c0, %c0_1, %c0_2] : memref<1x8x128xf32, #tpu.memory_space<vmem>>, vector<1x8x128xf32>
    %6 = vector.shape_cast %5 : vector<1x8x128xf32> to vector<8x128xf32>
    %7 = vector.shape_cast %4 : vector<8x128xf32> to vector<1x8x128xf32>
    tpu.vector_store %arg4[%c0, %c0_1, %c0_2], %7 {strides = array<i32>} : memref<1x8x128xf32, #tpu.memory_space<vmem>>, vector<1x8x128xf32>,
    %8 = vector.shape_cast %2#1 : vector<1x128xf32> to vector<1x128xf32>
    %9 = vector.broadcast %8 : vector<1x128xf32> to vector<8x128xf32>
    %c0_3 = arith.constant 0 : index
    %c0_4 = arith.constant 0 : index
    %c0_5 = arith.constant 0 : index
    %10 = vector.load %arg5[%c0_3, %c0_4, %c0_5] : memref<1x8x128xf32, #tpu.memory_space<vmem>>, vector<1x8x128xf32>
    %11 = vector.shape_cast %10 : vector<1x8x128xf32> to vector<8x128xf32>
    %12 = vector.shape_cast %9 : vector<8x128xf32> to vector<1x8x128xf32>
    tpu.vector_store %arg5[%c0_3, %c0_4, %c0_5], %12 {strides = array<i32>} : memref<1x8x128xf32, #tpu.memory_space<vmem>>, vector<1x8x128xf32>,
    return
  }
  func.func @transform_0(%arg0: i32) -> (i32, i32, i32, i32) {
    %c0_i32 = arith.constant 0 : i32
    %c0_i32_0 = arith.constant 0 : i32
    %c0_i32_1 = arith.constant 0 : i32
    %c0_i32_2 = arith.constant 0 : i32
    return %arg0, %c0_i32, %c0_i32_0, %c0_i32_1 : i32, i32, i32, i32
  }
  func.func @transform_1(%arg0: i32) -> (i32, i32, i32) {
    %c0_i32 = arith.constant 0 : i32
    %c0_i32_0 = arith.constant 0 : i32
    %c0_i32_1 = arith.constant 0 : i32
    %c0_i32_2 = arith.constant 0 : i32
    return %c0_i32, %c0_i32_0, %c0_i32_1 : i32, i32, i32
  }
  func.func @transform_2(%arg0: i32) -> (i32, i32, i32, i32) {
    %c0_i32 = arith.constant 0 : i32
    %c0_i32_0 = arith.constant 0 : i32
    %c0_i32_1 = arith.constant 0 : i32
    %c0_i32_2 = arith.constant 0 : i32
    return %arg0, %c0_i32, %c0_i32_0, %c0_i32_1 : i32, i32, i32, i32
  }
  func.func @transform_3(%arg0: i32) -> (i32, i32, i32) {
    %c0_i32 = arith.constant 0 : i32
    %c0_i32_0 = arith.constant 0 : i32
    %c0_i32_1 = arith.constant 0 : i32
    return %arg0, %c0_i32, %c0_i32_0 : i32, i32, i32
  }
  func.func @transform_4(%arg0: i32) -> (i32, i32, i32) {
    %c0_i32 = arith.constant 0 : i32
    %c0_i32_0 = arith.constant 0 : i32
    %c0_i32_1 = arith.constant 0 : i32
    return %arg0, %c0_i32, %c0_i32_0 : i32, i32, i32
  }
}

module attributes {stable_mosaic.version = 11 : i64} {
  func.func @kernel(%arg0: i32, %arg1: memref<1x10x10x32xbf16, #tpu.memory_space<vmem>>, %arg2: memref<9x32x128xbf16, #tpu.memory_space<vmem>>, %arg3: memref<1x8x8x128xbf16, #tpu.memory_space<vmem>>, %arg4: memref<1x8x128xf32, #tpu.memory_space<vmem>>, %arg5: memref<1x8x128xf32, #tpu.memory_space<vmem>>) attributes {dimension_semantics = [#tpu.dimension_semantics<parallel>], iteration_bounds = array<i64: 2>, scalar_prefetch = 0 : i64, scratch_operands = 0 : i64, tpu.core_type = #tpu.core_type<tc>, window_params = [{transform_indices = @transform_0, window_bounds = array<i64: 1, 10, 10, 32>}, {pipeline_mode = #tpu.pipeline_mode<synchronous>, transform_indices = @transform_1, window_bounds = array<i64: 9, 32, 128>}, {transform_indices = @transform_2, window_bounds = array<i64: 1, 8, 8, 128>}, {transform_indices = @transform_3, window_bounds = array<i64: 1, 8, 128>}, {transform_indices = @transform_4, window_bounds = array<i64: 1, 8, 128>}]} {
    %cst = arith.constant 0.000000e+00 : f32
    %0 = vector.broadcast %cst : f32 to vector<1x128xf32>
    %c0_i32 = arith.constant 0 : i32
    %c8_i32 = arith.constant 8 : i32
    %1 = arith.addi %c0_i32, %c8_i32 : i32
    %c1_i32 = arith.constant 1 : i32
    %2:2 = scf.for %arg6 = %c0_i32 to %1 step %c1_i32 iter_args(%arg7 = %0, %arg8 = %0) -> (vector<1x128xf32>, vector<1x128xf32>)  : i32 {
      %cst_6 = arith.constant 0.000000e+00 : f32
      %13 = vector.broadcast %cst_6 : f32 to vector<8x128xf32>
      %c0_i32_7 = arith.constant 0 : i32
      %14 = arith.addi %arg6, %c0_i32_7 : i32
      %c0_8 = arith.constant 0 : index
      %15 = arith.index_cast %14 : i32 to index
      %c0_9 = arith.constant 0 : index
      %c0_10 = arith.constant 0 : index
      %16 = vector.load %arg1[%c0_8, %15, %c0_9, %c0_10] : memref<1x10x10x32xbf16, #tpu.memory_space<vmem>>, vector<1x1x10x32xbf16>
      %17 = vector.shape_cast %16 : vector<1x1x10x32xbf16> to vector<10x32xbf16>
      %18 = vector.extract_strided_slice %17 {offsets = [0, 0], sizes = [8, 32], strides = [1, 1]} : vector<10x32xbf16> to vector<8x32xbf16>
      %c0_11 = arith.constant 0 : index
      %c0_12 = arith.constant 0 : index
      %c0_13 = arith.constant 0 : index
      %19 = vector.load %arg2[%c0_11, %c0_12, %c0_13] : memref<9x32x128xbf16, #tpu.memory_space<vmem>>, vector<1x32x128xbf16>
      %20 = vector.shape_cast %19 : vector<1x32x128xbf16> to vector<32x128xbf16>
      %cst_14 = arith.constant dense<0.000000e+00> : vector<8x128xf32>
      %21 = tpu.matmul %18, %20, %cst_14 {dimension_numbers = #tpu.dot_dimension_numbers<[1], [0], [0], [1], [0, 0, 1, 1], [], []>} : vector<8x32xbf16>, vector<32x128xbf16>, vector<8x128xf32> -> vector<8x128xf32>
      %22 = arith.addf %13, %21 : vector<8x128xf32>
      %23 = vector.extract_strided_slice %17 {offsets = [1, 0], sizes = [8, 32], strides = [1, 1]} : vector<10x32xbf16> to vector<8x32xbf16>
      %c1 = arith.constant 1 : index
      %c0_15 = arith.constant 0 : index
      %c0_16 = arith.constant 0 : index
      %24 = vector.load %arg2[%c1, %c0_15, %c0_16] : memref<9x32x128xbf16, #tpu.memory_space<vmem>>, vector<1x32x128xbf16>
      %25 = vector.shape_cast %24 : vector<1x32x128xbf16> to vector<32x128xbf16>
      %cst_17 = arith.constant dense<0.000000e+00> : vector<8x128xf32>
      %26 = tpu.matmul %23, %25, %cst_17 {dimension_numbers = #tpu.dot_dimension_numbers<[1], [0], [0], [1], [0, 0, 1, 1], [], []>} : vector<8x32xbf16>, vector<32x128xbf16>, vector<8x128xf32> -> vector<8x128xf32>
      %27 = arith.addf %22, %26 : vector<8x128xf32>
      %28 = vector.extract_strided_slice %17 {offsets = [2, 0], sizes = [8, 32], strides = [1, 1]} : vector<10x32xbf16> to vector<8x32xbf16>
      %c2 = arith.constant 2 : index
      %c0_18 = arith.constant 0 : index
      %c0_19 = arith.constant 0 : index
      %29 = vector.load %arg2[%c2, %c0_18, %c0_19] : memref<9x32x128xbf16, #tpu.memory_space<vmem>>, vector<1x32x128xbf16>
      %30 = vector.shape_cast %29 : vector<1x32x128xbf16> to vector<32x128xbf16>
      %cst_20 = arith.constant dense<0.000000e+00> : vector<8x128xf32>
      %31 = tpu.matmul %28, %30, %cst_20 {dimension_numbers = #tpu.dot_dimension_numbers<[1], [0], [0], [1], [0, 0, 1, 1], [], []>} : vector<8x32xbf16>, vector<32x128xbf16>, vector<8x128xf32> -> vector<8x128xf32>
      %32 = arith.addf %27, %31 : vector<8x128xf32>
      %c1_i32_21 = arith.constant 1 : i32
      %33 = arith.addi %arg6, %c1_i32_21 : i32
      %c0_22 = arith.constant 0 : index
      %34 = arith.index_cast %33 : i32 to index
      %c0_23 = arith.constant 0 : index
      %c0_24 = arith.constant 0 : index
      %35 = vector.load %arg1[%c0_22, %34, %c0_23, %c0_24] : memref<1x10x10x32xbf16, #tpu.memory_space<vmem>>, vector<1x1x10x32xbf16>
      %36 = vector.shape_cast %35 : vector<1x1x10x32xbf16> to vector<10x32xbf16>
      %37 = vector.extract_strided_slice %36 {offsets = [0, 0], sizes = [8, 32], strides = [1, 1]} : vector<10x32xbf16> to vector<8x32xbf16>
      %c3 = arith.constant 3 : index
      %c0_25 = arith.constant 0 : index
      %c0_26 = arith.constant 0 : index
      %38 = vector.load %arg2[%c3, %c0_25, %c0_26] : memref<9x32x128xbf16, #tpu.memory_space<vmem>>, vector<1x32x128xbf16>
      %39 = vector.shape_cast %38 : vector<1x32x128xbf16> to vector<32x128xbf16>
      %cst_27 = arith.constant dense<0.000000e+00> : vector<8x128xf32>
      %40 = tpu.matmul %37, %39, %cst_27 {dimension_numbers = #tpu.dot_dimension_numbers<[1], [0], [0], [1], [0, 0, 1, 1], [], []>} : vector<8x32xbf16>, vector<32x128xbf16>, vector<8x128xf32> -> vector<8x128xf32>
      %41 = arith.addf %32, %40 : vector<8x128xf32>
      %42 = vector.extract_strided_slice %36 {offsets = [1, 0], sizes = [8, 32], strides = [1, 1]} : vector<10x32xbf16> to vector<8x32xbf16>
      %c4 = arith.constant 4 : index
      %c0_28 = arith.constant 0 : index
      %c0_29 = arith.constant 0 : index
      %43 = vector.load %arg2[%c4, %c0_28, %c0_29] : memref<9x32x128xbf16, #tpu.memory_space<vmem>>, vector<1x32x128xbf16>
      %44 = vector.shape_cast %43 : vector<1x32x128xbf16> to vector<32x128xbf16>
      %cst_30 = arith.constant dense<0.000000e+00> : vector<8x128xf32>
      %45 = tpu.matmul %42, %44, %cst_30 {dimension_numbers = #tpu.dot_dimension_numbers<[1], [0], [0], [1], [0, 0, 1, 1], [], []>} : vector<8x32xbf16>, vector<32x128xbf16>, vector<8x128xf32> -> vector<8x128xf32>
      %46 = arith.addf %41, %45 : vector<8x128xf32>
      %47 = vector.extract_strided_slice %36 {offsets = [2, 0], sizes = [8, 32], strides = [1, 1]} : vector<10x32xbf16> to vector<8x32xbf16>
      %c5 = arith.constant 5 : index
      %c0_31 = arith.constant 0 : index
      %c0_32 = arith.constant 0 : index
      %48 = vector.load %arg2[%c5, %c0_31, %c0_32] : memref<9x32x128xbf16, #tpu.memory_space<vmem>>, vector<1x32x128xbf16>
      %49 = vector.shape_cast %48 : vector<1x32x128xbf16> to vector<32x128xbf16>
      %cst_33 = arith.constant dense<0.000000e+00> : vector<8x128xf32>
      %50 = tpu.matmul %47, %49, %cst_33 {dimension_numbers = #tpu.dot_dimension_numbers<[1], [0], [0], [1], [0, 0, 1, 1], [], []>} : vector<8x32xbf16>, vector<32x128xbf16>, vector<8x128xf32> -> vector<8x128xf32>
      %51 = arith.addf %46, %50 : vector<8x128xf32>
      %c2_i32 = arith.constant 2 : i32
      %52 = arith.addi %arg6, %c2_i32 : i32
      %c0_34 = arith.constant 0 : index
      %53 = arith.index_cast %52 : i32 to index
      %c0_35 = arith.constant 0 : index
      %c0_36 = arith.constant 0 : index
      %54 = vector.load %arg1[%c0_34, %53, %c0_35, %c0_36] : memref<1x10x10x32xbf16, #tpu.memory_space<vmem>>, vector<1x1x10x32xbf16>
      %55 = vector.shape_cast %54 : vector<1x1x10x32xbf16> to vector<10x32xbf16>
      %56 = vector.extract_strided_slice %55 {offsets = [0, 0], sizes = [8, 32], strides = [1, 1]} : vector<10x32xbf16> to vector<8x32xbf16>
      %c6 = arith.constant 6 : index
      %c0_37 = arith.constant 0 : index
      %c0_38 = arith.constant 0 : index
      %57 = vector.load %arg2[%c6, %c0_37, %c0_38] : memref<9x32x128xbf16, #tpu.memory_space<vmem>>, vector<1x32x128xbf16>
      %58 = vector.shape_cast %57 : vector<1x32x128xbf16> to vector<32x128xbf16>
      %cst_39 = arith.constant dense<0.000000e+00> : vector<8x128xf32>
      %59 = tpu.matmul %56, %58, %cst_39 {dimension_numbers = #tpu.dot_dimension_numbers<[1], [0], [0], [1], [0, 0, 1, 1], [], []>} : vector<8x32xbf16>, vector<32x128xbf16>, vector<8x128xf32> -> vector<8x128xf32>
      %60 = arith.addf %51, %59 : vector<8x128xf32>
      %61 = vector.extract_strided_slice %55 {offsets = [1, 0], sizes = [8, 32], strides = [1, 1]} : vector<10x32xbf16> to vector<8x32xbf16>
      %c7 = arith.constant 7 : index
      %c0_40 = arith.constant 0 : index
      %c0_41 = arith.constant 0 : index
      %62 = vector.load %arg2[%c7, %c0_40, %c0_41] : memref<9x32x128xbf16, #tpu.memory_space<vmem>>, vector<1x32x128xbf16>
      %63 = vector.shape_cast %62 : vector<1x32x128xbf16> to vector<32x128xbf16>
      %cst_42 = arith.constant dense<0.000000e+00> : vector<8x128xf32>
      %64 = tpu.matmul %61, %63, %cst_42 {dimension_numbers = #tpu.dot_dimension_numbers<[1], [0], [0], [1], [0, 0, 1, 1], [], []>} : vector<8x32xbf16>, vector<32x128xbf16>, vector<8x128xf32> -> vector<8x128xf32>
      %65 = arith.addf %60, %64 : vector<8x128xf32>
      %66 = vector.extract_strided_slice %55 {offsets = [2, 0], sizes = [8, 32], strides = [1, 1]} : vector<10x32xbf16> to vector<8x32xbf16>
      %c8 = arith.constant 8 : index
      %c0_43 = arith.constant 0 : index
      %c0_44 = arith.constant 0 : index
      %67 = vector.load %arg2[%c8, %c0_43, %c0_44] : memref<9x32x128xbf16, #tpu.memory_space<vmem>>, vector<1x32x128xbf16>
      %68 = vector.shape_cast %67 : vector<1x32x128xbf16> to vector<32x128xbf16>
      %cst_45 = arith.constant dense<0.000000e+00> : vector<8x128xf32>
      %69 = tpu.matmul %66, %68, %cst_45 {dimension_numbers = #tpu.dot_dimension_numbers<[1], [0], [0], [1], [0, 0, 1, 1], [], []>} : vector<8x32xbf16>, vector<32x128xbf16>, vector<8x128xf32> -> vector<8x128xf32>
      %70 = arith.addf %65, %69 : vector<8x128xf32>
      %71 = arith.truncf %70 : vector<8x128xf32> to vector<8x128xbf16>
      %c0_46 = arith.constant 0 : index
      %72 = arith.index_cast %arg6 : i32 to index
      %c0_47 = arith.constant 0 : index
      %c0_48 = arith.constant 0 : index
      %73 = vector.load %arg3[%c0_46, %72, %c0_47, %c0_48] : memref<1x8x8x128xbf16, #tpu.memory_space<vmem>>, vector<1x1x8x128xbf16>
      %74 = vector.shape_cast %73 : vector<1x1x8x128xbf16> to vector<8x128xbf16>
      %75 = vector.shape_cast %71 : vector<8x128xbf16> to vector<1x1x8x128xbf16>
      tpu.vector_store %arg3[%c0_46, %72, %c0_47, %c0_48], %75 {strides = array<i32>} : memref<1x8x8x128xbf16, #tpu.memory_space<vmem>>, vector<1x1x8x128xbf16>,
      %cst_49 = arith.constant dense<0.000000e+00> : vector<128xf32>
      %76 = vector.multi_reduction <add>, %70, %cst_49 [0] : vector<8x128xf32> to vector<128xf32>
      %77 = vector.shape_cast %76 : vector<128xf32> to vector<1x128xf32>
      %78 = arith.addf %arg7, %77 : vector<1x128xf32>
      %79 = arith.mulf %70, %70 : vector<8x128xf32>
      %cst_50 = arith.constant dense<0.000000e+00> : vector<128xf32>
      %80 = vector.multi_reduction <add>, %79, %cst_50 [0] : vector<8x128xf32> to vector<128xf32>
      %81 = vector.shape_cast %80 : vector<128xf32> to vector<1x128xf32>
      %82 = arith.addf %arg8, %81 : vector<1x128xf32>
      scf.yield %78, %82 : vector<1x128xf32>, vector<1x128xf32>
    }
    %c8_i32_0 = arith.constant 8 : i32
    %3 = vector.shape_cast %2#0 : vector<1x128xf32> to vector<1x128xf32>
    %4 = vector.broadcast %3 : vector<1x128xf32> to vector<8x128xf32>
    %c0 = arith.constant 0 : index
    %c0_1 = arith.constant 0 : index
    %c0_2 = arith.constant 0 : index
    %5 = vector.load %arg4[%c0, %c0_1, %c0_2] : memref<1x8x128xf32, #tpu.memory_space<vmem>>, vector<1x8x128xf32>
    %6 = vector.shape_cast %5 : vector<1x8x128xf32> to vector<8x128xf32>
    %7 = vector.shape_cast %4 : vector<8x128xf32> to vector<1x8x128xf32>
    tpu.vector_store %arg4[%c0, %c0_1, %c0_2], %7 {strides = array<i32>} : memref<1x8x128xf32, #tpu.memory_space<vmem>>, vector<1x8x128xf32>,
    %8 = vector.shape_cast %2#1 : vector<1x128xf32> to vector<1x128xf32>
    %9 = vector.broadcast %8 : vector<1x128xf32> to vector<8x128xf32>
    %c0_3 = arith.constant 0 : index
    %c0_4 = arith.constant 0 : index
    %c0_5 = arith.constant 0 : index
    %10 = vector.load %arg5[%c0_3, %c0_4, %c0_5] : memref<1x8x128xf32, #tpu.memory_space<vmem>>, vector<1x8x128xf32>
    %11 = vector.shape_cast %10 : vector<1x8x128xf32> to vector<8x128xf32>
    %12 = vector.shape_cast %9 : vector<8x128xf32> to vector<1x8x128xf32>
    tpu.vector_store %arg5[%c0_3, %c0_4, %c0_5], %12 {strides = array<i32>} : memref<1x8x128xf32, #tpu.memory_space<vmem>>, vector<1x8x128xf32>,
    return
  }
  func.func @transform_0(%arg0: i32) -> (i32, i32, i32, i32) {
    %c0_i32 = arith.constant 0 : i32
    %c0_i32_0 = arith.constant 0 : i32
    %c0_i32_1 = arith.constant 0 : i32
    %c0_i32_2 = arith.constant 0 : i32
    return %arg0, %c0_i32, %c0_i32_0, %c0_i32_1 : i32, i32, i32, i32
  }
  func.func @transform_1(%arg0: i32) -> (i32, i32, i32) {
    %c0_i32 = arith.constant 0 : i32
    %c0_i32_0 = arith.constant 0 : i32
    %c0_i32_1 = arith.constant 0 : i32
    %c0_i32_2 = arith.constant 0 : i32
    return %c0_i32, %c0_i32_0, %c0_i32_1 : i32, i32, i32
  }
  func.func @transform_2(%arg0: i32) -> (i32, i32, i32, i32) {
    %c0_i32 = arith.constant 0 : i32
    %c0_i32_0 = arith.constant 0 : i32
    %c0_i32_1 = arith.constant 0 : i32
    %c0_i32_2 = arith.constant 0 : i32
    return %arg0, %c0_i32, %c0_i32_0, %c0_i32_1 : i32, i32, i32, i32
  }
  func.func @transform_3(%arg0: i32) -> (i32, i32, i32) {
    %c0_i32 = arith.constant 0 : i32
    %c0_i32_0 = arith.constant 0 : i32
    %c0_i32_1 = arith.constant 0 : i32
    return %arg0, %c0_i32, %c0_i32_0 : i32, i32, i32
  }
  func.func @transform_4(%arg0: i32) -> (i32, i32, i32) {
    %c0_i32 = arith.constant 0 : i32
    %c0_i32_0 = arith.constant 0 : i32
    %c0_i32_1 = arith.constant 0 : i32
    return %arg0, %c0_i32, %c0_i32_0 : i32, i32, i32
  }
}

module attributes {stable_mosaic.version = 11 : i64} {
  func.func @kernel(%arg0: i32, %arg1: memref<1x18x18x16xbf16, #tpu.memory_space<vmem>>, %arg2: memref<9x16x128xbf16, #tpu.memory_space<vmem>>, %arg3: memref<1x16x16x128xbf16, #tpu.memory_space<vmem>>, %arg4: memref<1x8x128xf32, #tpu.memory_space<vmem>>, %arg5: memref<1x8x128xf32, #tpu.memory_space<vmem>>) attributes {dimension_semantics = [#tpu.dimension_semantics<parallel>], iteration_bounds = array<i64: 2>, scalar_prefetch = 0 : i64, scratch_operands = 0 : i64, tpu.core_type = #tpu.core_type<tc>, window_params = [{transform_indices = @transform_0, window_bounds = array<i64: 1, 18, 18, 16>}, {pipeline_mode = #tpu.pipeline_mode<synchronous>, transform_indices = @transform_1, window_bounds = array<i64: 9, 16, 128>}, {transform_indices = @transform_2, window_bounds = array<i64: 1, 16, 16, 128>}, {transform_indices = @transform_3, window_bounds = array<i64: 1, 8, 128>}, {transform_indices = @transform_4, window_bounds = array<i64: 1, 8, 128>}]} {
    %cst = arith.constant 0.000000e+00 : f32
    %0 = vector.broadcast %cst : f32 to vector<1x128xf32>
    %c0_i32 = arith.constant 0 : i32
    %c16_i32 = arith.constant 16 : i32
    %1 = arith.addi %c0_i32, %c16_i32 : i32
    %c1_i32 = arith.constant 1 : i32
    %2:2 = scf.for %arg6 = %c0_i32 to %1 step %c1_i32 iter_args(%arg7 = %0, %arg8 = %0) -> (vector<1x128xf32>, vector<1x128xf32>)  : i32 {
      %cst_6 = arith.constant 0.000000e+00 : f32
      %13 = vector.broadcast %cst_6 : f32 to vector<16x128xf32>
      %c0_i32_7 = arith.constant 0 : i32
      %14 = arith.addi %arg6, %c0_i32_7 : i32
      %c0_8 = arith.constant 0 : index
      %15 = arith.index_cast %14 : i32 to index
      %c0_9 = arith.constant 0 : index
      %c0_10 = arith.constant 0 : index
      %16 = vector.load %arg1[%c0_8, %15, %c0_9, %c0_10] : memref<1x18x18x16xbf16, #tpu.memory_space<vmem>>, vector<1x1x18x16xbf16>
      %17 = vector.shape_cast %16 : vector<1x1x18x16xbf16> to vector<18x16xbf16>
      %18 = vector.extract_strided_slice %17 {offsets = [0, 0], sizes = [16, 16], strides = [1, 1]} : vector<18x16xbf16> to vector<16x16xbf16>
      %c0_11 = arith.constant 0 : index
      %c0_12 = arith.constant 0 : index
      %c0_13 = arith.constant 0 : index
      %19 = vector.load %arg2[%c0_11, %c0_12, %c0_13] : memref<9x16x128xbf16, #tpu.memory_space<vmem>>, vector<1x16x128xbf16>
      %20 = vector.shape_cast %19 : vector<1x16x128xbf16> to vector<16x128xbf16>
      %cst_14 = arith.constant dense<0.000000e+00> : vector<16x128xf32>
      %21 = tpu.matmul %18, %20, %cst_14 {dimension_numbers = #tpu.dot_dimension_numbers<[1], [0], [0], [1], [0, 0, 1, 1], [], []>} : vector<16x16xbf16>, vector<16x128xbf16>, vector<16x128xf32> -> vector<16x128xf32>
      %22 = arith.addf %13, %21 : vector<16x128xf32>
      %23 = vector.extract_strided_slice %17 {offsets = [1, 0], sizes = [16, 16], strides = [1, 1]} : vector<18x16xbf16> to vector<16x16xbf16>
      %c1 = arith.constant 1 : index
      %c0_15 = arith.constant 0 : index
      %c0_16 = arith.constant 0 : index
      %24 = vector.load %arg2[%c1, %c0_15, %c0_16] : memref<9x16x128xbf16, #tpu.memory_space<vmem>>, vector<1x16x128xbf16>
      %25 = vector.shape_cast %24 : vector<1x16x128xbf16> to vector<16x128xbf16>
      %cst_17 = arith.constant dense<0.000000e+00> : vector<16x128xf32>
      %26 = tpu.matmul %23, %25, %cst_17 {dimension_numbers = #tpu.dot_dimension_numbers<[1], [0], [0], [1], [0, 0, 1, 1], [], []>} : vector<16x16xbf16>, vector<16x128xbf16>, vector<16x128xf32> -> vector<16x128xf32>
      %27 = arith.addf %22, %26 : vector<16x128xf32>
      %28 = vector.extract_strided_slice %17 {offsets = [2, 0], sizes = [16, 16], strides = [1, 1]} : vector<18x16xbf16> to vector<16x16xbf16>
      %c2 = arith.constant 2 : index
      %c0_18 = arith.constant 0 : index
      %c0_19 = arith.constant 0 : index
      %29 = vector.load %arg2[%c2, %c0_18, %c0_19] : memref<9x16x128xbf16, #tpu.memory_space<vmem>>, vector<1x16x128xbf16>
      %30 = vector.shape_cast %29 : vector<1x16x128xbf16> to vector<16x128xbf16>
      %cst_20 = arith.constant dense<0.000000e+00> : vector<16x128xf32>
      %31 = tpu.matmul %28, %30, %cst_20 {dimension_numbers = #tpu.dot_dimension_numbers<[1], [0], [0], [1], [0, 0, 1, 1], [], []>} : vector<16x16xbf16>, vector<16x128xbf16>, vector<16x128xf32> -> vector<16x128xf32>
      %32 = arith.addf %27, %31 : vector<16x128xf32>
      %c1_i32_21 = arith.constant 1 : i32
      %33 = arith.addi %arg6, %c1_i32_21 : i32
      %c0_22 = arith.constant 0 : index
      %34 = arith.index_cast %33 : i32 to index
      %c0_23 = arith.constant 0 : index
      %c0_24 = arith.constant 0 : index
      %35 = vector.load %arg1[%c0_22, %34, %c0_23, %c0_24] : memref<1x18x18x16xbf16, #tpu.memory_space<vmem>>, vector<1x1x18x16xbf16>
      %36 = vector.shape_cast %35 : vector<1x1x18x16xbf16> to vector<18x16xbf16>
      %37 = vector.extract_strided_slice %36 {offsets = [0, 0], sizes = [16, 16], strides = [1, 1]} : vector<18x16xbf16> to vector<16x16xbf16>
      %c3 = arith.constant 3 : index
      %c0_25 = arith.constant 0 : index
      %c0_26 = arith.constant 0 : index
      %38 = vector.load %arg2[%c3, %c0_25, %c0_26] : memref<9x16x128xbf16, #tpu.memory_space<vmem>>, vector<1x16x128xbf16>
      %39 = vector.shape_cast %38 : vector<1x16x128xbf16> to vector<16x128xbf16>
      %cst_27 = arith.constant dense<0.000000e+00> : vector<16x128xf32>
      %40 = tpu.matmul %37, %39, %cst_27 {dimension_numbers = #tpu.dot_dimension_numbers<[1], [0], [0], [1], [0, 0, 1, 1], [], []>} : vector<16x16xbf16>, vector<16x128xbf16>, vector<16x128xf32> -> vector<16x128xf32>
      %41 = arith.addf %32, %40 : vector<16x128xf32>
      %42 = vector.extract_strided_slice %36 {offsets = [1, 0], sizes = [16, 16], strides = [1, 1]} : vector<18x16xbf16> to vector<16x16xbf16>
      %c4 = arith.constant 4 : index
      %c0_28 = arith.constant 0 : index
      %c0_29 = arith.constant 0 : index
      %43 = vector.load %arg2[%c4, %c0_28, %c0_29] : memref<9x16x128xbf16, #tpu.memory_space<vmem>>, vector<1x16x128xbf16>
      %44 = vector.shape_cast %43 : vector<1x16x128xbf16> to vector<16x128xbf16>
      %cst_30 = arith.constant dense<0.000000e+00> : vector<16x128xf32>
      %45 = tpu.matmul %42, %44, %cst_30 {dimension_numbers = #tpu.dot_dimension_numbers<[1], [0], [0], [1], [0, 0, 1, 1], [], []>} : vector<16x16xbf16>, vector<16x128xbf16>, vector<16x128xf32> -> vector<16x128xf32>
      %46 = arith.addf %41, %45 : vector<16x128xf32>
      %47 = vector.extract_strided_slice %36 {offsets = [2, 0], sizes = [16, 16], strides = [1, 1]} : vector<18x16xbf16> to vector<16x16xbf16>
      %c5 = arith.constant 5 : index
      %c0_31 = arith.constant 0 : index
      %c0_32 = arith.constant 0 : index
      %48 = vector.load %arg2[%c5, %c0_31, %c0_32] : memref<9x16x128xbf16, #tpu.memory_space<vmem>>, vector<1x16x128xbf16>
      %49 = vector.shape_cast %48 : vector<1x16x128xbf16> to vector<16x128xbf16>
      %cst_33 = arith.constant dense<0.000000e+00> : vector<16x128xf32>
      %50 = tpu.matmul %47, %49, %cst_33 {dimension_numbers = #tpu.dot_dimension_numbers<[1], [0], [0], [1], [0, 0, 1, 1], [], []>} : vector<16x16xbf16>, vector<16x128xbf16>, vector<16x128xf32> -> vector<16x128xf32>
      %51 = arith.addf %46, %50 : vector<16x128xf32>
      %c2_i32 = arith.constant 2 : i32
      %52 = arith.addi %arg6, %c2_i32 : i32
      %c0_34 = arith.constant 0 : index
      %53 = arith.index_cast %52 : i32 to index
      %c0_35 = arith.constant 0 : index
      %c0_36 = arith.constant 0 : index
      %54 = vector.load %arg1[%c0_34, %53, %c0_35, %c0_36] : memref<1x18x18x16xbf16, #tpu.memory_space<vmem>>, vector<1x1x18x16xbf16>
      %55 = vector.shape_cast %54 : vector<1x1x18x16xbf16> to vector<18x16xbf16>
      %56 = vector.extract_strided_slice %55 {offsets = [0, 0], sizes = [16, 16], strides = [1, 1]} : vector<18x16xbf16> to vector<16x16xbf16>
      %c6 = arith.constant 6 : index
      %c0_37 = arith.constant 0 : index
      %c0_38 = arith.constant 0 : index
      %57 = vector.load %arg2[%c6, %c0_37, %c0_38] : memref<9x16x128xbf16, #tpu.memory_space<vmem>>, vector<1x16x128xbf16>
      %58 = vector.shape_cast %57 : vector<1x16x128xbf16> to vector<16x128xbf16>
      %cst_39 = arith.constant dense<0.000000e+00> : vector<16x128xf32>
      %59 = tpu.matmul %56, %58, %cst_39 {dimension_numbers = #tpu.dot_dimension_numbers<[1], [0], [0], [1], [0, 0, 1, 1], [], []>} : vector<16x16xbf16>, vector<16x128xbf16>, vector<16x128xf32> -> vector<16x128xf32>
      %60 = arith.addf %51, %59 : vector<16x128xf32>
      %61 = vector.extract_strided_slice %55 {offsets = [1, 0], sizes = [16, 16], strides = [1, 1]} : vector<18x16xbf16> to vector<16x16xbf16>
      %c7 = arith.constant 7 : index
      %c0_40 = arith.constant 0 : index
      %c0_41 = arith.constant 0 : index
      %62 = vector.load %arg2[%c7, %c0_40, %c0_41] : memref<9x16x128xbf16, #tpu.memory_space<vmem>>, vector<1x16x128xbf16>
      %63 = vector.shape_cast %62 : vector<1x16x128xbf16> to vector<16x128xbf16>
      %cst_42 = arith.constant dense<0.000000e+00> : vector<16x128xf32>
      %64 = tpu.matmul %61, %63, %cst_42 {dimension_numbers = #tpu.dot_dimension_numbers<[1], [0], [0], [1], [0, 0, 1, 1], [], []>} : vector<16x16xbf16>, vector<16x128xbf16>, vector<16x128xf32> -> vector<16x128xf32>
      %65 = arith.addf %60, %64 : vector<16x128xf32>
      %66 = vector.extract_strided_slice %55 {offsets = [2, 0], sizes = [16, 16], strides = [1, 1]} : vector<18x16xbf16> to vector<16x16xbf16>
      %c8 = arith.constant 8 : index
      %c0_43 = arith.constant 0 : index
      %c0_44 = arith.constant 0 : index
      %67 = vector.load %arg2[%c8, %c0_43, %c0_44] : memref<9x16x128xbf16, #tpu.memory_space<vmem>>, vector<1x16x128xbf16>
      %68 = vector.shape_cast %67 : vector<1x16x128xbf16> to vector<16x128xbf16>
      %cst_45 = arith.constant dense<0.000000e+00> : vector<16x128xf32>
      %69 = tpu.matmul %66, %68, %cst_45 {dimension_numbers = #tpu.dot_dimension_numbers<[1], [0], [0], [1], [0, 0, 1, 1], [], []>} : vector<16x16xbf16>, vector<16x128xbf16>, vector<16x128xf32> -> vector<16x128xf32>
      %70 = arith.addf %65, %69 : vector<16x128xf32>
      %71 = arith.truncf %70 : vector<16x128xf32> to vector<16x128xbf16>
      %c0_46 = arith.constant 0 : index
      %72 = arith.index_cast %arg6 : i32 to index
      %c0_47 = arith.constant 0 : index
      %c0_48 = arith.constant 0 : index
      %73 = vector.load %arg3[%c0_46, %72, %c0_47, %c0_48] : memref<1x16x16x128xbf16, #tpu.memory_space<vmem>>, vector<1x1x16x128xbf16>
      %74 = vector.shape_cast %73 : vector<1x1x16x128xbf16> to vector<16x128xbf16>
      %75 = vector.shape_cast %71 : vector<16x128xbf16> to vector<1x1x16x128xbf16>
      tpu.vector_store %arg3[%c0_46, %72, %c0_47, %c0_48], %75 {strides = array<i32>} : memref<1x16x16x128xbf16, #tpu.memory_space<vmem>>, vector<1x1x16x128xbf16>,
      %cst_49 = arith.constant dense<0.000000e+00> : vector<128xf32>
      %76 = vector.multi_reduction <add>, %70, %cst_49 [0] : vector<16x128xf32> to vector<128xf32>
      %77 = vector.shape_cast %76 : vector<128xf32> to vector<1x128xf32>
      %78 = arith.addf %arg7, %77 : vector<1x128xf32>
      %79 = arith.mulf %70, %70 : vector<16x128xf32>
      %cst_50 = arith.constant dense<0.000000e+00> : vector<128xf32>
      %80 = vector.multi_reduction <add>, %79, %cst_50 [0] : vector<16x128xf32> to vector<128xf32>
      %81 = vector.shape_cast %80 : vector<128xf32> to vector<1x128xf32>
      %82 = arith.addf %arg8, %81 : vector<1x128xf32>
      scf.yield %78, %82 : vector<1x128xf32>, vector<1x128xf32>
    }
    %c16_i32_0 = arith.constant 16 : i32
    %3 = vector.shape_cast %2#0 : vector<1x128xf32> to vector<1x128xf32>
    %4 = vector.broadcast %3 : vector<1x128xf32> to vector<8x128xf32>
    %c0 = arith.constant 0 : index
    %c0_1 = arith.constant 0 : index
    %c0_2 = arith.constant 0 : index
    %5 = vector.load %arg4[%c0, %c0_1, %c0_2] : memref<1x8x128xf32, #tpu.memory_space<vmem>>, vector<1x8x128xf32>
    %6 = vector.shape_cast %5 : vector<1x8x128xf32> to vector<8x128xf32>
    %7 = vector.shape_cast %4 : vector<8x128xf32> to vector<1x8x128xf32>
    tpu.vector_store %arg4[%c0, %c0_1, %c0_2], %7 {strides = array<i32>} : memref<1x8x128xf32, #tpu.memory_space<vmem>>, vector<1x8x128xf32>,
    %8 = vector.shape_cast %2#1 : vector<1x128xf32> to vector<1x128xf32>
    %9 = vector.broadcast %8 : vector<1x128xf32> to vector<8x128xf32>
    %c0_3 = arith.constant 0 : index
    %c0_4 = arith.constant 0 : index
    %c0_5 = arith.constant 0 : index
    %10 = vector.load %arg5[%c0_3, %c0_4, %c0_5] : memref<1x8x128xf32, #tpu.memory_space<vmem>>, vector<1x8x128xf32>
    %11 = vector.shape_cast %10 : vector<1x8x128xf32> to vector<8x128xf32>
    %12 = vector.shape_cast %9 : vector<8x128xf32> to vector<1x8x128xf32>
    tpu.vector_store %arg5[%c0_3, %c0_4, %c0_5], %12 {strides = array<i32>} : memref<1x8x128xf32, #tpu.memory_space<vmem>>, vector<1x8x128xf32>,
    return
  }
  func.func @transform_0(%arg0: i32) -> (i32, i32, i32, i32) {
    %c0_i32 = arith.constant 0 : i32
    %c0_i32_0 = arith.constant 0 : i32
    %c0_i32_1 = arith.constant 0 : i32
    %c0_i32_2 = arith.constant 0 : i32
    return %arg0, %c0_i32, %c0_i32_0, %c0_i32_1 : i32, i32, i32, i32
  }
  func.func @transform_1(%arg0: i32) -> (i32, i32, i32) {
    %c0_i32 = arith.constant 0 : i32
    %c0_i32_0 = arith.constant 0 : i32
    %c0_i32_1 = arith.constant 0 : i32
    %c0_i32_2 = arith.constant 0 : i32
    return %c0_i32, %c0_i32_0, %c0_i32_1 : i32, i32, i32
  }
  func.func @transform_2(%arg0: i32) -> (i32, i32, i32, i32) {
    %c0_i32 = arith.constant 0 : i32
    %c0_i32_0 = arith.constant 0 : i32
    %c0_i32_1 = arith.constant 0 : i32
    %c0_i32_2 = arith.constant 0 : i32
    return %arg0, %c0_i32, %c0_i32_0, %c0_i32_1 : i32, i32, i32, i32
  }
  func.func @transform_3(%arg0: i32) -> (i32, i32, i32) {
    %c0_i32 = arith.constant 0 : i32
    %c0_i32_0 = arith.constant 0 : i32
    %c0_i32_1 = arith.constant 0 : i32
    return %arg0, %c0_i32, %c0_i32_0 : i32, i32, i32
  }
  func.func @transform_4(%arg0: i32) -> (i32, i32, i32) {
    %c0_i32 = arith.constant 0 : i32
    %c0_i32_0 = arith.constant 0 : i32
    %c0_i32_1 = arith.constant 0 : i32
    return %arg0, %c0_i32, %c0_i32_0 : i32, i32, i32
  }
}

module attributes {stable_mosaic.version = 11 : i64} {
  func.func @kernel(%arg0: i32, %arg1: memref<1x34x34x8xbf16, #tpu.memory_space<vmem>>, %arg2: memref<9x8x128xbf16, #tpu.memory_space<vmem>>, %arg3: memref<1x32x32x128xf32, #tpu.memory_space<vmem>>) attributes {dimension_semantics = [#tpu.dimension_semantics<parallel>], iteration_bounds = array<i64: 2>, scalar_prefetch = 0 : i64, scratch_operands = 0 : i64, tpu.core_type = #tpu.core_type<tc>, window_params = [{transform_indices = @transform_0, window_bounds = array<i64: 1, 34, 34, 8>}, {pipeline_mode = #tpu.pipeline_mode<synchronous>, transform_indices = @transform_1, window_bounds = array<i64: 9, 8, 128>}, {transform_indices = @transform_2, window_bounds = array<i64: 1, 32, 32, 128>}]} {
    %c0_i32 = arith.constant 0 : i32
    %c32_i32 = arith.constant 32 : i32
    %0 = arith.addi %c0_i32, %c32_i32 : i32
    %c1_i32 = arith.constant 1 : i32
    scf.for %arg4 = %c0_i32 to %0 step %c1_i32  : i32 {
      %cst = arith.constant 0.000000e+00 : f32
      %1 = vector.broadcast %cst : f32 to vector<32x128xf32>
      %c0_i32_1 = arith.constant 0 : i32
      %2 = arith.addi %arg4, %c0_i32_1 : i32
      %c0 = arith.constant 0 : index
      %3 = arith.index_cast %2 : i32 to index
      %c0_2 = arith.constant 0 : index
      %c0_3 = arith.constant 0 : index
      %4 = vector.load %arg1[%c0, %3, %c0_2, %c0_3] : memref<1x34x34x8xbf16, #tpu.memory_space<vmem>>, vector<1x1x34x8xbf16>
      %5 = vector.shape_cast %4 : vector<1x1x34x8xbf16> to vector<34x8xbf16>
      %6 = vector.extract_strided_slice %5 {offsets = [0, 0], sizes = [32, 8], strides = [1, 1]} : vector<34x8xbf16> to vector<32x8xbf16>
      %c0_4 = arith.constant 0 : index
      %c0_5 = arith.constant 0 : index
      %c0_6 = arith.constant 0 : index
      %7 = vector.load %arg2[%c0_4, %c0_5, %c0_6] : memref<9x8x128xbf16, #tpu.memory_space<vmem>>, vector<1x8x128xbf16>
      %8 = vector.shape_cast %7 : vector<1x8x128xbf16> to vector<8x128xbf16>
      %cst_7 = arith.constant dense<0.000000e+00> : vector<32x128xf32>
      %9 = tpu.matmul %6, %8, %cst_7 {dimension_numbers = #tpu.dot_dimension_numbers<[1], [0], [0], [1], [0, 0, 1, 1], [], []>} : vector<32x8xbf16>, vector<8x128xbf16>, vector<32x128xf32> -> vector<32x128xf32>
      %10 = arith.addf %1, %9 : vector<32x128xf32>
      %11 = vector.extract_strided_slice %5 {offsets = [1, 0], sizes = [32, 8], strides = [1, 1]} : vector<34x8xbf16> to vector<32x8xbf16>
      %c1 = arith.constant 1 : index
      %c0_8 = arith.constant 0 : index
      %c0_9 = arith.constant 0 : index
      %12 = vector.load %arg2[%c1, %c0_8, %c0_9] : memref<9x8x128xbf16, #tpu.memory_space<vmem>>, vector<1x8x128xbf16>
      %13 = vector.shape_cast %12 : vector<1x8x128xbf16> to vector<8x128xbf16>
      %cst_10 = arith.constant dense<0.000000e+00> : vector<32x128xf32>
      %14 = tpu.matmul %11, %13, %cst_10 {dimension_numbers = #tpu.dot_dimension_numbers<[1], [0], [0], [1], [0, 0, 1, 1], [], []>} : vector<32x8xbf16>, vector<8x128xbf16>, vector<32x128xf32> -> vector<32x128xf32>
      %15 = arith.addf %10, %14 : vector<32x128xf32>
      %16 = vector.extract_strided_slice %5 {offsets = [2, 0], sizes = [32, 8], strides = [1, 1]} : vector<34x8xbf16> to vector<32x8xbf16>
      %c2 = arith.constant 2 : index
      %c0_11 = arith.constant 0 : index
      %c0_12 = arith.constant 0 : index
      %17 = vector.load %arg2[%c2, %c0_11, %c0_12] : memref<9x8x128xbf16, #tpu.memory_space<vmem>>, vector<1x8x128xbf16>
      %18 = vector.shape_cast %17 : vector<1x8x128xbf16> to vector<8x128xbf16>
      %cst_13 = arith.constant dense<0.000000e+00> : vector<32x128xf32>
      %19 = tpu.matmul %16, %18, %cst_13 {dimension_numbers = #tpu.dot_dimension_numbers<[1], [0], [0], [1], [0, 0, 1, 1], [], []>} : vector<32x8xbf16>, vector<8x128xbf16>, vector<32x128xf32> -> vector<32x128xf32>
      %20 = arith.addf %15, %19 : vector<32x128xf32>
      %c1_i32_14 = arith.constant 1 : i32
      %21 = arith.addi %arg4, %c1_i32_14 : i32
      %c0_15 = arith.constant 0 : index
      %22 = arith.index_cast %21 : i32 to index
      %c0_16 = arith.constant 0 : index
      %c0_17 = arith.constant 0 : index
      %23 = vector.load %arg1[%c0_15, %22, %c0_16, %c0_17] : memref<1x34x34x8xbf16, #tpu.memory_space<vmem>>, vector<1x1x34x8xbf16>
      %24 = vector.shape_cast %23 : vector<1x1x34x8xbf16> to vector<34x8xbf16>
      %25 = vector.extract_strided_slice %24 {offsets = [0, 0], sizes = [32, 8], strides = [1, 1]} : vector<34x8xbf16> to vector<32x8xbf16>
      %c3 = arith.constant 3 : index
      %c0_18 = arith.constant 0 : index
      %c0_19 = arith.constant 0 : index
      %26 = vector.load %arg2[%c3, %c0_18, %c0_19] : memref<9x8x128xbf16, #tpu.memory_space<vmem>>, vector<1x8x128xbf16>
      %27 = vector.shape_cast %26 : vector<1x8x128xbf16> to vector<8x128xbf16>
      %cst_20 = arith.constant dense<0.000000e+00> : vector<32x128xf32>
      %28 = tpu.matmul %25, %27, %cst_20 {dimension_numbers = #tpu.dot_dimension_numbers<[1], [0], [0], [1], [0, 0, 1, 1], [], []>} : vector<32x8xbf16>, vector<8x128xbf16>, vector<32x128xf32> -> vector<32x128xf32>
      %29 = arith.addf %20, %28 : vector<32x128xf32>
      %30 = vector.extract_strided_slice %24 {offsets = [1, 0], sizes = [32, 8], strides = [1, 1]} : vector<34x8xbf16> to vector<32x8xbf16>
      %c4 = arith.constant 4 : index
      %c0_21 = arith.constant 0 : index
      %c0_22 = arith.constant 0 : index
      %31 = vector.load %arg2[%c4, %c0_21, %c0_22] : memref<9x8x128xbf16, #tpu.memory_space<vmem>>, vector<1x8x128xbf16>
      %32 = vector.shape_cast %31 : vector<1x8x128xbf16> to vector<8x128xbf16>
      %cst_23 = arith.constant dense<0.000000e+00> : vector<32x128xf32>
      %33 = tpu.matmul %30, %32, %cst_23 {dimension_numbers = #tpu.dot_dimension_numbers<[1], [0], [0], [1], [0, 0, 1, 1], [], []>} : vector<32x8xbf16>, vector<8x128xbf16>, vector<32x128xf32> -> vector<32x128xf32>
      %34 = arith.addf %29, %33 : vector<32x128xf32>
      %35 = vector.extract_strided_slice %24 {offsets = [2, 0], sizes = [32, 8], strides = [1, 1]} : vector<34x8xbf16> to vector<32x8xbf16>
      %c5 = arith.constant 5 : index
      %c0_24 = arith.constant 0 : index
      %c0_25 = arith.constant 0 : index
      %36 = vector.load %arg2[%c5, %c0_24, %c0_25] : memref<9x8x128xbf16, #tpu.memory_space<vmem>>, vector<1x8x128xbf16>
      %37 = vector.shape_cast %36 : vector<1x8x128xbf16> to vector<8x128xbf16>
      %cst_26 = arith.constant dense<0.000000e+00> : vector<32x128xf32>
      %38 = tpu.matmul %35, %37, %cst_26 {dimension_numbers = #tpu.dot_dimension_numbers<[1], [0], [0], [1], [0, 0, 1, 1], [], []>} : vector<32x8xbf16>, vector<8x128xbf16>, vector<32x128xf32> -> vector<32x128xf32>
      %39 = arith.addf %34, %38 : vector<32x128xf32>
      %c2_i32 = arith.constant 2 : i32
      %40 = arith.addi %arg4, %c2_i32 : i32
      %c0_27 = arith.constant 0 : index
      %41 = arith.index_cast %40 : i32 to index
      %c0_28 = arith.constant 0 : index
      %c0_29 = arith.constant 0 : index
      %42 = vector.load %arg1[%c0_27, %41, %c0_28, %c0_29] : memref<1x34x34x8xbf16, #tpu.memory_space<vmem>>, vector<1x1x34x8xbf16>
      %43 = vector.shape_cast %42 : vector<1x1x34x8xbf16> to vector<34x8xbf16>
      %44 = vector.extract_strided_slice %43 {offsets = [0, 0], sizes = [32, 8], strides = [1, 1]} : vector<34x8xbf16> to vector<32x8xbf16>
      %c6 = arith.constant 6 : index
      %c0_30 = arith.constant 0 : index
      %c0_31 = arith.constant 0 : index
      %45 = vector.load %arg2[%c6, %c0_30, %c0_31] : memref<9x8x128xbf16, #tpu.memory_space<vmem>>, vector<1x8x128xbf16>
      %46 = vector.shape_cast %45 : vector<1x8x128xbf16> to vector<8x128xbf16>
      %cst_32 = arith.constant dense<0.000000e+00> : vector<32x128xf32>
      %47 = tpu.matmul %44, %46, %cst_32 {dimension_numbers = #tpu.dot_dimension_numbers<[1], [0], [0], [1], [0, 0, 1, 1], [], []>} : vector<32x8xbf16>, vector<8x128xbf16>, vector<32x128xf32> -> vector<32x128xf32>
      %48 = arith.addf %39, %47 : vector<32x128xf32>
      %49 = vector.extract_strided_slice %43 {offsets = [1, 0], sizes = [32, 8], strides = [1, 1]} : vector<34x8xbf16> to vector<32x8xbf16>
      %c7 = arith.constant 7 : index
      %c0_33 = arith.constant 0 : index
      %c0_34 = arith.constant 0 : index
      %50 = vector.load %arg2[%c7, %c0_33, %c0_34] : memref<9x8x128xbf16, #tpu.memory_space<vmem>>, vector<1x8x128xbf16>
      %51 = vector.shape_cast %50 : vector<1x8x128xbf16> to vector<8x128xbf16>
      %cst_35 = arith.constant dense<0.000000e+00> : vector<32x128xf32>
      %52 = tpu.matmul %49, %51, %cst_35 {dimension_numbers = #tpu.dot_dimension_numbers<[1], [0], [0], [1], [0, 0, 1, 1], [], []>} : vector<32x8xbf16>, vector<8x128xbf16>, vector<32x128xf32> -> vector<32x128xf32>
      %53 = arith.addf %48, %52 : vector<32x128xf32>
      %54 = vector.extract_strided_slice %43 {offsets = [2, 0], sizes = [32, 8], strides = [1, 1]} : vector<34x8xbf16> to vector<32x8xbf16>
      %c8 = arith.constant 8 : index
      %c0_36 = arith.constant 0 : index
      %c0_37 = arith.constant 0 : index
      %55 = vector.load %arg2[%c8, %c0_36, %c0_37] : memref<9x8x128xbf16, #tpu.memory_space<vmem>>, vector<1x8x128xbf16>
      %56 = vector.shape_cast %55 : vector<1x8x128xbf16> to vector<8x128xbf16>
      %cst_38 = arith.constant dense<0.000000e+00> : vector<32x128xf32>
      %57 = tpu.matmul %54, %56, %cst_38 {dimension_numbers = #tpu.dot_dimension_numbers<[1], [0], [0], [1], [0, 0, 1, 1], [], []>} : vector<32x8xbf16>, vector<8x128xbf16>, vector<32x128xf32> -> vector<32x128xf32>
      %58 = arith.addf %53, %57 : vector<32x128xf32>
      %59 = math.tanh %58 : vector<32x128xf32>
      %c0_39 = arith.constant 0 : index
      %60 = arith.index_cast %arg4 : i32 to index
      %c0_40 = arith.constant 0 : index
      %c0_41 = arith.constant 0 : index
      %61 = vector.load %arg3[%c0_39, %60, %c0_40, %c0_41] : memref<1x32x32x128xf32, #tpu.memory_space<vmem>>, vector<1x1x32x128xf32>
      %62 = vector.shape_cast %61 : vector<1x1x32x128xf32> to vector<32x128xf32>
      %63 = vector.shape_cast %59 : vector<32x128xf32> to vector<1x1x32x128xf32>
      tpu.vector_store %arg3[%c0_39, %60, %c0_40, %c0_41], %63 {strides = array<i32>} : memref<1x32x32x128xf32, #tpu.memory_space<vmem>>, vector<1x1x32x128xf32>,
    }
    %c32_i32_0 = arith.constant 32 : i32
    return
  }
  func.func @transform_0(%arg0: i32) -> (i32, i32, i32, i32) {
    %c0_i32 = arith.constant 0 : i32
    %c0_i32_0 = arith.constant 0 : i32
    %c0_i32_1 = arith.constant 0 : i32
    %c0_i32_2 = arith.constant 0 : i32
    return %arg0, %c0_i32, %c0_i32_0, %c0_i32_1 : i32, i32, i32, i32
  }
  func.func @transform_1(%arg0: i32) -> (i32, i32, i32) {
    %c0_i32 = arith.constant 0 : i32
    %c0_i32_0 = arith.constant 0 : i32
    %c0_i32_1 = arith.constant 0 : i32
    %c0_i32_2 = arith.constant 0 : i32
    return %c0_i32, %c0_i32_0, %c0_i32_1 : i32, i32, i32
  }
  func.func @transform_2(%arg0: i32) -> (i32, i32, i32, i32) {
    %c0_i32 = arith.constant 0 : i32
    %c0_i32_0 = arith.constant 0 : i32
    %c0_i32_1 = arith.constant 0 : i32
    %c0_i32_2 = arith.constant 0 : i32
    return %arg0, %c0_i32, %c0_i32_0, %c0_i32_1 : i32, i32, i32, i32
  }
}

</mosaic_0001>

<llo_original>
// kernel: squeeze.9
$region0: #{squeeze.9}
  %s0 = inlined_call_operand.vmem [shape: f32[1024], index: 0, kind: input, shape index: {}]
  %s1 = inlined_call_operand.vmem [shape: f32[16,64], index: 1, kind: output, shape index: {}]
  %v2 = vld [vmem:[%s0] sm:$0xff]
  %vm3 = vcmask 523264
  %4 = vst.msk [vmem:[%s1] ss:$2 sm:$0xff] %vm3, %v2
  %v5 = vld [vmem:[%s0] sm:$0xff]
  %6 = vrot.lane.b32.xlu0 %v5, 64
  %v7 = vpop.permute.xlu0 %6
  %vm8 = vcmask 523264
  %s9 = scalar_lea.vmem %s1, 1
  %10 = vst.msk [vmem:[%s9] ss:$2 sm:$0xff] %vm8, %v7

// kernel: _lambda_.5
$region0: #{_lambda_.5}
  #allocation0 [shape = 'u32[]', space=smem, size = 0x4, offset = 0x4, fixed_abs, tag = 'smem constant byte address 0x4 - core index']
  #allocation1 [shape = 'u32[144,128]{1,0:T(1,128)}', space=vmem, size = 0x12000, scoped, tag = 'internal scratch']
  %s0 = inlined_call_operand.vmem [shape: bf16[2,16], index: 0, kind: input, shape index: {}]
  %s1 = inlined_call_operand.hbm [shape: bf16[16,1024], index: 1, kind: input, shape index: {}]
  %s2 = inlined_call_operand.vmem [shape: bf16[2,1024], index: 2, kind: output, shape index: {0}]
  %s3 = inlined_call_operand.vmem [shape: f32[8,1024], index: 3, kind: output, shape index: {1}]
  %s4 = inlined_call_operand.vmem [shape: f32[8,1024], index: 4, kind: output, shape index: {2}]
  %5 = xla_tuple %s2, %s3, %s4
  %s6 = sld [smem:[#allocation0]]
  $region38: #{_lambda_.5} parent=0
    _
  %s8 = ssub.s32 1, %s6
  %s9 = scalar_select 0, %s8, %s6
  $region1: #{_lambda_.5} parent=0
    #allocation2 [shape = 'u8[32768]{0}', space=vmem, size = 0x8000, scoped, tag = 'input window, operand 1, single buffered']
    #allocation3 [shape = 's32[1]{0}', space=sflag, size = 0x4, scoped, tag = 'scoped memory for _lambda_.5']
    %10 = vsyncpa [#allocation3], 0
    // Predicated region
    $region2: #{_lambda_.5} parent=1 // pred_check
      _
    $region3: #{_lambda_.5} parent=1 // pred_check_branch
      %12 = sbr.rel (0) target = $region5
    $region4: #{_lambda_.5} parent=1 // pred_region
      _
    $region5: #{_lambda_.5} parent=1 // pred_fallthru
      _
    // Predicated region
    $region6: #{_lambda_.5} parent=1 // pred_check
      _
    $region7: #{_lambda_.5} parent=1 // pred_check_branch
      %14 = sbr.rel (0) target = $region9
    $region8: #{_lambda_.5} parent=1 // pred_region
      %s16 = ssub.s32 1024, 1024
      %17 = vsyncadd [#allocation3], %s16
      %s18 = sshll.u32 [#allocation2], 4
      %s19 = int_to_ptr.vmem [resolvable:$true] %s18
      %24 = dma.hbm_to_vmem [thread:$0]  %s1, 1024, %s19, [#allocation3], 512, 512, 32
    $region9: #{_lambda_.5} parent=1 // pred_fallthru
      _
    // Predicated region
    $region10: #{_lambda_.5} parent=1 // pred_check
      _
    $region11: #{_lambda_.5} parent=1 // pred_check_branch
      %26 = sbr.rel (0) target = $region13
    $region12: #{_lambda_.5} parent=1 // pred_region
      %27 = dma.done [#allocation3], 1024
    $region13: #{_lambda_.5} parent=1 // pred_fallthru
      _
    %v29 = vld [vmem:[%s0] sm:$0x1]
    %v30 = vld [vmem:[#allocation2] sm:$0xff]
    %v31 = vld [vmem:[#allocation2 + $0x8] sm:$0xff]
    %v32 = vld [vmem:[#allocation2 + $0x10] sm:$0xff]
    %v33 = vld [vmem:[#allocation2 + $0x18] sm:$0xff]
    %v34 = vld [vmem:[#allocation2 + $0x20] sm:$0xff]
    %v35 = vld [vmem:[#allocation2 + $0x28] sm:$0xff]
    %v36 = vld [vmem:[#allocation2 + $0x30] sm:$0xff]
    %v37 = vld [vmem:[#allocation2 + $0x38] sm:$0xff]
    %v46 = vunpack.c.l.b16 %v30
    %v47 = vunpack.c.h.b16 %v30
    %v48 = vunpack.c.l.b16 %v31
    %v49 = vunpack.c.h.b16 %v31
    %v50 = vunpack.c.l.b16 %v32
    %v51 = vunpack.c.h.b16 %v32
    %v52 = vunpack.c.l.b16 %v33
    %v53 = vunpack.c.h.b16 %v33
    %v54 = vunpack.c.l.b16 %v34
    %v55 = vunpack.c.h.b16 %v34
    %v56 = vunpack.c.l.b16 %v35
    %v57 = vunpack.c.h.b16 %v35
    %v58 = vunpack.c.l.b16 %v36
    %v59 = vunpack.c.h.b16 %v36
    %v60 = vunpack.c.l.b16 %v37
    %v61 = vunpack.c.h.b16 %v37
    %v62 = vpack.c.b16 %v54, %v46
    %v63 = vpack.c.b16 %v55, %v47
    %v64 = vpack.c.b16 %v56, %v48
    %v65 = vpack.c.b16 %v57, %v49
    %v66 = vpack.c.b16 %v58, %v50
    %v67 = vpack.c.b16 %v59, %v51
    %v68 = vpack.c.b16 %v60, %v52
    %v69 = vpack.c.b16 %v61, %v53
    %vm78 = vcmask 130048
    %v80 = vsel %vm78, %v29, 0
    %82 = vmatprep.subr.bf16.mxu0 0
    %83 = vmatpush1.bf16.msra.mxu0 0
    %84 = vmatprep.subr.bf16.mxu0 0
    %85 = vmatpush1.bf16.msra.mxu0 0
    %86 = vmatprep.subr.bf16.mxu0 0
    %87 = vmatpush1.bf16.msra.mxu0 0
    %88 = vmatprep.subr.bf16.mxu0 0
    %89 = vmatpush1.bf16.msra.mxu0 0
    %90 = vmatprep.subr.bf16.mxu0 0
    %91 = vmatpush1.bf16.msra.mxu0 0
    %92 = vmatprep.subr.bf16.mxu0 0
    %93 = vmatpush1.bf16.msra.mxu0 0
    %94 = vmatprep.subr.bf16.mxu0 0
    %95 = vmatpush1.bf16.msra.mxu0 0
    %96 = vmatprep.subr.bf16.mxu0 %v63
    %97 = vmatpush1.bf16.msra.mxu0 %v62
    %98 = vmatprep.subr.bf16.mxu0 0
    %99 = vmatpush2.bf16.msra.mxu0 0
    %100 = vmatprep.subr.bf16.mxu0 0
    %101 = vmatpush2.bf16.msra.mxu0 0
    %102 = vmatprep.subr.bf16.mxu0 0
    %103 = vmatpush2.bf16.msra.mxu0 0
    %104 = vmatprep.subr.bf16.mxu0 0
    %105 = vmatpush2.bf16.msra.mxu0 0
    %106 = vmatprep.subr.bf16.mxu0 0
    %107 = vmatpush2.bf16.msra.mxu0 0
    %108 = vmatprep.subr.bf16.mxu0 0
    %109 = vmatpush2.bf16.msra.mxu0 0
    %110 = vmatprep.subr.bf16.mxu0 0
    %111 = vmatpush2.bf16.msra.mxu0 0
    %112 = vmatprep.subr.bf16.mxu0 0
    %113 = vmatpush2.bf16.msra.mxu0 0
    %114 = vmatprep.mubr.bf16.mxu0 0
    %115 = vmatmul.mubr.bf16.gmra.mxu0 %v80
    %v116 = vpop.f32.mrf.mxu0
    %v117 = vadd.f32 0.0, %v116
    %v118 = vpop.f32.mrf.mxu0
    %v119 = vadd.f32 0.0, %v118
    %v120 = vpop.f32.mrf.mxu0
    %v121 = vpop.f32.mrf.mxu0
    %122 = vdwg.mxu0
    %123 = vmatprep.subr.bf16.mxu0 0
    %124 = vmatpush1.bf16.msra.mxu0 0
    %125 = vmatprep.subr.bf16.mxu0 0
    %126 = vmatpush1.bf16.msra.mxu0 0
    %127 = vmatprep.subr.bf16.mxu0 0
    %128 = vmatpush1.bf16.msra.mxu0 0
    %129 = vmatprep.subr.bf16.mxu0 0
    %130 = vmatpush1.bf16.msra.mxu0 0
    %131 = vmatprep.subr.bf16.mxu0 0
    %132 = vmatpush1.bf16.msra.mxu0 0
    %133 = vmatprep.subr.bf16.mxu0 0
    %134 = vmatpush1.bf16.msra.mxu0 0
    %135 = vmatprep.subr.bf16.mxu0 0
    %136 = vmatpush1.bf16.msra.mxu0 0
    %137 = vmatprep.subr.bf16.mxu0 %v65
    %138 = vmatpush1.bf16.msra.mxu0 %v64
    %139 = vmatprep.subr.bf16.mxu0 0
    %140 = vmatpush2.bf16.msra.mxu0 0
    %141 = vmatprep.subr.bf16.mxu0 0
    %142 = vmatpush2.bf16.msra.mxu0 0
    %143 = vmatprep.subr.bf16.mxu0 0
    %144 = vmatpush2.bf16.msra.mxu0 0
    %145 = vmatprep.subr.bf16.mxu0 0
    %146 = vmatpush2.bf16.msra.mxu0 0
    %147 = vmatprep.subr.bf16.mxu0 0
    %148 = vmatpush2.bf16.msra.mxu0 0
    %149 = vmatprep.subr.bf16.mxu0 0
    %150 = vmatpush2.bf16.msra.mxu0 0
    %151 = vmatprep.subr.bf16.mxu0 0
    %152 = vmatpush2.bf16.msra.mxu0 0
    %153 = vmatprep.subr.bf16.mxu0 0
    %154 = vmatpush2.bf16.msra.mxu0 0
    %155 = vmatprep.mubr.bf16.mxu0 0
    %156 = vmatmul.mubr.bf16.gmra.mxu0 %v80
    %v157 = vpop.f32.mrf.mxu0
    %v158 = vadd.f32 0.0, %v157
    %v159 = vpop.f32.mrf.mxu0
    %v160 = vadd.f32 0.0, %v159
    %v161 = vpop.f32.mrf.mxu0
    %v162 = vpop.f32.mrf.mxu0
    %163 = vdwg.mxu0
    %164 = vmatprep.subr.bf16.mxu0 0
    %165 = vmatpush1.bf16.msra.mxu0 0
    %166 = vmatprep.subr.bf16.mxu0 0
    %167 = vmatpush1.bf16.msra.mxu0 0
    %168 = vmatprep.subr.bf16.mxu0 0
    %169 = vmatpush1.bf16.msra.mxu0 0
    %170 = vmatprep.subr.bf16.mxu0 0
    %171 = vmatpush1.bf16.msra.mxu0 0
    %172 = vmatprep.subr.bf16.mxu0 0
    %173 = vmatpush1.bf16.msra.mxu0 0
    %174 = vmatprep.subr.bf16.mxu0 0
    %175 = vmatpush1.bf16.msra.mxu0 0
    %176 = vmatprep.subr.bf16.mxu0 0
    %177 = vmatpush1.bf16.msra.mxu0 0
    %178 = vmatprep.subr.bf16.mxu0 %v67
    %179 = vmatpush1.bf16.msra.mxu0 %v66
    %180 = vmatprep.subr.bf16.mxu0 0
    %181 = vmatpush2.bf16.msra.mxu0 0
    %182 = vmatprep.subr.bf16.mxu0 0
    %183 = vmatpush2.bf16.msra.mxu0 0
    %184 = vmatprep.subr.bf16.mxu0 0
    %185 = vmatpush2.bf16.msra.mxu0 0
    %186 = vmatprep.subr.bf16.mxu0 0
    %187 = vmatpush2.bf16.msra.mxu0 0
    %188 = vmatprep.subr.bf16.mxu0 0
    %189 = vmatpush2.bf16.msra.mxu0 0
    %190 = vmatprep.subr.bf16.mxu0 0
    %191 = vmatpush2.bf16.msra.mxu0 0
    %192 = vmatprep.subr.bf16.mxu0 0
    %193 = vmatpush2.bf16.msra.mxu0 0
    %194 = vmatprep.subr.bf16.mxu0 0
    %195 = vmatpush2.bf16.msra.mxu0 0
    %196 = vmatprep.mubr.bf16.mxu0 0
    %197 = vmatmul.mubr.bf16.gmra.mxu0 %v80
    %v198 = vpop.f32.mrf.mxu0
    %v199 = vadd.f32 0.0, %v198
    %v200 = vpop.f32.mrf.mxu0
    %v201 = vadd.f32 0.0, %v200
    %v202 = vpop.f32.mrf.mxu0
    %v203 = vpop.f32.mrf.mxu0
    %204 = vdwg.mxu0
    %205 = vmatprep.subr.bf16.mxu0 0
    %206 = vmatpush1.bf16.msra.mxu0 0
    %207 = vmatprep.subr.bf16.mxu0 0
    %208 = vmatpush1.bf16.msra.mxu0 0
    %209 = vmatprep.subr.bf16.mxu0 0
    %210 = vmatpush1.bf16.msra.mxu0 0
    %211 = vmatprep.subr.bf16.mxu0 0
    %212 = vmatpush1.bf16.msra.mxu0 0
    %213 = vmatprep.subr.bf16.mxu0 0
    %214 = vmatpush1.bf16.msra.mxu0 0
    %215 = vmatprep.subr.bf16.mxu0 0
    %216 = vmatpush1.bf16.msra.mxu0 0
    %217 = vmatprep.subr.bf16.mxu0 0
    %218 = vmatpush1.bf16.msra.mxu0 0
    %219 = vmatprep.subr.bf16.mxu0 %v69
    %220 = vmatpush1.bf16.msra.mxu0 %v68
    %221 = vmatprep.subr.bf16.mxu0 0
    %222 = vmatpush2.bf16.msra.mxu0 0
    %223 = vmatprep.subr.bf16.mxu0 0
    %224 = vmatpush2.bf16.msra.mxu0 0
    %225 = vmatprep.subr.bf16.mxu0 0
    %226 = vmatpush2.bf16.msra.mxu0 0
    %227 = vmatprep.subr.bf16.mxu0 0
    %228 = vmatpush2.bf16.msra.mxu0 0
    %229 = vmatprep.subr.bf16.mxu0 0
    %230 = vmatpush2.bf16.msra.mxu0 0
    %231 = vmatprep.subr.bf16.mxu0 0
    %232 = vmatpush2.bf16.msra.mxu0 0
    %233 = vmatprep.subr.bf16.mxu0 0
    %234 = vmatpush2.bf16.msra.mxu0 0
    %235 = vmatprep.subr.bf16.mxu0 0
    %236 = vmatpush2.bf16.msra.mxu0 0
    %237 = vmatprep.mubr.bf16.mxu0 0
    %238 = vmatmul.mubr.bf16.gmra.mxu0 %v80
    %v239 = vpop.f32.mrf.mxu0
    %v240 = vadd.f32 0.0, %v239
    %v241 = vpop.f32.mrf.mxu0
    %v242 = vadd.f32 0.0, %v241
    %v243 = vpop.f32.mrf.mxu0
    %v244 = vpop.f32.mrf.mxu0
    %245 = vdwg.mxu0
    %v246 = vpack.c.bf16 %v117, %v117
    %v247 = vpack.c.bf16 %v119, %v119
    %v248 = vpack.c.bf16 %v158, %v158
    %v249 = vpack.c.bf16 %v160, %v160
    %v250 = vpack.c.bf16 %v199, %v199
    %v251 = vpack.c.bf16 %v201, %v201
    %v252 = vpack.c.bf16 %v240, %v240
    %v253 = vpack.c.bf16 %v242, %v242
    %v262 = vcombine.low %v246, %v247
    %v263 = vcombine.low %v248, %v249
    %v264 = vcombine.low %v250, %v251
    %v265 = vcombine.low %v252, %v253
    %v267 = vunpack.c.l.s4 1966171168
    %v268 = vunpack.c.0.s8 %v267
    %v269 = vlaneseq
    %v270 = vshrl.u32 %v269, 7
    %v271 = vsub.s32 %v268, %v270
    %v272 = vrot.slane %v262, %v271
    %v274 = vunpack.c.l.s4 1966171168
    %v275 = vunpack.c.0.s8 %v274
    %v276 = vlaneseq
    %v277 = vshrl.u32 %v276, 7
    %v278 = vsub.s32 %v275, %v277
    %v279 = vrot.slane %v263, %v278
    %v281 = vunpack.c.l.s4 1966171168
    %v282 = vunpack.c.0.s8 %v281
    %v283 = vlaneseq
    %v284 = vshrl.u32 %v283, 7
    %v285 = vsub.s32 %v282, %v284
    %v286 = vrot.slane %v264, %v285
    %v288 = vunpack.c.l.s4 1966171168
    %v289 = vunpack.c.0.s8 %v288
    %v290 = vlaneseq
    %v291 = vshrl.u32 %v290, 7
    %v292 = vsub.s32 %v289, %v291
    %v293 = vrot.slane %v265, %v292
    %v294 = vcombine.low %v272, %v279
    %v295 = vcombine.low %v286, %v293
    %v297 = vunpack.c.l.s4 1966171168
    %v298 = vunpack.c.0.s8 %v297
    %v299 = vlaneseq
    %v300 = vshrl.u32 %v299, 7
    %v301 = vsub.s32 %v298, %v300
    %v302 = vrot.slane %v294, %v301
    %v304 = vunpack.c.l.s4 1966171168
    %v305 = vunpack.c.0.s8 %v304
    %v306 = vlaneseq
    %v307 = vshrl.u32 %v306, 7
    %v308 = vsub.s32 %v305, %v307
    %v309 = vrot.slane %v295, %v308
    %v310 = vcombine.low %v302, %v309
    %312 = vst [vmem:[%s2] sm:$0xff] %v310
    %vm313 = vcmask 1041408
    %v314 = vsel %vm313, %v117, 0.0
    %v315 = vrot.slane %v314, 4
    %v316 = vadd.f32 %v314, %v315
    %v317 = vrot.slane %v316, 2
    %v318 = vadd.f32 %v316, %v317
    %v319 = vrot.slane %v318, 1
    %v320 = vadd.f32 %v318, %v319
    %v321 = vsel %vm313, %v119, 0.0
    %v322 = vrot.slane %v321, 4
    %v323 = vadd.f32 %v321, %v322
    %v324 = vrot.slane %v323, 2
    %v325 = vadd.f32 %v323, %v324
    %v326 = vrot.slane %v325, 1
    %v327 = vadd.f32 %v325, %v326
    %v328 = vsel %vm313, %v158, 0.0
    %v329 = vrot.slane %v328, 4
    %v330 = vadd.f32 %v328, %v329
    %v331 = vrot.slane %v330, 2
    %v332 = vadd.f32 %v330, %v331
    %v333 = vrot.slane %v332, 1
    %v334 = vadd.f32 %v332, %v333
    %v335 = vsel %vm313, %v160, 0.0
    %v336 = vrot.slane %v335, 4
    %v337 = vadd.f32 %v335, %v336
    %v338 = vrot.slane %v337, 2
    %v339 = vadd.f32 %v337, %v338
    %v340 = vrot.slane %v339, 1
    %v341 = vadd.f32 %v339, %v340
    %v342 = vsel %vm313, %v199, 0.0
    %v343 = vrot.slane %v342, 4
    %v344 = vadd.f32 %v342, %v343
    %v345 = vrot.slane %v344, 2
    %v346 = vadd.f32 %v344, %v345
    %v347 = vrot.slane %v346, 1
    %v348 = vadd.f32 %v346, %v347
    %v349 = vsel %vm313, %v201, 0.0
    %v350 = vrot.slane %v349, 4
    %v351 = vadd.f32 %v349, %v350
    %v352 = vrot.slane %v351, 2
    %v353 = vadd.f32 %v351, %v352
    %v354 = vrot.slane %v353, 1
    %v355 = vadd.f32 %v353, %v354
    %v356 = vsel %vm313, %v240, 0.0
    %v357 = vrot.slane %v356, 4
    %v358 = vadd.f32 %v356, %v357
    %v359 = vrot.slane %v358, 2
    %v360 = vadd.f32 %v358, %v359
    %v361 = vrot.slane %v360, 1
    %v362 = vadd.f32 %v360, %v361
    %v363 = vsel %vm313, %v242, 0.0
    %v364 = vrot.slane %v363, 4
    %v365 = vadd.f32 %v363, %v364
    %v366 = vrot.slane %v365, 2
    %v367 = vadd.f32 %v365, %v366
    %v368 = vrot.slane %v367, 1
    %v369 = vadd.f32 %v367, %v368
    %370 = vst [vmem:[%s3] sm:$0xff] %v320
    %371 = vst [vmem:[%s3 + $0x8] sm:$0xff] %v327
    %372 = vst [vmem:[%s3 + $0x10] sm:$0xff] %v334
    %373 = vst [vmem:[%s3 + $0x18] sm:$0xff] %v341
    %374 = vst [vmem:[%s3 + $0x20] sm:$0xff] %v348
    %375 = vst [vmem:[%s3 + $0x28] sm:$0xff] %v355
    %376 = vst [vmem:[%s3 + $0x30] sm:$0xff] %v362
    %377 = vst [vmem:[%s3 + $0x38] sm:$0xff] %v369
    %v378 = vmul.f32 %v117, %v117
    %v379 = vmul.f32 %v119, %v119
    %v380 = vmul.f32 %v158, %v158
    %v381 = vmul.f32 %v160, %v160
    %v382 = vmul.f32 %v199, %v199
    %v383 = vmul.f32 %v201, %v201
    %v384 = vmul.f32 %v240, %v240
    %v385 = vmul.f32 %v242, %v242
    %v386 = vsel %vm313, %v378, 0.0
    %v387 = vrot.slane %v386, 4
    %v388 = vadd.f32 %v386, %v387
    %v389 = vrot.slane %v388, 2
    %v390 = vadd.f32 %v388, %v389
    %v391 = vrot.slane %v390, 1
    %v392 = vadd.f32 %v390, %v391
    %v393 = vsel %vm313, %v379, 0.0
    %v394 = vrot.slane %v393, 4
    %v395 = vadd.f32 %v393, %v394
    %v396 = vrot.slane %v395, 2
    %v397 = vadd.f32 %v395, %v396
    %v398 = vrot.slane %v397, 1
    %v399 = vadd.f32 %v397, %v398
    %v400 = vsel %vm313, %v380, 0.0
    %v401 = vrot.slane %v400, 4
    %v402 = vadd.f32 %v400, %v401
    %v403 = vrot.slane %v402, 2
    %v404 = vadd.f32 %v402, %v403
    %v405 = vrot.slane %v404, 1
    %v406 = vadd.f32 %v404, %v405
    %v407 = vsel %vm313, %v381, 0.0
    %v408 = vrot.slane %v407, 4
    %v409 = vadd.f32 %v407, %v408
    %v410 = vrot.slane %v409, 2
    %v411 = vadd.f32 %v409, %v410
    %v412 = vrot.slane %v411, 1
    %v413 = vadd.f32 %v411, %v412
    %v414 = vsel %vm313, %v382, 0.0
    %v415 = vrot.slane %v414, 4
    %v416 = vadd.f32 %v414, %v415
    %v417 = vrot.slane %v416, 2
    %v418 = vadd.f32 %v416, %v417
    %v419 = vrot.slane %v418, 1
    %v420 = vadd.f32 %v418, %v419
    %v421 = vsel %vm313, %v383, 0.0
    %v422 = vrot.slane %v421, 4
    %v423 = vadd.f32 %v421, %v422
    %v424 = vrot.slane %v423, 2
    %v425 = vadd.f32 %v423, %v424
    %v426 = vrot.slane %v425, 1
    %v427 = vadd.f32 %v425, %v426
    %v428 = vsel %vm313, %v384, 0.0
    %v429 = vrot.slane %v428, 4
    %v430 = vadd.f32 %v428, %v429
    %v431 = vrot.slane %v430, 2
    %v432 = vadd.f32 %v430, %v431
    %v433 = vrot.slane %v432, 1
    %v434 = vadd.f32 %v432, %v433
    %v435 = vsel %vm313, %v385, 0.0
    %v436 = vrot.slane %v435, 4
    %v437 = vadd.f32 %v435, %v436
    %v438 = vrot.slane %v437, 2
    %v439 = vadd.f32 %v437, %v438
    %v440 = vrot.slane %v439, 1
    %v441 = vadd.f32 %v439, %v440
    %442 = vst [vmem:[%s4] sm:$0xff] %v392
    %443 = vst [vmem:[%s4 + $0x8] sm:$0xff] %v399
    %444 = vst [vmem:[%s4 + $0x10] sm:$0xff] %v406
    %445 = vst [vmem:[%s4 + $0x18] sm:$0xff] %v413
    %446 = vst [vmem:[%s4 + $0x20] sm:$0xff] %v420
    %447 = vst [vmem:[%s4 + $0x28] sm:$0xff] %v427
    %448 = vst [vmem:[%s4 + $0x30] sm:$0xff] %v434
    %449 = vst [vmem:[%s4 + $0x38] sm:$0xff] %v441
    // Predicated region
    $region14: #{_lambda_.5} parent=1 // pred_check
      _
    $region15: #{_lambda_.5} parent=1 // pred_check_branch
      %451 = sbr.rel (0) target = $region17
    $region16: #{_lambda_.5} parent=1 // pred_region
      _
    $region17: #{_lambda_.5} parent=1 // pred_fallthru
      _
    // Predicated region
    $region18: #{_lambda_.5} parent=1 // pred_check
      _
    $region19: #{_lambda_.5} parent=1 // pred_check_branch
      %453 = sbr.rel (0) target = $region21
    $region20: #{_lambda_.5} parent=1 // pred_region
      _
    $region21: #{_lambda_.5} parent=1 // pred_fallthru
      _
    // Predicated region
    $region22: #{_lambda_.5} parent=1 // pred_check
      _
    $region23: #{_lambda_.5} parent=1 // pred_check_branch
      %455 = sbr.rel (0) target = $region25
    $region24: #{_lambda_.5} parent=1 // pred_region
      _
    $region25: #{_lambda_.5} parent=1 // pred_fallthru
      _
    // Predicated region
    $region26: #{_lambda_.5} parent=1 // pred_check
      _
    $region27: #{_lambda_.5} parent=1 // pred_check_branch
      %457 = sbr.rel (0) target = $region29
    $region28: #{_lambda_.5} parent=1 // pred_region
      _
    $region29: #{_lambda_.5} parent=1 // pred_fallthru
      _
    // Predicated region
    $region30: #{_lambda_.5} parent=1 // pred_check
      _
    $region31: #{_lambda_.5} parent=1 // pred_check_branch
      %459 = sbr.rel (0) target = $region33
    $region32: #{_lambda_.5} parent=1 // pred_region
      _
    $region33: #{_lambda_.5} parent=1 // pred_fallthru
      _
    // Predicated region
    $region34: #{_lambda_.5} parent=1 // pred_check
      _
    $region35: #{_lambda_.5} parent=1 // pred_check_branch
      %461 = sbr.rel (0) target = $region37
    $region36: #{_lambda_.5} parent=1 // pred_region
      _
    $region37: #{_lambda_.5} parent=1 // pred_fallthru
      _
    %462 = vsyncpa [#allocation3], 1

// kernel: _lambda_.6
$region0: #{_lambda_.6}
  #allocation0 [shape = 'u32[]', space=smem, size = 0x4, offset = 0x4, fixed_abs, tag = 'smem constant byte address 0x4 - core index']
  #allocation1 [shape = 'u32[144,128]{1,0:T(1,128)}', space=vmem, size = 0x12000, scoped, tag = 'internal scratch']
  %s0 = inlined_call_operand.vmem [shape: bf16[2,6,6,64], index: 0, kind: input, shape index: {}]
  %s1 = inlined_call_operand.hbm [shape: bf16[9,64,128], index: 1, kind: input, shape index: {}]
  %s2 = inlined_call_operand.vmem [shape: bf16[2,4,4,128], index: 2, kind: output, shape index: {0}]
  %s3 = inlined_call_operand.vmem [shape: f32[2,8,128], index: 3, kind: output, shape index: {1}]
  %s4 = inlined_call_operand.vmem [shape: f32[2,8,128], index: 4, kind: output, shape index: {2}]
  %5 = xla_tuple %s2, %s3, %s4
  %s6 = sld [smem:[#allocation0]]
  $region68: #{_lambda_.6} parent=0
    _
  %s8 = ssub.s32 1, %s6
  %s9 = scalar_select 0, %s8, %s6
  $region1: #{_lambda_.6} parent=0
    #allocation2 [shape = 'u8[147456]{0}', space=vmem, size = 0x24000, scoped, tag = 'input window, operand 1, single buffered']
    #allocation3 [shape = 's32[2]{0}', space=sflag, size = 0x8, scoped, tag = 'scoped memory for _lambda_.6']
    %10 = vsyncpa [#allocation3], 0
    loop: start=0, step=1, limit=4
    $region2: #{_lambda_.6} parent=1 // loop_pre_header
      _
    $region3: #{_lambda_.6} parent=1 // loop_header
      %s12 = sphi 0, %s16
      %p13 = scmp.ge.s32.totalorder %s12, 4
      %s22 = sphi 0, %s24
      %s25 = sphi 0, %s22
      %s26 = sphi 0, %s25
      %s42 = sphi 0, %s26
      %s46 = sphi 0, %s46
      %s48 = sphi 0, %s46
      %s49 = sphi 0, %s48
      %s63 = sphi 0, %s49
      %s69 = sphi 0, %s71
      %s72 = sphi 0, %s69
      %s73 = sphi 0, %s72
      %s89 = sphi 0, %s73
      %s95 = sphi 0, %s97
      %s98 = sphi 0, %s95
      %s99 = sphi 0, %s98
      %s115 = sphi 0, %s99
      %s121 = sphi 0, %s123
      %s124 = sphi 0, %s121
      %s125 = sphi 0, %s124
      %s141 = sphi 0, %s125
    $region4: #{_lambda_.6} parent=1 // loop_header_branch
      %15 = sbr.rel (%p13) target = $region8
    $region5: #{_lambda_.6} parent=1 // loop_body
      %s17 = ssub.s32 %s12, 1
      %s18 = ssub.s32 %s12, 2
      %s19 = sadd.s32 %s12, 1
      %s20 = ssub.s32 %s12, %s19
      %p21 = scmp.eq.s32.totalorder %s20, 0
      %s23 = sadd.s32 %s22, 1
      %s24 = scalar_select %p21, %s22, %s23
      %p27 = pneg %p21
      %p28 = scmp.eq.s32.totalorder %s12, 1
      %p29 = por %p27, %p28
      %p30 = scmp.ne.s32.totalorder %s22, %s25
      %p31 = scmp.eq.s32.totalorder %s12, 0
      %p32 = por %p30, %p31
      %p33 = scmp.ne.s32.totalorder %s22, %s25
      %p34 = scmp.eq.s32.totalorder %s17, 1
      %p35 = por %p33, %p34
      %p36 = scmp.ne.s32.totalorder %s25, %s26
      %p37 = scmp.eq.s32.totalorder %s17, 0
      %p38 = por %p36, %p37
      %p39 = scmp.ne.s32.totalorder %s25, %s26
      %p40 = scmp.eq.s32.totalorder %s18, 1
      %p41 = por %p39, %p40
      %p43 = scmp.ne.s32.totalorder %s26, %s42
      %p44 = scmp.eq.s32.totalorder %s18, 0
      %p45 = por %p43, %p44
      %s47 = sadd.s32 %s46, 1
      %p50 = scmp.eq.s32.totalorder %s12, 1
      %p51 = scmp.ne.s32.totalorder %s46, %s48
      %p52 = scmp.eq.s32.totalorder %s12, 0
      %p53 = por %p51, %p52
      %p54 = scmp.ne.s32.totalorder %s46, %s48
      %p55 = scmp.eq.s32.totalorder %s17, 1
      %p56 = por %p54, %p55
      %p57 = scmp.ne.s32.totalorder %s48, %s49
      %p58 = scmp.eq.s32.totalorder %s17, 0
      %p59 = por %p57, %p58
      %p60 = scmp.ne.s32.totalorder %s48, %s49
      %p61 = scmp.eq.s32.totalorder %s18, 1
      %p62 = por %p60, %p61
      %p64 = scmp.ne.s32.totalorder %s49, %s63
      %p65 = scmp.eq.s32.totalorder %s18, 0
      %p66 = por %p64, %p65
      %s67 = ssub.s32 %s12, %s19
      %p68 = scmp.eq.s32.totalorder %s67, 0
      %s70 = sadd.s32 %s69, 1
      %s71 = scalar_select %p68, %s69, %s70
      %p74 = pneg %p68
      %p75 = scmp.eq.s32.totalorder %s12, 1
      %p76 = por %p74, %p75
      %p77 = scmp.ne.s32.totalorder %s69, %s72
      %p78 = scmp.eq.s32.totalorder %s12, 0
      %p79 = por %p77, %p78
      %p80 = scmp.ne.s32.totalorder %s69, %s72
      %p81 = scmp.eq.s32.totalorder %s17, 1
      %p82 = por %p80, %p81
      %p83 = scmp.ne.s32.totalorder %s72, %s73
      %p84 = scmp.eq.s32.totalorder %s17, 0
      %p85 = por %p83, %p84
      %p86 = scmp.ne.s32.totalorder %s72, %s73
      %p87 = scmp.eq.s32.totalorder %s18, 1
      %p88 = por %p86, %p87
      %p90 = scmp.ne.s32.totalorder %s73, %s89
      %p91 = scmp.eq.s32.totalorder %s18, 0
      %p92 = por %p90, %p91
      %s93 = ssub.s32 %s12, %s19
      %p94 = scmp.eq.s32.totalorder %s93, 0
      %s96 = sadd.s32 %s95, 1
      %s97 = scalar_select %p94, %s95, %s96
      %p100 = pneg %p94
      %p101 = scmp.eq.s32.totalorder %s12, 1
      %p102 = por %p100, %p101
      %p103 = scmp.ne.s32.totalorder %s95, %s98
      %p104 = scmp.eq.s32.totalorder %s12, 0
      %p105 = por %p103, %p104
      %p106 = scmp.ne.s32.totalorder %s95, %s98
      %p107 = scmp.eq.s32.totalorder %s17, 1
      %p108 = por %p106, %p107
      %p109 = scmp.ne.s32.totalorder %s98, %s99
      %p110 = scmp.eq.s32.totalorder %s17, 0
      %p111 = por %p109, %p110
      %p112 = scmp.ne.s32.totalorder %s98, %s99
      %p113 = scmp.eq.s32.totalorder %s18, 1
      %p114 = por %p112, %p113
      %p116 = scmp.ne.s32.totalorder %s99, %s115
      %p117 = scmp.eq.s32.totalorder %s18, 0
      %p118 = por %p116, %p117
      %s119 = ssub.s32 %s12, %s19
      %p120 = scmp.eq.s32.totalorder %s119, 0
      %s122 = sadd.s32 %s121, 1
      %s123 = scalar_select %p120, %s121, %s122
      %p126 = pneg %p120
      %p127 = scmp.eq.s32.totalorder %s12, 1
      %p128 = por %p126, %p127
      %p129 = scmp.ne.s32.totalorder %s121, %s124
      %p130 = scmp.eq.s32.totalorder %s12, 0
      %p131 = por %p129, %p130
      %p132 = scmp.ne.s32.totalorder %s121, %s124
      %p133 = scmp.eq.s32.totalorder %s17, 1
      %p134 = por %p132, %p133
      %p135 = scmp.ne.s32.totalorder %s124, %s125
      %p136 = scmp.eq.s32.totalorder %s17, 0
      %p137 = por %p135, %p136
      %p138 = scmp.ne.s32.totalorder %s124, %s125
      %p139 = scmp.eq.s32.totalorder %s18, 1
      %p140 = por %p138, %p139
      %p142 = scmp.ne.s32.totalorder %s125, %s141
      %p143 = scmp.eq.s32.totalorder %s18, 0
      %p144 = por %p142, %p143
      %p145 = scmp.le.s32.totalorder 1, %s12
      %p146 = scmp.lt.s32.totalorder %s12, 3
      %p147 = pnand %p145, %p146
      %p148 = pneg %p147
      // Predicated region
      $region9: #{_lambda_.6} parent=5 // pred_check
        _
      $region10: #{_lambda_.6} parent=5 // pred_check_branch
        %150 = sbr.rel (%p147) target = $region12
      $region11: #{_lambda_.6} parent=5 // pred_region
        %s151 = ssub.s32 %s12, 1
        // Predicated region
        $region13: #{_lambda_.6} parent=11 // pred_check
          %p152 = pneg %p59
        $region14: #{_lambda_.6} parent=11 // pred_check_branch
          %154 = sbr.rel (%p152) target = $region16
        $region15: #{_lambda_.6} parent=11 // pred_region
          %s156 = ssub.s32 4608, 4608
          %157 = vsyncadd [#allocation3], %s156
          %s158 = sshll.u32 [#allocation2], 4
          %s159 = int_to_ptr.vmem [resolvable:$true] %s158
          %164 = dma.hbm_to_vmem [thread:$0]  %s1, 4608, %s159, [#allocation3], 64, 64, 4
        $region16: #{_lambda_.6} parent=11 // pred_fallthru
          _
      $region12: #{_lambda_.6} parent=5 // pred_fallthru
        _
      %p165 = scmp.lt.s32.totalorder %s12, 2
      // Predicated region
      $region17: #{_lambda_.6} parent=5 // pred_check
        %p166 = pneg %p165
      $region18: #{_lambda_.6} parent=5 // pred_check_branch
        %168 = sbr.rel (%p166) target = $region20
      $region19: #{_lambda_.6} parent=5 // pred_region
        // Predicated region
        $region21: #{_lambda_.6} parent=19 // pred_check
          %p169 = pneg %p32
        $region22: #{_lambda_.6} parent=19 // pred_check_branch
          %171 = sbr.rel (%p169) target = $region24
        $region23: #{_lambda_.6} parent=19 // pred_region
          %p172 = scmp.lt.s32.totalorder %s12, 1
          %s173 = scalar_select %p172, %s12, 1
          %s174 = smul.addr %s173, 6
          %s175 = smul.addr %s174, 4
          %s176 = scalar_lea.vmem %s0, %s175
        $region24: #{_lambda_.6} parent=19 // pred_fallthru
          _
      $region20: #{_lambda_.6} parent=5 // pred_fallthru
        _
      %p177 = scmp.le.s32.totalorder 1, %s12
      %p178 = scmp.lt.s32.totalorder %s12, 3
      %p179 = pnand %p177, %p178
      %p180 = pneg %p179
      // Predicated region
      $region25: #{_lambda_.6} parent=5 // pred_check
        _
      $region26: #{_lambda_.6} parent=5 // pred_check_branch
        %182 = sbr.rel (%p179) target = $region28
      $region27: #{_lambda_.6} parent=5 // pred_region
        %s183 = ssub.s32 %s12, 1
        // Predicated region
        $region29: #{_lambda_.6} parent=27 // pred_check
          %p184 = pneg %p59
        $region30: #{_lambda_.6} parent=27 // pred_check_branch
          %186 = sbr.rel (%p184) target = $region32
        $region31: #{_lambda_.6} parent=27 // pred_region
          %187 = dma.done [#allocation3], 4608
        $region32: #{_lambda_.6} parent=27 // pred_fallthru
          _
        %p188 = scmp.lt.s32.totalorder %s17, 1
        %s189 = scalar_select %p188, %s17, 1
        %s190 = smul.addr %s189, 6
        %s191 = smul.addr %s190, 4
        %s192 = scalar_lea.vmem %s0, %s191
        %p193 = pneg %p38
        %p194 = pneg %p35
        %p195 = pneg %p59
        %p196 = pneg %p56
        %p197 = pneg %p85
        %p198 = pneg %p82
        %p199 = scmp.lt.s32.totalorder %s17, 1
        %s200 = scalar_select %p199, %s17, 1
        %s201 = smul.addr %s200, 4
        %s202 = smul.addr %s201, 2
        %s203 = scalar_lea.vmem %s2, %s202
        %p204 = pneg %p111
        %p205 = pneg %p108
        %p206 = scmp.lt.s32.totalorder %s17, 1
        %s207 = scalar_select %p206, %s17, 1
        %s208 = smul.addr %s207, 8
        %s209 = scalar_lea.vmem %s3, %s208
        %p210 = pneg %p137
        %p211 = pneg %p134
        %p212 = scmp.lt.s32.totalorder %s17, 1
        %s213 = scalar_select %p212, %s17, 1
        %s214 = smul.addr %s213, 8
        %s215 = scalar_lea.vmem %s4, %s214
        %p216 = scmp.lt.s32.totalorder %s17, 1
        %s217 = scalar_select %p216, %s17, 1
        %s218 = smul.addr %s217, 6
        %s219 = smul.addr %s218, 4
        %s220 = scalar_lea.vmem %s0, %s219
        %p221 = scmp.lt.s32.totalorder %s17, 1
        %s222 = scalar_select %p221, %s17, 1
        %s223 = smul.addr %s222, 4
        %s224 = smul.addr %s223, 2
        %s225 = scalar_lea.vmem %s2, %s224
        %p226 = scmp.lt.s32.totalorder %s17, 1
        %s227 = scalar_select %p226, %s17, 1
        %s228 = smul.addr %s227, 8
        %s229 = scalar_lea.vmem %s3, %s228
        %p230 = scmp.lt.s32.totalorder %s17, 1
        %s231 = scalar_select %p230, %s17, 1
        %s232 = smul.addr %s231, 8
        %s233 = scalar_lea.vmem %s4, %s232
        loop: start=0, step=1, limit=4
        $region33: #{_lambda_.6} parent=27 // loop_pre_header
          _
        $region34: #{_lambda_.6} parent=27 // loop_header
          %s236 = sphi 0, %s240
          %p237 = scmp.ge.s32.totalorder %s236, 4
          %v241 = vphi 0.0, %v990
          %v242 = vphi 0.0, %v999
        $region35: #{_lambda_.6} parent=27 // loop_header_branch
          %239 = sbr.rel (%p237) target = $region39
        $region36: #{_lambda_.6} parent=27 // loop_body
          %s243 = smul.addr %s236, 4
          %s244 = scalar_lea.vmem %s220, %s243
          %v245 = vld [vmem:[%s244] sm:$0x7]
          %v246 = vld [vmem:[#allocation2] sm:$0xf]
          %v247 = vld [vmem:[#allocation2 + $0x4] sm:$0xf]
          %v248 = vld [vmem:[#allocation2 + $0x8] sm:$0xf]
          %v249 = vld [vmem:[#allocation2 + $0xc] sm:$0xf]
          %v250 = vld [vmem:[#allocation2 + $0x10] sm:$0xf]
          %v251 = vld [vmem:[#allocation2 + $0x14] sm:$0xf]
          %v252 = vld [vmem:[#allocation2 + $0x18] sm:$0xf]
          %v253 = vld [vmem:[#allocation2 + $0x1c] sm:$0xf]
          %s254 = scalar_lea.vmem [#allocation2], 32
          %v255 = vld [vmem:[%s254] sm:$0xf]
          %v256 = vld [vmem:[%s254 + $0x4] sm:$0xf]
          %v257 = vld [vmem:[%s254 + $0x8] sm:$0xf]
          %v258 = vld [vmem:[%s254 + $0xc] sm:$0xf]
          %v259 = vld [vmem:[%s254 + $0x10] sm:$0xf]
          %v260 = vld [vmem:[%s254 + $0x14] sm:$0xf]
          %v261 = vld [vmem:[%s254 + $0x18] sm:$0xf]
          %v262 = vld [vmem:[%s254 + $0x1c] sm:$0xf]
          %v264 = vunpack.c.l.b16 %v245
          %v265 = vpack.c.b16 %v264, %v264
          %v267 = vshrl.u32 %v265, 16
          %v269 = vshll.u32 %v265, 16
          %v271 = vrot.slane %v269, 1
          %v272 = vor.u32 %v267, %v271
          %v281 = vunpack.c.l.b16 %v255
          %v282 = vunpack.c.l.b16 %v256
          %v283 = vunpack.c.l.b16 %v257
          %v284 = vunpack.c.l.b16 %v258
          %v285 = vunpack.c.l.b16 %v259
          %v286 = vunpack.c.l.b16 %v260
          %v287 = vunpack.c.l.b16 %v261
          %v288 = vunpack.c.l.b16 %v262
          %v289 = vpack.c.b16 %v282, %v281
          %v290 = vpack.c.b16 %v284, %v283
          %v291 = vpack.c.b16 %v286, %v285
          %v292 = vpack.c.b16 %v288, %v287
          %vm297 = vcmask 523264
          %v299 = vsel %vm297, %v272, 0
          %301 = vmatprep.subr.bf16.mxu0 0
          %302 = vmatpush1.bf16.msra.mxu0 0
          %303 = vmatprep.subr.bf16.mxu0 0
          %304 = vmatpush1.bf16.msra.mxu0 0
          %305 = vmatprep.subr.bf16.mxu0 0
          %306 = vmatpush1.bf16.msra.mxu0 0
          %307 = vmatprep.subr.bf16.mxu0 0
          %308 = vmatpush1.bf16.msra.mxu0 0
          %309 = vmatprep.subr.bf16.mxu0 0
          %310 = vmatpush1.bf16.msra.mxu0 %v292
          %311 = vmatprep.subr.bf16.mxu0 0
          %312 = vmatpush1.bf16.msra.mxu0 %v291
          %313 = vmatprep.subr.bf16.mxu0 0
          %314 = vmatpush1.bf16.msra.mxu0 %v290
          %315 = vmatprep.subr.bf16.mxu0 0
          %316 = vmatpush1.bf16.msra.mxu0 %v289
          %317 = vmatprep.subr.bf16.mxu0 0
          %318 = vmatpush2.bf16.msra.mxu0 0
          %319 = vmatprep.subr.bf16.mxu0 0
          %320 = vmatpush2.bf16.msra.mxu0 0
          %321 = vmatprep.subr.bf16.mxu0 0
          %322 = vmatpush2.bf16.msra.mxu0 0
          %323 = vmatprep.subr.bf16.mxu0 0
          %324 = vmatpush2.bf16.msra.mxu0 0
          %325 = vmatprep.subr.bf16.mxu0 0
          %326 = vmatpush2.bf16.msra.mxu0 0
          %327 = vmatprep.subr.bf16.mxu0 0
          %328 = vmatpush2.bf16.msra.mxu0 0
          %329 = vmatprep.subr.bf16.mxu0 0
          %330 = vmatpush2.bf16.msra.mxu0 0
          %331 = vmatprep.subr.bf16.mxu0 0
          %332 = vmatpush2.bf16.msra.mxu0 0
          %333 = vmatprep.mubr.bf16.mxu0 0
          %334 = vmatmul.mubr.bf16.gmra.mxu0 %v299
          %v335 = vpop.f32.mrf.mxu0
          %v336 = vadd.f32 0.0, %v335
          %v337 = vpop.f32.mrf.mxu0
          %v338 = vpop.f32.mrf.mxu0
          %v339 = vpop.f32.mrf.mxu0
          %340 = vdwg.mxu0
          %v349 = vunpack.c.l.b16 %v246
          %v350 = vunpack.c.l.b16 %v247
          %v351 = vunpack.c.l.b16 %v248
          %v352 = vunpack.c.l.b16 %v249
          %v353 = vunpack.c.l.b16 %v250
          %v354 = vunpack.c.l.b16 %v251
          %v355 = vunpack.c.l.b16 %v252
          %v356 = vunpack.c.l.b16 %v253
          %v357 = vpack.c.b16 %v350, %v349
          %v358 = vpack.c.b16 %v352, %v351
          %v359 = vpack.c.b16 %v354, %v353
          %v360 = vpack.c.b16 %v356, %v355
          %v366 = vsel %vm297, %v245, 0
          %368 = vmatprep.subr.bf16.mxu0 0
          %369 = vmatpush1.bf16.msra.mxu0 0
          %370 = vmatprep.subr.bf16.mxu0 0
          %371 = vmatpush1.bf16.msra.mxu0 0
          %372 = vmatprep.subr.bf16.mxu0 0
          %373 = vmatpush1.bf16.msra.mxu0 0
          %374 = vmatprep.subr.bf16.mxu0 0
          %375 = vmatpush1.bf16.msra.mxu0 0
          %376 = vmatprep.subr.bf16.mxu0 0
          %377 = vmatpush1.bf16.msra.mxu0 %v360
          %378 = vmatprep.subr.bf16.mxu0 0
          %379 = vmatpush1.bf16.msra.mxu0 %v359
          %380 = vmatprep.subr.bf16.mxu0 0
          %381 = vmatpush1.bf16.msra.mxu0 %v358
          %382 = vmatprep.subr.bf16.mxu0 0
          %383 = vmatpush1.bf16.msra.mxu0 %v357
          %384 = vmatprep.subr.bf16.mxu0 0
          %385 = vmatpush2.bf16.msra.mxu0 0
          %386 = vmatprep.subr.bf16.mxu0 0
          %387 = vmatpush2.bf16.msra.mxu0 0
          %388 = vmatprep.subr.bf16.mxu0 0
          %389 = vmatpush2.bf16.msra.mxu0 0
          %390 = vmatprep.subr.bf16.mxu0 0
          %391 = vmatpush2.bf16.msra.mxu0 0
          %392 = vmatprep.subr.bf16.mxu0 0
          %393 = vmatpush2.bf16.msra.mxu0 0
          %394 = vmatprep.subr.bf16.mxu0 0
          %395 = vmatpush2.bf16.msra.mxu0 0
          %396 = vmatprep.subr.bf16.mxu0 0
          %397 = vmatpush2.bf16.msra.mxu0 0
          %398 = vmatprep.subr.bf16.mxu0 0
          %399 = vmatpush2.bf16.msra.mxu0 0
          %400 = vmatprep.mubr.bf16.mxu0 0
          %401 = vmatmul.mubr.bf16.gmra.mxu0 %v366
          %v402 = vpop.f32.mrf.mxu0
          %v403 = vadd.f32 %v336, %v402
          %v404 = vpop.f32.mrf.mxu0
          %v405 = vpop.f32.mrf.mxu0
          %v406 = vpop.f32.mrf.mxu0
          %407 = vdwg.mxu0
          %s408 = scalar_lea.vmem [#allocation2], 64
          %v409 = vld [vmem:[%s408] sm:$0xf]
          %v410 = vld [vmem:[%s408 + $0x4] sm:$0xf]
          %v411 = vld [vmem:[%s408 + $0x8] sm:$0xf]
          %v412 = vld [vmem:[%s408 + $0xc] sm:$0xf]
          %v413 = vld [vmem:[%s408 + $0x10] sm:$0xf]
          %v414 = vld [vmem:[%s408 + $0x14] sm:$0xf]
          %v415 = vld [vmem:[%s408 + $0x18] sm:$0xf]
          %v416 = vld [vmem:[%s408 + $0x1c] sm:$0xf]
          %v417 = vrot.slane %v265, 1
          %v426 = vunpack.c.l.b16 %v409
          %v427 = vunpack.c.l.b16 %v410
          %v428 = vunpack.c.l.b16 %v411
          %v429 = vunpack.c.l.b16 %v412
          %v430 = vunpack.c.l.b16 %v413
          %v431 = vunpack.c.l.b16 %v414
          %v432 = vunpack.c.l.b16 %v415
          %v433 = vunpack.c.l.b16 %v416
          %v434 = vpack.c.b16 %v427, %v426
          %v435 = vpack.c.b16 %v429, %v428
          %v436 = vpack.c.b16 %v431, %v430
          %v437 = vpack.c.b16 %v433, %v432
          %v443 = vsel %vm297, %v417, 0
          %445 = vmatprep.subr.bf16.mxu0 0
          %446 = vmatpush1.bf16.msra.mxu0 0
          %447 = vmatprep.subr.bf16.mxu0 0
          %448 = vmatpush1.bf16.msra.mxu0 0
          %449 = vmatprep.subr.bf16.mxu0 0
          %450 = vmatpush1.bf16.msra.mxu0 0
          %451 = vmatprep.subr.bf16.mxu0 0
          %452 = vmatpush1.bf16.msra.mxu0 0
          %453 = vmatprep.subr.bf16.mxu0 0
          %454 = vmatpush1.bf16.msra.mxu0 %v437
          %455 = vmatprep.subr.bf16.mxu0 0
          %456 = vmatpush1.bf16.msra.mxu0 %v436
          %457 = vmatprep.subr.bf16.mxu0 0
          %458 = vmatpush1.bf16.msra.mxu0 %v435
          %459 = vmatprep.subr.bf16.mxu0 0
          %460 = vmatpush1.bf16.msra.mxu0 %v434
          %461 = vmatprep.subr.bf16.mxu0 0
          %462 = vmatpush2.bf16.msra.mxu0 0
          %463 = vmatprep.subr.bf16.mxu0 0
          %464 = vmatpush2.bf16.msra.mxu0 0
          %465 = vmatprep.subr.bf16.mxu0 0
          %466 = vmatpush2.bf16.msra.mxu0 0
          %467 = vmatprep.subr.bf16.mxu0 0
          %468 = vmatpush2.bf16.msra.mxu0 0
          %469 = vmatprep.subr.bf16.mxu0 0
          %470 = vmatpush2.bf16.msra.mxu0 0
          %471 = vmatprep.subr.bf16.mxu0 0
          %472 = vmatpush2.bf16.msra.mxu0 0
          %473 = vmatprep.subr.bf16.mxu0 0
          %474 = vmatpush2.bf16.msra.mxu0 0
          %475 = vmatprep.subr.bf16.mxu0 0
          %476 = vmatpush2.bf16.msra.mxu0 0
          %477 = vmatprep.mubr.bf16.mxu0 0
          %478 = vmatmul.mubr.bf16.gmra.mxu0 %v443
          %v479 = vpop.f32.mrf.mxu0
          %v480 = vadd.f32 0.0, %v479
          %v481 = vpop.f32.mrf.mxu0
          %v482 = vpop.f32.mrf.mxu0
          %v483 = vpop.f32.mrf.mxu0
          %484 = vdwg.mxu0
          %v485 = vadd.f32 %v403, %v480
          %s486 = sadd.s32 %s236, 1
          %s487 = smul.addr %s486, 4
          %s488 = scalar_lea.vmem %s220, %s487
          %v489 = vld [vmem:[%s488] sm:$0x7]
          %s490 = scalar_lea.vmem [#allocation2], 96
          %v491 = vld [vmem:[%s490] sm:$0xf]
          %v492 = vld [vmem:[%s490 + $0x4] sm:$0xf]
          %v493 = vld [vmem:[%s490 + $0x8] sm:$0xf]
          %v494 = vld [vmem:[%s490 + $0xc] sm:$0xf]
          %v495 = vld [vmem:[%s490 + $0x10] sm:$0xf]
          %v496 = vld [vmem:[%s490 + $0x14] sm:$0xf]
          %v497 = vld [vmem:[%s490 + $0x18] sm:$0xf]
          %v498 = vld [vmem:[%s490 + $0x1c] sm:$0xf]
          %v507 = vunpack.c.l.b16 %v491
          %v508 = vunpack.c.l.b16 %v492
          %v509 = vunpack.c.l.b16 %v493
          %v510 = vunpack.c.l.b16 %v494
          %v511 = vunpack.c.l.b16 %v495
          %v512 = vunpack.c.l.b16 %v496
          %v513 = vunpack.c.l.b16 %v497
          %v514 = vunpack.c.l.b16 %v498
          %v515 = vpack.c.b16 %v508, %v507
          %v516 = vpack.c.b16 %v510, %v509
          %v517 = vpack.c.b16 %v512, %v511
          %v518 = vpack.c.b16 %v514, %v513
          %v524 = vsel %vm297, %v489, 0
          %526 = vmatprep.subr.bf16.mxu0 0
          %527 = vmatpush1.bf16.msra.mxu0 0
          %528 = vmatprep.subr.bf16.mxu0 0
          %529 = vmatpush1.bf16.msra.mxu0 0
          %530 = vmatprep.subr.bf16.mxu0 0
          %531 = vmatpush1.bf16.msra.mxu0 0
          %532 = vmatprep.subr.bf16.mxu0 0
          %533 = vmatpush1.bf16.msra.mxu0 0
          %534 = vmatprep.subr.bf16.mxu0 0
          %535 = vmatpush1.bf16.msra.mxu0 %v518
          %536 = vmatprep.subr.bf16.mxu0 0
          %537 = vmatpush1.bf16.msra.mxu0 %v517
          %538 = vmatprep.subr.bf16.mxu0 0
          %539 = vmatpush1.bf16.msra.mxu0 %v516
          %540 = vmatprep.subr.bf16.mxu0 0
          %541 = vmatpush1.bf16.msra.mxu0 %v515
          %542 = vmatprep.subr.bf16.mxu0 0
          %543 = vmatpush2.bf16.msra.mxu0 0
          %544 = vmatprep.subr.bf16.mxu0 0
          %545 = vmatpush2.bf16.msra.mxu0 0
          %546 = vmatprep.subr.bf16.mxu0 0
          %547 = vmatpush2.bf16.msra.mxu0 0
          %548 = vmatprep.subr.bf16.mxu0 0
          %549 = vmatpush2.bf16.msra.mxu0 0
          %550 = vmatprep.subr.bf16.mxu0 0
          %551 = vmatpush2.bf16.msra.mxu0 0
          %552 = vmatprep.subr.bf16.mxu0 0
          %553 = vmatpush2.bf16.msra.mxu0 0
          %554 = vmatprep.subr.bf16.mxu0 0
          %555 = vmatpush2.bf16.msra.mxu0 0
          %556 = vmatprep.subr.bf16.mxu0 0
          %557 = vmatpush2.bf16.msra.mxu0 0
          %558 = vmatprep.mubr.bf16.mxu0 0
          %559 = vmatmul.mubr.bf16.gmra.mxu0 %v524
          %v560 = vpop.f32.mrf.mxu0
          %v561 = vadd.f32 0.0, %v560
          %v562 = vpop.f32.mrf.mxu0
          %v563 = vpop.f32.mrf.mxu0
          %v564 = vpop.f32.mrf.mxu0
          %565 = vdwg.mxu0
          %v566 = vadd.f32 %v485, %v561
          %s567 = scalar_lea.vmem [#allocation2], 128
          %v568 = vld [vmem:[%s567] sm:$0xf]
          %v569 = vld [vmem:[%s567 + $0x4] sm:$0xf]
          %v570 = vld [vmem:[%s567 + $0x8] sm:$0xf]
          %v571 = vld [vmem:[%s567 + $0xc] sm:$0xf]
          %v572 = vld [vmem:[%s567 + $0x10] sm:$0xf]
          %v573 = vld [vmem:[%s567 + $0x14] sm:$0xf]
          %v574 = vld [vmem:[%s567 + $0x18] sm:$0xf]
          %v575 = vld [vmem:[%s567 + $0x1c] sm:$0xf]
          %v577 = vunpack.c.l.b16 %v489
          %v578 = vpack.c.b16 %v577, %v577
          %v580 = vshrl.u32 %v578, 16
          %v582 = vshll.u32 %v578, 16
          %v584 = vrot.slane %v582, 1
          %v585 = vor.u32 %v580, %v584
          %v594 = vunpack.c.l.b16 %v568
          %v595 = vunpack.c.l.b16 %v569
          %v596 = vunpack.c.l.b16 %v570
          %v597 = vunpack.c.l.b16 %v571
          %v598 = vunpack.c.l.b16 %v572
          %v599 = vunpack.c.l.b16 %v573
          %v600 = vunpack.c.l.b16 %v574
          %v601 = vunpack.c.l.b16 %v575
          %v602 = vpack.c.b16 %v595, %v594
          %v603 = vpack.c.b16 %v597, %v596
          %v604 = vpack.c.b16 %v599, %v598
          %v605 = vpack.c.b16 %v601, %v600
          %v611 = vsel %vm297, %v585, 0
          %613 = vmatprep.subr.bf16.mxu0 0
          %614 = vmatpush1.bf16.msra.mxu0 0
          %615 = vmatprep.subr.bf16.mxu0 0
          %616 = vmatpush1.bf16.msra.mxu0 0
          %617 = vmatprep.subr.bf16.mxu0 0
          %618 = vmatpush1.bf16.msra.mxu0 0
          %619 = vmatprep.subr.bf16.mxu0 0
          %620 = vmatpush1.bf16.msra.mxu0 0
          %621 = vmatprep.subr.bf16.mxu0 0
          %622 = vmatpush1.bf16.msra.mxu0 %v605
          %623 = vmatprep.subr.bf16.mxu0 0
          %624 = vmatpush1.bf16.msra.mxu0 %v604
          %625 = vmatprep.subr.bf16.mxu0 0
          %626 = vmatpush1.bf16.msra.mxu0 %v603
          %627 = vmatprep.subr.bf16.mxu0 0
          %628 = vmatpush1.bf16.msra.mxu0 %v602
          %629 = vmatprep.subr.bf16.mxu0 0
          %630 = vmatpush2.bf16.msra.mxu0 0
          %631 = vmatprep.subr.bf16.mxu0 0
          %632 = vmatpush2.bf16.msra.mxu0 0
          %633 = vmatprep.subr.bf16.mxu0 0
          %634 = vmatpush2.bf16.msra.mxu0 0
          %635 = vmatprep.subr.bf16.mxu0 0
          %636 = vmatpush2.bf16.msra.mxu0 0
          %637 = vmatprep.subr.bf16.mxu0 0
          %638 = vmatpush2.bf16.msra.mxu0 0
          %639 = vmatprep.subr.bf16.mxu0 0
          %640 = vmatpush2.bf16.msra.mxu0 0
          %641 = vmatprep.subr.bf16.mxu0 0
          %642 = vmatpush2.bf16.msra.mxu0 0
          %643 = vmatprep.subr.bf16.mxu0 0
          %644 = vmatpush2.bf16.msra.mxu0 0
          %645 = vmatprep.mubr.bf16.mxu0 0
          %646 = vmatmul.mubr.bf16.gmra.mxu0 %v611
          %v647 = vpop.f32.mrf.mxu0
          %v648 = vadd.f32 0.0, %v647
          %v649 = vpop.f32.mrf.mxu0
          %v650 = vpop.f32.mrf.mxu0
          %v651 = vpop.f32.mrf.mxu0
          %652 = vdwg.mxu0
          %v653 = vadd.f32 %v566, %v648
          %s654 = scalar_lea.vmem [#allocation2], 160
          %v655 = vld [vmem:[%s654] sm:$0xf]
          %v656 = vld [vmem:[%s654 + $0x4] sm:$0xf]
          %v657 = vld [vmem:[%s654 + $0x8] sm:$0xf]
          %v658 = vld [vmem:[%s654 + $0xc] sm:$0xf]
          %v659 = vld [vmem:[%s654 + $0x10] sm:$0xf]
          %v660 = vld [vmem:[%s654 + $0x14] sm:$0xf]
          %v661 = vld [vmem:[%s654 + $0x18] sm:$0xf]
          %v662 = vld [vmem:[%s654 + $0x1c] sm:$0xf]
          %v663 = vrot.slane %v578, 1
          %v672 = vunpack.c.l.b16 %v655
          %v673 = vunpack.c.l.b16 %v656
          %v674 = vunpack.c.l.b16 %v657
          %v675 = vunpack.c.l.b16 %v658
          %v676 = vunpack.c.l.b16 %v659
          %v677 = vunpack.c.l.b16 %v660
          %v678 = vunpack.c.l.b16 %v661
          %v679 = vunpack.c.l.b16 %v662
          %v680 = vpack.c.b16 %v673, %v672
          %v681 = vpack.c.b16 %v675, %v674
          %v682 = vpack.c.b16 %v677, %v676
          %v683 = vpack.c.b16 %v679, %v678
          %v689 = vsel %vm297, %v663, 0
          %691 = vmatprep.subr.bf16.mxu0 0
          %692 = vmatpush1.bf16.msra.mxu0 0
          %693 = vmatprep.subr.bf16.mxu0 0
          %694 = vmatpush1.bf16.msra.mxu0 0
          %695 = vmatprep.subr.bf16.mxu0 0
          %696 = vmatpush1.bf16.msra.mxu0 0
          %697 = vmatprep.subr.bf16.mxu0 0
          %698 = vmatpush1.bf16.msra.mxu0 0
          %699 = vmatprep.subr.bf16.mxu0 0
          %700 = vmatpush1.bf16.msra.mxu0 %v683
          %701 = vmatprep.subr.bf16.mxu0 0
          %702 = vmatpush1.bf16.msra.mxu0 %v682
          %703 = vmatprep.subr.bf16.mxu0 0
          %704 = vmatpush1.bf16.msra.mxu0 %v681
          %705 = vmatprep.subr.bf16.mxu0 0
          %706 = vmatpush1.bf16.msra.mxu0 %v680
          %707 = vmatprep.subr.bf16.mxu0 0
          %708 = vmatpush2.bf16.msra.mxu0 0
          %709 = vmatprep.subr.bf16.mxu0 0
          %710 = vmatpush2.bf16.msra.mxu0 0
          %711 = vmatprep.subr.bf16.mxu0 0
          %712 = vmatpush2.bf16.msra.mxu0 0
          %713 = vmatprep.subr.bf16.mxu0 0
          %714 = vmatpush2.bf16.msra.mxu0 0
          %715 = vmatprep.subr.bf16.mxu0 0
          %716 = vmatpush2.bf16.msra.mxu0 0
          %717 = vmatprep.subr.bf16.mxu0 0
          %718 = vmatpush2.bf16.msra.mxu0 0
          %719 = vmatprep.subr.bf16.mxu0 0
          %720 = vmatpush2.bf16.msra.mxu0 0
          %721 = vmatprep.subr.bf16.mxu0 0
          %722 = vmatpush2.bf16.msra.mxu0 0
          %723 = vmatprep.mubr.bf16.mxu0 0
          %724 = vmatmul.mubr.bf16.gmra.mxu0 %v689
          %v725 = vpop.f32.mrf.mxu0
          %v726 = vadd.f32 0.0, %v725
          %v727 = vpop.f32.mrf.mxu0
          %v728 = vpop.f32.mrf.mxu0
          %v729 = vpop.f32.mrf.mxu0
          %730 = vdwg.mxu0
          %v731 = vadd.f32 %v653, %v726
          %s732 = sadd.s32 %s236, 2
          %s733 = smul.addr %s732, 4
          %s734 = scalar_lea.vmem %s220, %s733
          %v735 = vld [vmem:[%s734] sm:$0x7]
          %s736 = scalar_lea.vmem [#allocation2], 192
          %v737 = vld [vmem:[%s736] sm:$0xf]
          %v738 = vld [vmem:[%s736 + $0x4] sm:$0xf]
          %v739 = vld [vmem:[%s736 + $0x8] sm:$0xf]
          %v740 = vld [vmem:[%s736 + $0xc] sm:$0xf]
          %v741 = vld [vmem:[%s736 + $0x10] sm:$0xf]
          %v742 = vld [vmem:[%s736 + $0x14] sm:$0xf]
          %v743 = vld [vmem:[%s736 + $0x18] sm:$0xf]
          %v744 = vld [vmem:[%s736 + $0x1c] sm:$0xf]
          %v753 = vunpack.c.l.b16 %v737
          %v754 = vunpack.c.l.b16 %v738
          %v755 = vunpack.c.l.b16 %v739
          %v756 = vunpack.c.l.b16 %v740
          %v757 = vunpack.c.l.b16 %v741
          %v758 = vunpack.c.l.b16 %v742
          %v759 = vunpack.c.l.b16 %v743
          %v760 = vunpack.c.l.b16 %v744
          %v761 = vpack.c.b16 %v754, %v753
          %v762 = vpack.c.b16 %v756, %v755
          %v763 = vpack.c.b16 %v758, %v757
          %v764 = vpack.c.b16 %v760, %v759
          %v770 = vsel %vm297, %v735, 0
          %772 = vmatprep.subr.bf16.mxu0 0
          %773 = vmatpush1.bf16.msra.mxu0 0
          %774 = vmatprep.subr.bf16.mxu0 0
          %775 = vmatpush1.bf16.msra.mxu0 0
          %776 = vmatprep.subr.bf16.mxu0 0
          %777 = vmatpush1.bf16.msra.mxu0 0
          %778 = vmatprep.subr.bf16.mxu0 0
          %779 = vmatpush1.bf16.msra.mxu0 0
          %780 = vmatprep.subr.bf16.mxu0 0
          %781 = vmatpush1.bf16.msra.mxu0 %v764
          %782 = vmatprep.subr.bf16.mxu0 0
          %783 = vmatpush1.bf16.msra.mxu0 %v763
          %784 = vmatprep.subr.bf16.mxu0 0
          %785 = vmatpush1.bf16.msra.mxu0 %v762
          %786 = vmatprep.subr.bf16.mxu0 0
          %787 = vmatpush1.bf16.msra.mxu0 %v761
          %788 = vmatprep.subr.bf16.mxu0 0
          %789 = vmatpush2.bf16.msra.mxu0 0
          %790 = vmatprep.subr.bf16.mxu0 0
          %791 = vmatpush2.bf16.msra.mxu0 0
          %792 = vmatprep.subr.bf16.mxu0 0
          %793 = vmatpush2.bf16.msra.mxu0 0
          %794 = vmatprep.subr.bf16.mxu0 0
          %795 = vmatpush2.bf16.msra.mxu0 0
          %796 = vmatprep.subr.bf16.mxu0 0
          %797 = vmatpush2.bf16.msra.mxu0 0
          %798 = vmatprep.subr.bf16.mxu0 0
          %799 = vmatpush2.bf16.msra.mxu0 0
          %800 = vmatprep.subr.bf16.mxu0 0
          %801 = vmatpush2.bf16.msra.mxu0 0
          %802 = vmatprep.subr.bf16.mxu0 0
          %803 = vmatpush2.bf16.msra.mxu0 0
          %804 = vmatprep.mubr.bf16.mxu0 0
          %805 = vmatmul.mubr.bf16.gmra.mxu0 %v770
          %v806 = vpop.f32.mrf.mxu0
          %v807 = vadd.f32 0.0, %v806
          %v808 = vpop.f32.mrf.mxu0
          %v809 = vpop.f32.mrf.mxu0
          %v810 = vpop.f32.mrf.mxu0
          %811 = vdwg.mxu0
          %v812 = vadd.f32 %v731, %v807
          %s813 = scalar_lea.vmem [#allocation2], 224
          %v814 = vld [vmem:[%s813] sm:$0xf]
          %v815 = vld [vmem:[%s813 + $0x4] sm:$0xf]
          %v816 = vld [vmem:[%s813 + $0x8] sm:$0xf]
          %v817 = vld [vmem:[%s813 + $0xc] sm:$0xf]
          %v818 = vld [vmem:[%s813 + $0x10] sm:$0xf]
          %v819 = vld [vmem:[%s813 + $0x14] sm:$0xf]
          %v820 = vld [vmem:[%s813 + $0x18] sm:$0xf]
          %v821 = vld [vmem:[%s813 + $0x1c] sm:$0xf]
          %v823 = vunpack.c.l.b16 %v735
          %v824 = vpack.c.b16 %v823, %v823
          %v826 = vshrl.u32 %v824, 16
          %v828 = vshll.u32 %v824, 16
          %v830 = vrot.slane %v828, 1
          %v831 = vor.u32 %v826, %v830
          %v840 = vunpack.c.l.b16 %v814
          %v841 = vunpack.c.l.b16 %v815
          %v842 = vunpack.c.l.b16 %v816
          %v843 = vunpack.c.l.b16 %v817
          %v844 = vunpack.c.l.b16 %v818
          %v845 = vunpack.c.l.b16 %v819
          %v846 = vunpack.c.l.b16 %v820
          %v847 = vunpack.c.l.b16 %v821
          %v848 = vpack.c.b16 %v841, %v840
          %v849 = vpack.c.b16 %v843, %v842
          %v850 = vpack.c.b16 %v845, %v844
          %v851 = vpack.c.b16 %v847, %v846
          %v857 = vsel %vm297, %v831, 0
          %859 = vmatprep.subr.bf16.mxu0 0
          %860 = vmatpush1.bf16.msra.mxu0 0
          %861 = vmatprep.subr.bf16.mxu0 0
          %862 = vmatpush1.bf16.msra.mxu0 0
          %863 = vmatprep.subr.bf16.mxu0 0
          %864 = vmatpush1.bf16.msra.mxu0 0
          %865 = vmatprep.subr.bf16.mxu0 0
          %866 = vmatpush1.bf16.msra.mxu0 0
          %867 = vmatprep.subr.bf16.mxu0 0
          %868 = vmatpush1.bf16.msra.mxu0 %v851
          %869 = vmatprep.subr.bf16.mxu0 0
          %870 = vmatpush1.bf16.msra.mxu0 %v850
          %871 = vmatprep.subr.bf16.mxu0 0
          %872 = vmatpush1.bf16.msra.mxu0 %v849
          %873 = vmatprep.subr.bf16.mxu0 0
          %874 = vmatpush1.bf16.msra.mxu0 %v848
          %875 = vmatprep.subr.bf16.mxu0 0
          %876 = vmatpush2.bf16.msra.mxu0 0
          %877 = vmatprep.subr.bf16.mxu0 0
          %878 = vmatpush2.bf16.msra.mxu0 0
          %879 = vmatprep.subr.bf16.mxu0 0
          %880 = vmatpush2.bf16.msra.mxu0 0
          %881 = vmatprep.subr.bf16.mxu0 0
          %882 = vmatpush2.bf16.msra.mxu0 0
          %883 = vmatprep.subr.bf16.mxu0 0
          %884 = vmatpush2.bf16.msra.mxu0 0
          %885 = vmatprep.subr.bf16.mxu0 0
          %886 = vmatpush2.bf16.msra.mxu0 0
          %887 = vmatprep.subr.bf16.mxu0 0
          %888 = vmatpush2.bf16.msra.mxu0 0
          %889 = vmatprep.subr.bf16.mxu0 0
          %890 = vmatpush2.bf16.msra.mxu0 0
          %891 = vmatprep.mubr.bf16.mxu0 0
          %892 = vmatmul.mubr.bf16.gmra.mxu0 %v857
          %v893 = vpop.f32.mrf.mxu0
          %v894 = vadd.f32 0.0, %v893
          %v895 = vpop.f32.mrf.mxu0
          %v896 = vpop.f32.mrf.mxu0
          %v897 = vpop.f32.mrf.mxu0
          %898 = vdwg.mxu0
          %v899 = vadd.f32 %v812, %v894
          %s900 = scalar_lea.vmem [#allocation2], 256
          %v901 = vld [vmem:[%s900] sm:$0xf]
          %v902 = vld [vmem:[%s900 + $0x4] sm:$0xf]
          %v903 = vld [vmem:[%s900 + $0x8] sm:$0xf]
          %v904 = vld [vmem:[%s900 + $0xc] sm:$0xf]
          %v905 = vld [vmem:[%s900 + $0x10] sm:$0xf]
          %v906 = vld [vmem:[%s900 + $0x14] sm:$0xf]
          %v907 = vld [vmem:[%s900 + $0x18] sm:$0xf]
          %v908 = vld [vmem:[%s900 + $0x1c] sm:$0xf]
          %v909 = vrot.slane %v824, 1
          %v918 = vunpack.c.l.b16 %v901
          %v919 = vunpack.c.l.b16 %v902
          %v920 = vunpack.c.l.b16 %v903
          %v921 = vunpack.c.l.b16 %v904
          %v922 = vunpack.c.l.b16 %v905
          %v923 = vunpack.c.l.b16 %v906
          %v924 = vunpack.c.l.b16 %v907
          %v925 = vunpack.c.l.b16 %v908
          %v926 = vpack.c.b16 %v919, %v918
          %v927 = vpack.c.b16 %v921, %v920
          %v928 = vpack.c.b16 %v923, %v922
          %v929 = vpack.c.b16 %v925, %v924
          %v935 = vsel %vm297, %v909, 0
          %937 = vmatprep.subr.bf16.mxu0 0
          %938 = vmatpush1.bf16.msra.mxu0 0
          %939 = vmatprep.subr.bf16.mxu0 0
          %940 = vmatpush1.bf16.msra.mxu0 0
          %941 = vmatprep.subr.bf16.mxu0 0
          %942 = vmatpush1.bf16.msra.mxu0 0
          %943 = vmatprep.subr.bf16.mxu0 0
          %944 = vmatpush1.bf16.msra.mxu0 0
          %945 = vmatprep.subr.bf16.mxu0 0
          %946 = vmatpush1.bf16.msra.mxu0 %v929
          %947 = vmatprep.subr.bf16.mxu0 0
          %948 = vmatpush1.bf16.msra.mxu0 %v928
          %949 = vmatprep.subr.bf16.mxu0 0
          %950 = vmatpush1.bf16.msra.mxu0 %v927
          %951 = vmatprep.subr.bf16.mxu0 0
          %952 = vmatpush1.bf16.msra.mxu0 %v926
          %953 = vmatprep.subr.bf16.mxu0 0
          %954 = vmatpush2.bf16.msra.mxu0 0
          %955 = vmatprep.subr.bf16.mxu0 0
          %956 = vmatpush2.bf16.msra.mxu0 0
          %957 = vmatprep.subr.bf16.mxu0 0
          %958 = vmatpush2.bf16.msra.mxu0 0
          %959 = vmatprep.subr.bf16.mxu0 0
          %960 = vmatpush2.bf16.msra.mxu0 0
          %961 = vmatprep.subr.bf16.mxu0 0
          %962 = vmatpush2.bf16.msra.mxu0 0
          %963 = vmatprep.subr.bf16.mxu0 0
          %964 = vmatpush2.bf16.msra.mxu0 0
          %965 = vmatprep.subr.bf16.mxu0 0
          %966 = vmatpush2.bf16.msra.mxu0 0
          %967 = vmatprep.subr.bf16.mxu0 0
          %968 = vmatpush2.bf16.msra.mxu0 0
          %969 = vmatprep.mubr.bf16.mxu0 0
          %970 = vmatmul.mubr.bf16.gmra.mxu0 %v935
          %v971 = vpop.f32.mrf.mxu0
          %v972 = vadd.f32 0.0, %v971
          %v973 = vpop.f32.mrf.mxu0
          %v974 = vpop.f32.mrf.mxu0
          %v975 = vpop.f32.mrf.mxu0
          %976 = vdwg.mxu0
          %v977 = vadd.f32 %v899, %v972
          %v978 = vpack.c.bf16 %v977, %v977
          %s979 = smul.addr %s236, 2
          %s980 = scalar_lea.vmem %s225, %s979
          %981 = vst [vmem:[%s980] sm:$0x3] %v978
          %vm982 = vcmask 1043456
          %v983 = vsel %vm982, %v977, 0.0
          %v984 = vrot.slane %v983, 4
          %v985 = vadd.f32 %v983, %v984
          %v986 = vrot.slane %v985, 2
          %v987 = vadd.f32 %v985, %v986
          %v988 = vrot.slane %v987, 1
          %v989 = vadd.f32 %v987, %v988
          %v990 = vadd.f32 %v241, %v989
          %v991 = vmul.f32 %v977, %v977
          %v992 = vsel %vm982, %v991, 0.0
          %v993 = vrot.slane %v992, 4
          %v994 = vadd.f32 %v992, %v993
          %v995 = vrot.slane %v994, 2
          %v996 = vadd.f32 %v994, %v995
          %v997 = vrot.slane %v996, 1
          %v998 = vadd.f32 %v996, %v997
          %v999 = vadd.f32 %v242, %v998
        $region37: #{_lambda_.6} parent=27 // loop_footer
          %s240 = sadd.s32 1, %s236
        $region38: #{_lambda_.6} parent=27 // loop_footer_branch
          %235 = sbr.rel target = $region34
        $region39: #{_lambda_.6} parent=27 // loop_exit
          _
        %1000 = vst [vmem:[%s229] sm:$0xff] %v241
        %1001 = vst [vmem:[%s233] sm:$0xff] %v242
        %p1002 = scmp.lt.s32.totalorder %s17, 1
        %s1003 = scalar_select %p1002, %s17, 1
        %s1004 = smul.addr %s1003, 4
        %s1005 = smul.addr %s1004, 2
        %s1006 = scalar_lea.vmem %s2, %s1005
        %p1007 = scmp.lt.s32.totalorder %s17, 1
        %s1008 = scalar_select %p1007, %s17, 1
        %s1009 = smul.addr %s1008, 8
        %s1010 = scalar_lea.vmem %s3, %s1009
        %p1011 = scmp.lt.s32.totalorder %s17, 1
        %s1012 = scalar_select %p1011, %s17, 1
        %s1013 = smul.addr %s1012, 8
        %s1014 = scalar_lea.vmem %s4, %s1013
        // Predicated region
        $region40: #{_lambda_.6} parent=27 // pred_check
          %p1015 = pneg %p82
        $region41: #{_lambda_.6} parent=27 // pred_check_branch
          %1017 = sbr.rel (%p1015) target = $region43
        $region42: #{_lambda_.6} parent=27 // pred_region
          _
        $region43: #{_lambda_.6} parent=27 // pred_fallthru
          _
        // Predicated region
        $region44: #{_lambda_.6} parent=27 // pred_check
          %p1018 = pneg %p108
        $region45: #{_lambda_.6} parent=27 // pred_check_branch
          %1020 = sbr.rel (%p1018) target = $region47
        $region46: #{_lambda_.6} parent=27 // pred_region
          _
        $region47: #{_lambda_.6} parent=27 // pred_fallthru
          _
        // Predicated region
        $region48: #{_lambda_.6} parent=27 // pred_check
          %p1021 = pneg %p134
        $region49: #{_lambda_.6} parent=27 // pred_check_branch
          %1023 = sbr.rel (%p1021) target = $region51
        $region50: #{_lambda_.6} parent=27 // pred_region
          _
        $region51: #{_lambda_.6} parent=27 // pred_fallthru
          _
      $region28: #{_lambda_.6} parent=5 // pred_fallthru
        _
      %p1024 = scmp.le.s32.totalorder 2, %s12
      // Predicated region
      $region52: #{_lambda_.6} parent=5 // pred_check
        %p1025 = pneg %p1024
      $region53: #{_lambda_.6} parent=5 // pred_check_branch
        %1027 = sbr.rel (%p1025) target = $region55
      $region54: #{_lambda_.6} parent=5 // pred_region
        %s1028 = ssub.s32 %s12, 2
        // Predicated region
        $region56: #{_lambda_.6} parent=54 // pred_check
          %p1029 = pneg %p88
        $region57: #{_lambda_.6} parent=54 // pred_check_branch
          %1031 = sbr.rel (%p1029) target = $region59
        $region58: #{_lambda_.6} parent=54 // pred_region
          %p1032 = scmp.lt.s32.totalorder %s18, 1
          %s1033 = scalar_select %p1032, %s18, 1
          %s1034 = smul.addr %s1033, 4
          %s1035 = smul.addr %s1034, 2
          %s1036 = scalar_lea.vmem %s2, %s1035
        $region59: #{_lambda_.6} parent=54 // pred_fallthru
          _
        // Predicated region
        $region60: #{_lambda_.6} parent=54 // pred_check
          %p1037 = pneg %p114
        $region61: #{_lambda_.6} parent=54 // pred_check_branch
          %1039 = sbr.rel (%p1037) target = $region63
        $region62: #{_lambda_.6} parent=54 // pred_region
          %p1040 = scmp.lt.s32.totalorder %s18, 1
          %s1041 = scalar_select %p1040, %s18, 1
          %s1042 = smul.addr %s1041, 8
          %s1043 = scalar_lea.vmem %s3, %s1042
        $region63: #{_lambda_.6} parent=54 // pred_fallthru
          _
        // Predicated region
        $region64: #{_lambda_.6} parent=54 // pred_check
          %p1044 = pneg %p140
        $region65: #{_lambda_.6} parent=54 // pred_check_branch
          %1046 = sbr.rel (%p1044) target = $region67
        $region66: #{_lambda_.6} parent=54 // pred_region
          %p1047 = scmp.lt.s32.totalorder %s18, 1
          %s1048 = scalar_select %p1047, %s18, 1
          %s1049 = smul.addr %s1048, 8
          %s1050 = scalar_lea.vmem %s4, %s1049
        $region67: #{_lambda_.6} parent=54 // pred_fallthru
          _
      $region55: #{_lambda_.6} parent=5 // pred_fallthru
        _
    $region6: #{_lambda_.6} parent=1 // loop_footer
      %s16 = sadd.s32 1, %s12
    $region7: #{_lambda_.6} parent=1 // loop_footer_branch
      %11 = sbr.rel target = $region3
    $region8: #{_lambda_.6} parent=1 // loop_exit
      _
    %1051 = vsyncpa [#allocation3], 1
    %s1052 = scalar_lea.sflag [#allocation3], 1
    %1053 = vsyncpa %s1052, 1

// kernel: _lambda_.7
$region0: #{_lambda_.7}
  #allocation0 [shape = 'u32[]', space=smem, size = 0x4, offset = 0x4, fixed_abs, tag = 'smem constant byte address 0x4 - core index']
  #allocation1 [shape = 'u32[144,128]{1,0:T(1,128)}', space=vmem, size = 0x12000, scoped, tag = 'internal scratch']
  %s0 = inlined_call_operand.vmem [shape: bf16[2,10,10,32], index: 0, kind: input, shape index: {}]
  %s1 = inlined_call_operand.hbm [shape: bf16[9,32,128], index: 1, kind: input, shape index: {}]
  %s2 = inlined_call_operand.vmem [shape: bf16[2,8,8,128], index: 2, kind: output, shape index: {0}]
  %s3 = inlined_call_operand.vmem [shape: f32[2,8,128], index: 3, kind: output, shape index: {1}]
  %s4 = inlined_call_operand.vmem [shape: f32[2,8,128], index: 4, kind: output, shape index: {2}]
  %5 = xla_tuple %s2, %s3, %s4
  %s6 = sld [smem:[#allocation0]]
  $region68: #{_lambda_.7} parent=0
    _
  %s8 = ssub.s32 1, %s6
  %s9 = scalar_select 0, %s8, %s6
  $region1: #{_lambda_.7} parent=0
    #allocation2 [shape = 'u8[73728]{0}', space=vmem, size = 0x12000, scoped, tag = 'input window, operand 1, single buffered']
    #allocation3 [shape = 's32[2]{0}', space=sflag, size = 0x8, scoped, tag = 'scoped memory for _lambda_.7']
    %10 = vsyncpa [#allocation3], 0
    loop: start=0, step=1, limit=4
    $region2: #{_lambda_.7} parent=1 // loop_pre_header
      _
    $region3: #{_lambda_.7} parent=1 // loop_header
      %s12 = sphi 0, %s16
      %p13 = scmp.ge.s32.totalorder %s12, 4
      %s22 = sphi 0, %s24
      %s25 = sphi 0, %s22
      %s26 = sphi 0, %s25
      %s42 = sphi 0, %s26
      %s46 = sphi 0, %s46
      %s48 = sphi 0, %s46
      %s49 = sphi 0, %s48
      %s63 = sphi 0, %s49
      %s69 = sphi 0, %s71
      %s72 = sphi 0, %s69
      %s73 = sphi 0, %s72
      %s89 = sphi 0, %s73
      %s95 = sphi 0, %s97
      %s98 = sphi 0, %s95
      %s99 = sphi 0, %s98
      %s115 = sphi 0, %s99
      %s121 = sphi 0, %s123
      %s124 = sphi 0, %s121
      %s125 = sphi 0, %s124
      %s141 = sphi 0, %s125
    $region4: #{_lambda_.7} parent=1 // loop_header_branch
      %15 = sbr.rel (%p13) target = $region8
    $region5: #{_lambda_.7} parent=1 // loop_body
      %s17 = ssub.s32 %s12, 1
      %s18 = ssub.s32 %s12, 2
      %s19 = sadd.s32 %s12, 1
      %s20 = ssub.s32 %s12, %s19
      %p21 = scmp.eq.s32.totalorder %s20, 0
      %s23 = sadd.s32 %s22, 1
      %s24 = scalar_select %p21, %s22, %s23
      %p27 = pneg %p21
      %p28 = scmp.eq.s32.totalorder %s12, 1
      %p29 = por %p27, %p28
      %p30 = scmp.ne.s32.totalorder %s22, %s25
      %p31 = scmp.eq.s32.totalorder %s12, 0
      %p32 = por %p30, %p31
      %p33 = scmp.ne.s32.totalorder %s22, %s25
      %p34 = scmp.eq.s32.totalorder %s17, 1
      %p35 = por %p33, %p34
      %p36 = scmp.ne.s32.totalorder %s25, %s26
      %p37 = scmp.eq.s32.totalorder %s17, 0
      %p38 = por %p36, %p37
      %p39 = scmp.ne.s32.totalorder %s25, %s26
      %p40 = scmp.eq.s32.totalorder %s18, 1
      %p41 = por %p39, %p40
      %p43 = scmp.ne.s32.totalorder %s26, %s42
      %p44 = scmp.eq.s32.totalorder %s18, 0
      %p45 = por %p43, %p44
      %s47 = sadd.s32 %s46, 1
      %p50 = scmp.eq.s32.totalorder %s12, 1
      %p51 = scmp.ne.s32.totalorder %s46, %s48
      %p52 = scmp.eq.s32.totalorder %s12, 0
      %p53 = por %p51, %p52
      %p54 = scmp.ne.s32.totalorder %s46, %s48
      %p55 = scmp.eq.s32.totalorder %s17, 1
      %p56 = por %p54, %p55
      %p57 = scmp.ne.s32.totalorder %s48, %s49
      %p58 = scmp.eq.s32.totalorder %s17, 0
      %p59 = por %p57, %p58
      %p60 = scmp.ne.s32.totalorder %s48, %s49
      %p61 = scmp.eq.s32.totalorder %s18, 1
      %p62 = por %p60, %p61
      %p64 = scmp.ne.s32.totalorder %s49, %s63
      %p65 = scmp.eq.s32.totalorder %s18, 0
      %p66 = por %p64, %p65
      %s67 = ssub.s32 %s12, %s19
      %p68 = scmp.eq.s32.totalorder %s67, 0
      %s70 = sadd.s32 %s69, 1
      %s71 = scalar_select %p68, %s69, %s70
      %p74 = pneg %p68
      %p75 = scmp.eq.s32.totalorder %s12, 1
      %p76 = por %p74, %p75
      %p77 = scmp.ne.s32.totalorder %s69, %s72
      %p78 = scmp.eq.s32.totalorder %s12, 0
      %p79 = por %p77, %p78
      %p80 = scmp.ne.s32.totalorder %s69, %s72
      %p81 = scmp.eq.s32.totalorder %s17, 1
      %p82 = por %p80, %p81
      %p83 = scmp.ne.s32.totalorder %s72, %s73
      %p84 = scmp.eq.s32.totalorder %s17, 0
      %p85 = por %p83, %p84
      %p86 = scmp.ne.s32.totalorder %s72, %s73
      %p87 = scmp.eq.s32.totalorder %s18, 1
      %p88 = por %p86, %p87
      %p90 = scmp.ne.s32.totalorder %s73, %s89
      %p91 = scmp.eq.s32.totalorder %s18, 0
      %p92 = por %p90, %p91
      %s93 = ssub.s32 %s12, %s19
      %p94 = scmp.eq.s32.totalorder %s93, 0
      %s96 = sadd.s32 %s95, 1
      %s97 = scalar_select %p94, %s95, %s96
      %p100 = pneg %p94
      %p101 = scmp.eq.s32.totalorder %s12, 1
      %p102 = por %p100, %p101
      %p103 = scmp.ne.s32.totalorder %s95, %s98
      %p104 = scmp.eq.s32.totalorder %s12, 0
      %p105 = por %p103, %p104
      %p106 = scmp.ne.s32.totalorder %s95, %s98
      %p107 = scmp.eq.s32.totalorder %s17, 1
      %p108 = por %p106, %p107
      %p109 = scmp.ne.s32.totalorder %s98, %s99
      %p110 = scmp.eq.s32.totalorder %s17, 0
      %p111 = por %p109, %p110
      %p112 = scmp.ne.s32.totalorder %s98, %s99
      %p113 = scmp.eq.s32.totalorder %s18, 1
      %p114 = por %p112, %p113
      %p116 = scmp.ne.s32.totalorder %s99, %s115
      %p117 = scmp.eq.s32.totalorder %s18, 0
      %p118 = por %p116, %p117
      %s119 = ssub.s32 %s12, %s19
      %p120 = scmp.eq.s32.totalorder %s119, 0
      %s122 = sadd.s32 %s121, 1
      %s123 = scalar_select %p120, %s121, %s122
      %p126 = pneg %p120
      %p127 = scmp.eq.s32.totalorder %s12, 1
      %p128 = por %p126, %p127
      %p129 = scmp.ne.s32.totalorder %s121, %s124
      %p130 = scmp.eq.s32.totalorder %s12, 0
      %p131 = por %p129, %p130
      %p132 = scmp.ne.s32.totalorder %s121, %s124
      %p133 = scmp.eq.s32.totalorder %s17, 1
      %p134 = por %p132, %p133
      %p135 = scmp.ne.s32.totalorder %s124, %s125
      %p136 = scmp.eq.s32.totalorder %s17, 0
      %p137 = por %p135, %p136
      %p138 = scmp.ne.s32.totalorder %s124, %s125
      %p139 = scmp.eq.s32.totalorder %s18, 1
      %p140 = por %p138, %p139
      %p142 = scmp.ne.s32.totalorder %s125, %s141
      %p143 = scmp.eq.s32.totalorder %s18, 0
      %p144 = por %p142, %p143
      %p145 = scmp.le.s32.totalorder 1, %s12
      %p146 = scmp.lt.s32.totalorder %s12, 3
      %p147 = pnand %p145, %p146
      %p148 = pneg %p147
      // Predicated region
      $region9: #{_lambda_.7} parent=5 // pred_check
        _
      $region10: #{_lambda_.7} parent=5 // pred_check_branch
        %150 = sbr.rel (%p147) target = $region12
      $region11: #{_lambda_.7} parent=5 // pred_region
        %s151 = ssub.s32 %s12, 1
        // Predicated region
        $region13: #{_lambda_.7} parent=11 // pred_check
          %p152 = pneg %p59
        $region14: #{_lambda_.7} parent=11 // pred_check_branch
          %154 = sbr.rel (%p152) target = $region16
        $region15: #{_lambda_.7} parent=11 // pred_region
          %s156 = ssub.s32 2304, 2304
          %157 = vsyncadd [#allocation3], %s156
          %s158 = sshll.u32 [#allocation2], 4
          %s159 = int_to_ptr.vmem [resolvable:$true] %s158
          %164 = dma.hbm_to_vmem [thread:$0]  %s1, 2304, %s159, [#allocation3], 64, 64, 4
        $region16: #{_lambda_.7} parent=11 // pred_fallthru
          _
      $region12: #{_lambda_.7} parent=5 // pred_fallthru
        _
      %p165 = scmp.lt.s32.totalorder %s12, 2
      // Predicated region
      $region17: #{_lambda_.7} parent=5 // pred_check
        %p166 = pneg %p165
      $region18: #{_lambda_.7} parent=5 // pred_check_branch
        %168 = sbr.rel (%p166) target = $region20
      $region19: #{_lambda_.7} parent=5 // pred_region
        // Predicated region
        $region21: #{_lambda_.7} parent=19 // pred_check
          %p169 = pneg %p32
        $region22: #{_lambda_.7} parent=19 // pred_check_branch
          %171 = sbr.rel (%p169) target = $region24
        $region23: #{_lambda_.7} parent=19 // pred_region
          %p172 = scmp.lt.s32.totalorder %s12, 1
          %s173 = scalar_select %p172, %s12, 1
          %s174 = smul.addr %s173, 20
          %s175 = smul.addr %s174, 4
          %s176 = scalar_lea.vmem %s0, %s175
        $region24: #{_lambda_.7} parent=19 // pred_fallthru
          _
      $region20: #{_lambda_.7} parent=5 // pred_fallthru
        _
      %p177 = scmp.le.s32.totalorder 1, %s12
      %p178 = scmp.lt.s32.totalorder %s12, 3
      %p179 = pnand %p177, %p178
      %p180 = pneg %p179
      // Predicated region
      $region25: #{_lambda_.7} parent=5 // pred_check
        _
      $region26: #{_lambda_.7} parent=5 // pred_check_branch
        %182 = sbr.rel (%p179) target = $region28
      $region27: #{_lambda_.7} parent=5 // pred_region
        %s183 = ssub.s32 %s12, 1
        // Predicated region
        $region29: #{_lambda_.7} parent=27 // pred_check
          %p184 = pneg %p59
        $region30: #{_lambda_.7} parent=27 // pred_check_branch
          %186 = sbr.rel (%p184) target = $region32
        $region31: #{_lambda_.7} parent=27 // pred_region
          %187 = dma.done [#allocation3], 2304
        $region32: #{_lambda_.7} parent=27 // pred_fallthru
          _
        %p188 = scmp.lt.s32.totalorder %s17, 1
        %s189 = scalar_select %p188, %s17, 1
        %s190 = smul.addr %s189, 20
        %s191 = smul.addr %s190, 4
        %s192 = scalar_lea.vmem %s0, %s191
        %p193 = pneg %p38
        %p194 = pneg %p35
        %p195 = pneg %p59
        %p196 = pneg %p56
        %p197 = pneg %p85
        %p198 = pneg %p82
        %p199 = scmp.lt.s32.totalorder %s17, 1
        %s200 = scalar_select %p199, %s17, 1
        %s201 = smul.addr %s200, 8
        %s202 = smul.addr %s201, 4
        %s203 = scalar_lea.vmem %s2, %s202
        %p204 = pneg %p111
        %p205 = pneg %p108
        %p206 = scmp.lt.s32.totalorder %s17, 1
        %s207 = scalar_select %p206, %s17, 1
        %s208 = smul.addr %s207, 8
        %s209 = scalar_lea.vmem %s3, %s208
        %p210 = pneg %p137
        %p211 = pneg %p134
        %p212 = scmp.lt.s32.totalorder %s17, 1
        %s213 = scalar_select %p212, %s17, 1
        %s214 = smul.addr %s213, 8
        %s215 = scalar_lea.vmem %s4, %s214
        %p216 = scmp.lt.s32.totalorder %s17, 1
        %s217 = scalar_select %p216, %s17, 1
        %s218 = smul.addr %s217, 20
        %s219 = smul.addr %s218, 4
        %s220 = scalar_lea.vmem %s0, %s219
        %p221 = scmp.lt.s32.totalorder %s17, 1
        %s222 = scalar_select %p221, %s17, 1
        %s223 = smul.addr %s222, 8
        %s224 = smul.addr %s223, 4
        %s225 = scalar_lea.vmem %s2, %s224
        %p226 = scmp.lt.s32.totalorder %s17, 1
        %s227 = scalar_select %p226, %s17, 1
        %s228 = smul.addr %s227, 8
        %s229 = scalar_lea.vmem %s3, %s228
        %p230 = scmp.lt.s32.totalorder %s17, 1
        %s231 = scalar_select %p230, %s17, 1
        %s232 = smul.addr %s231, 8
        %s233 = scalar_lea.vmem %s4, %s232
        loop: start=0, step=1, limit=8
        $region33: #{_lambda_.7} parent=27 // loop_pre_header
          _
        $region34: #{_lambda_.7} parent=27 // loop_header
          %s236 = sphi 0, %s240
          %p237 = scmp.ge.s32.totalorder %s236, 8
          %v241 = vphi 0.0, %v856
          %v242 = vphi 0.0, %v864
        $region35: #{_lambda_.7} parent=27 // loop_header_branch
          %239 = sbr.rel (%p237) target = $region39
        $region36: #{_lambda_.7} parent=27 // loop_body
          %s243 = smul.u32 %s236, 2
          %s244 = smul.addr %s243, 4
          %s245 = scalar_lea.vmem %s220, %s244
          %v246 = vld [vmem:[%s245] sm:$0xf]
          %v247 = vld [vmem:[%s245 + $0x4] sm:$0x1]
          %v248 = vld [vmem:[#allocation2] sm:$0xf]
          %v249 = vld [vmem:[#allocation2 + $0x4] sm:$0xf]
          %v250 = vld [vmem:[#allocation2 + $0x8] sm:$0xf]
          %v251 = vld [vmem:[#allocation2 + $0xc] sm:$0xf]
          %s252 = scalar_lea.vmem [#allocation2], 16
          %v253 = vld [vmem:[%s252] sm:$0xf]
          %v254 = vld [vmem:[%s252 + $0x4] sm:$0xf]
          %v255 = vld [vmem:[%s252 + $0x8] sm:$0xf]
          %v256 = vld [vmem:[%s252 + $0xc] sm:$0xf]
          %v259 = vunpack.c.l.b16 %v246
          %v260 = vunpack.c.l.b16 %v247
          %v261 = vpack.c.b16 %v260, %v259
          %v263 = vshrl.u32 %v261, 16
          %v265 = vshll.u32 %v261, 16
          %v267 = vrot.slane %v265, 1
          %v268 = vor.u32 %v263, %v267
          %v273 = vunpack.c.l.b16 %v253
          %v274 = vunpack.c.l.b16 %v254
          %v275 = vunpack.c.l.b16 %v255
          %v276 = vunpack.c.l.b16 %v256
          %v277 = vpack.c.b16 %v274, %v273
          %v278 = vpack.c.b16 %v276, %v275
          %vm281 = vcmask 261120
          %v283 = vsel %vm281, %v268, 0
          %285 = vmatprep.subr.bf16.mxu0 0
          %286 = vmatpush1.bf16.msra.mxu0 0
          %287 = vmatprep.subr.bf16.mxu0 0
          %288 = vmatpush1.bf16.msra.mxu0 0
          %289 = vmatprep.subr.bf16.mxu0 0
          %290 = vmatpush1.bf16.msra.mxu0 0
          %291 = vmatprep.subr.bf16.mxu0 0
          %292 = vmatpush1.bf16.msra.mxu0 0
          %293 = vmatprep.subr.bf16.mxu0 0
          %294 = vmatpush1.bf16.msra.mxu0 0
          %295 = vmatprep.subr.bf16.mxu0 0
          %296 = vmatpush1.bf16.msra.mxu0 0
          %297 = vmatprep.subr.bf16.mxu0 0
          %298 = vmatpush1.bf16.msra.mxu0 %v278
          %299 = vmatprep.subr.bf16.mxu0 0
          %300 = vmatpush1.bf16.msra.mxu0 %v277
          %301 = vmatprep.subr.bf16.mxu0 0
          %302 = vmatpush2.bf16.msra.mxu0 0
          %303 = vmatprep.subr.bf16.mxu0 0
          %304 = vmatpush2.bf16.msra.mxu0 0
          %305 = vmatprep.subr.bf16.mxu0 0
          %306 = vmatpush2.bf16.msra.mxu0 0
          %307 = vmatprep.subr.bf16.mxu0 0
          %308 = vmatpush2.bf16.msra.mxu0 0
          %309 = vmatprep.subr.bf16.mxu0 0
          %310 = vmatpush2.bf16.msra.mxu0 0
          %311 = vmatprep.subr.bf16.mxu0 0
          %312 = vmatpush2.bf16.msra.mxu0 0
          %313 = vmatprep.subr.bf16.mxu0 0
          %314 = vmatpush2.bf16.msra.mxu0 0
          %315 = vmatprep.subr.bf16.mxu0 0
          %316 = vmatpush2.bf16.msra.mxu0 0
          %317 = vmatprep.mubr.bf16.mxu0 0
          %318 = vmatmul.mubr.bf16.gmra.mxu0 %v283
          %v319 = vpop.f32.mrf.mxu0
          %v320 = vadd.f32 0.0, %v319
          %v321 = vpop.f32.mrf.mxu0
          %v322 = vpop.f32.mrf.mxu0
          %v323 = vpop.f32.mrf.mxu0
          %324 = vdwg.mxu0
          %v329 = vunpack.c.l.b16 %v248
          %v330 = vunpack.c.l.b16 %v249
          %v331 = vunpack.c.l.b16 %v250
          %v332 = vunpack.c.l.b16 %v251
          %v333 = vpack.c.b16 %v330, %v329
          %v334 = vpack.c.b16 %v332, %v331
          %v338 = vsel %vm281, %v246, 0
          %340 = vmatprep.subr.bf16.mxu0 0
          %341 = vmatpush1.bf16.msra.mxu0 0
          %342 = vmatprep.subr.bf16.mxu0 0
          %343 = vmatpush1.bf16.msra.mxu0 0
          %344 = vmatprep.subr.bf16.mxu0 0
          %345 = vmatpush1.bf16.msra.mxu0 0
          %346 = vmatprep.subr.bf16.mxu0 0
          %347 = vmatpush1.bf16.msra.mxu0 0
          %348 = vmatprep.subr.bf16.mxu0 0
          %349 = vmatpush1.bf16.msra.mxu0 0
          %350 = vmatprep.subr.bf16.mxu0 0
          %351 = vmatpush1.bf16.msra.mxu0 0
          %352 = vmatprep.subr.bf16.mxu0 0
          %353 = vmatpush1.bf16.msra.mxu0 %v334
          %354 = vmatprep.subr.bf16.mxu0 0
          %355 = vmatpush1.bf16.msra.mxu0 %v333
          %356 = vmatprep.subr.bf16.mxu0 0
          %357 = vmatpush2.bf16.msra.mxu0 0
          %358 = vmatprep.subr.bf16.mxu0 0
          %359 = vmatpush2.bf16.msra.mxu0 0
          %360 = vmatprep.subr.bf16.mxu0 0
          %361 = vmatpush2.bf16.msra.mxu0 0
          %362 = vmatprep.subr.bf16.mxu0 0
          %363 = vmatpush2.bf16.msra.mxu0 0
          %364 = vmatprep.subr.bf16.mxu0 0
          %365 = vmatpush2.bf16.msra.mxu0 0
          %366 = vmatprep.subr.bf16.mxu0 0
          %367 = vmatpush2.bf16.msra.mxu0 0
          %368 = vmatprep.subr.bf16.mxu0 0
          %369 = vmatpush2.bf16.msra.mxu0 0
          %370 = vmatprep.subr.bf16.mxu0 0
          %371 = vmatpush2.bf16.msra.mxu0 0
          %372 = vmatprep.mubr.bf16.mxu0 0
          %373 = vmatmul.mubr.bf16.gmra.mxu0 %v338
          %v374 = vpop.f32.mrf.mxu0
          %v375 = vadd.f32 %v320, %v374
          %v376 = vpop.f32.mrf.mxu0
          %v377 = vpop.f32.mrf.mxu0
          %v378 = vpop.f32.mrf.mxu0
          %379 = vdwg.mxu0
          %s380 = scalar_lea.vmem [#allocation2], 32
          %v381 = vld [vmem:[%s380] sm:$0xf]
          %v382 = vld [vmem:[%s380 + $0x4] sm:$0xf]
          %v383 = vld [vmem:[%s380 + $0x8] sm:$0xf]
          %v384 = vld [vmem:[%s380 + $0xc] sm:$0xf]
          %v385 = vrot.slane %v261, 1
          %v390 = vunpack.c.l.b16 %v381
          %v391 = vunpack.c.l.b16 %v382
          %v392 = vunpack.c.l.b16 %v383
          %v393 = vunpack.c.l.b16 %v384
          %v394 = vpack.c.b16 %v391, %v390
          %v395 = vpack.c.b16 %v393, %v392
          %v399 = vsel %vm281, %v385, 0
          %401 = vmatprep.subr.bf16.mxu0 0
          %402 = vmatpush1.bf16.msra.mxu0 0
          %403 = vmatprep.subr.bf16.mxu0 0
          %404 = vmatpush1.bf16.msra.mxu0 0
          %405 = vmatprep.subr.bf16.mxu0 0
          %406 = vmatpush1.bf16.msra.mxu0 0
          %407 = vmatprep.subr.bf16.mxu0 0
          %408 = vmatpush1.bf16.msra.mxu0 0
          %409 = vmatprep.subr.bf16.mxu0 0
          %410 = vmatpush1.bf16.msra.mxu0 0
          %411 = vmatprep.subr.bf16.mxu0 0
          %412 = vmatpush1.bf16.msra.mxu0 0
          %413 = vmatprep.subr.bf16.mxu0 0
          %414 = vmatpush1.bf16.msra.mxu0 %v395
          %415 = vmatprep.subr.bf16.mxu0 0
          %416 = vmatpush1.bf16.msra.mxu0 %v394
          %417 = vmatprep.subr.bf16.mxu0 0
          %418 = vmatpush2.bf16.msra.mxu0 0
          %419 = vmatprep.subr.bf16.mxu0 0
          %420 = vmatpush2.bf16.msra.mxu0 0
          %421 = vmatprep.subr.bf16.mxu0 0
          %422 = vmatpush2.bf16.msra.mxu0 0
          %423 = vmatprep.subr.bf16.mxu0 0
          %424 = vmatpush2.bf16.msra.mxu0 0
          %425 = vmatprep.subr.bf16.mxu0 0
          %426 = vmatpush2.bf16.msra.mxu0 0
          %427 = vmatprep.subr.bf16.mxu0 0
          %428 = vmatpush2.bf16.msra.mxu0 0
          %429 = vmatprep.subr.bf16.mxu0 0
          %430 = vmatpush2.bf16.msra.mxu0 0
          %431 = vmatprep.subr.bf16.mxu0 0
          %432 = vmatpush2.bf16.msra.mxu0 0
          %433 = vmatprep.mubr.bf16.mxu0 0
          %434 = vmatmul.mubr.bf16.gmra.mxu0 %v399
          %v435 = vpop.f32.mrf.mxu0
          %v436 = vadd.f32 0.0, %v435
          %v437 = vpop.f32.mrf.mxu0
          %v438 = vpop.f32.mrf.mxu0
          %v439 = vpop.f32.mrf.mxu0
          %440 = vdwg.mxu0
          %v441 = vadd.f32 %v375, %v436
          %s442 = sadd.s32 %s236, 1
          %s443 = smul.u32 %s442, 2
          %s444 = smul.addr %s443, 4
          %s445 = scalar_lea.vmem %s220, %s444
          %v446 = vld [vmem:[%s445] sm:$0xf]
          %v447 = vld [vmem:[%s445 + $0x4] sm:$0x1]
          %s448 = scalar_lea.vmem [#allocation2], 48
          %v449 = vld [vmem:[%s448] sm:$0xf]
          %v450 = vld [vmem:[%s448 + $0x4] sm:$0xf]
          %v451 = vld [vmem:[%s448 + $0x8] sm:$0xf]
          %v452 = vld [vmem:[%s448 + $0xc] sm:$0xf]
          %v457 = vunpack.c.l.b16 %v449
          %v458 = vunpack.c.l.b16 %v450
          %v459 = vunpack.c.l.b16 %v451
          %v460 = vunpack.c.l.b16 %v452
          %v461 = vpack.c.b16 %v458, %v457
          %v462 = vpack.c.b16 %v460, %v459
          %v466 = vsel %vm281, %v446, 0
          %468 = vmatprep.subr.bf16.mxu0 0
          %469 = vmatpush1.bf16.msra.mxu0 0
          %470 = vmatprep.subr.bf16.mxu0 0
          %471 = vmatpush1.bf16.msra.mxu0 0
          %472 = vmatprep.subr.bf16.mxu0 0
          %473 = vmatpush1.bf16.msra.mxu0 0
          %474 = vmatprep.subr.bf16.mxu0 0
          %475 = vmatpush1.bf16.msra.mxu0 0
          %476 = vmatprep.subr.bf16.mxu0 0
          %477 = vmatpush1.bf16.msra.mxu0 0
          %478 = vmatprep.subr.bf16.mxu0 0
          %479 = vmatpush1.bf16.msra.mxu0 0
          %480 = vmatprep.subr.bf16.mxu0 0
          %481 = vmatpush1.bf16.msra.mxu0 %v462
          %482 = vmatprep.subr.bf16.mxu0 0
          %483 = vmatpush1.bf16.msra.mxu0 %v461
          %484 = vmatprep.subr.bf16.mxu0 0
          %485 = vmatpush2.bf16.msra.mxu0 0
          %486 = vmatprep.subr.bf16.mxu0 0
          %487 = vmatpush2.bf16.msra.mxu0 0
          %488 = vmatprep.subr.bf16.mxu0 0
          %489 = vmatpush2.bf16.msra.mxu0 0
          %490 = vmatprep.subr.bf16.mxu0 0
          %491 = vmatpush2.bf16.msra.mxu0 0
          %492 = vmatprep.subr.bf16.mxu0 0
          %493 = vmatpush2.bf16.msra.mxu0 0
          %494 = vmatprep.subr.bf16.mxu0 0
          %495 = vmatpush2.bf16.msra.mxu0 0
          %496 = vmatprep.subr.bf16.mxu0 0
          %497 = vmatpush2.bf16.msra.mxu0 0
          %498 = vmatprep.subr.bf16.mxu0 0
          %499 = vmatpush2.bf16.msra.mxu0 0
          %500 = vmatprep.mubr.bf16.mxu0 0
          %501 = vmatmul.mubr.bf16.gmra.mxu0 %v466
          %v502 = vpop.f32.mrf.mxu0
          %v503 = vadd.f32 0.0, %v502
          %v504 = vpop.f32.mrf.mxu0
          %v505 = vpop.f32.mrf.mxu0
          %v506 = vpop.f32.mrf.mxu0
          %507 = vdwg.mxu0
          %v508 = vadd.f32 %v441, %v503
          %s509 = scalar_lea.vmem [#allocation2], 64
          %v510 = vld [vmem:[%s509] sm:$0xf]
          %v511 = vld [vmem:[%s509 + $0x4] sm:$0xf]
          %v512 = vld [vmem:[%s509 + $0x8] sm:$0xf]
          %v513 = vld [vmem:[%s509 + $0xc] sm:$0xf]
          %v516 = vunpack.c.l.b16 %v446
          %v517 = vunpack.c.l.b16 %v447
          %v518 = vpack.c.b16 %v517, %v516
          %v520 = vshrl.u32 %v518, 16
          %v522 = vshll.u32 %v518, 16
          %v524 = vrot.slane %v522, 1
          %v525 = vor.u32 %v520, %v524
          %v530 = vunpack.c.l.b16 %v510
          %v531 = vunpack.c.l.b16 %v511
          %v532 = vunpack.c.l.b16 %v512
          %v533 = vunpack.c.l.b16 %v513
          %v534 = vpack.c.b16 %v531, %v530
          %v535 = vpack.c.b16 %v533, %v532
          %v539 = vsel %vm281, %v525, 0
          %541 = vmatprep.subr.bf16.mxu0 0
          %542 = vmatpush1.bf16.msra.mxu0 0
          %543 = vmatprep.subr.bf16.mxu0 0
          %544 = vmatpush1.bf16.msra.mxu0 0
          %545 = vmatprep.subr.bf16.mxu0 0
          %546 = vmatpush1.bf16.msra.mxu0 0
          %547 = vmatprep.subr.bf16.mxu0 0
          %548 = vmatpush1.bf16.msra.mxu0 0
          %549 = vmatprep.subr.bf16.mxu0 0
          %550 = vmatpush1.bf16.msra.mxu0 0
          %551 = vmatprep.subr.bf16.mxu0 0
          %552 = vmatpush1.bf16.msra.mxu0 0
          %553 = vmatprep.subr.bf16.mxu0 0
          %554 = vmatpush1.bf16.msra.mxu0 %v535
          %555 = vmatprep.subr.bf16.mxu0 0
          %556 = vmatpush1.bf16.msra.mxu0 %v534
          %557 = vmatprep.subr.bf16.mxu0 0
          %558 = vmatpush2.bf16.msra.mxu0 0
          %559 = vmatprep.subr.bf16.mxu0 0
          %560 = vmatpush2.bf16.msra.mxu0 0
          %561 = vmatprep.subr.bf16.mxu0 0
          %562 = vmatpush2.bf16.msra.mxu0 0
          %563 = vmatprep.subr.bf16.mxu0 0
          %564 = vmatpush2.bf16.msra.mxu0 0
          %565 = vmatprep.subr.bf16.mxu0 0
          %566 = vmatpush2.bf16.msra.mxu0 0
          %567 = vmatprep.subr.bf16.mxu0 0
          %568 = vmatpush2.bf16.msra.mxu0 0
          %569 = vmatprep.subr.bf16.mxu0 0
          %570 = vmatpush2.bf16.msra.mxu0 0
          %571 = vmatprep.subr.bf16.mxu0 0
          %572 = vmatpush2.bf16.msra.mxu0 0
          %573 = vmatprep.mubr.bf16.mxu0 0
          %574 = vmatmul.mubr.bf16.gmra.mxu0 %v539
          %v575 = vpop.f32.mrf.mxu0
          %v576 = vadd.f32 0.0, %v575
          %v577 = vpop.f32.mrf.mxu0
          %v578 = vpop.f32.mrf.mxu0
          %v579 = vpop.f32.mrf.mxu0
          %580 = vdwg.mxu0
          %v581 = vadd.f32 %v508, %v576
          %s582 = scalar_lea.vmem [#allocation2], 80
          %v583 = vld [vmem:[%s582] sm:$0xf]
          %v584 = vld [vmem:[%s582 + $0x4] sm:$0xf]
          %v585 = vld [vmem:[%s582 + $0x8] sm:$0xf]
          %v586 = vld [vmem:[%s582 + $0xc] sm:$0xf]
          %v587 = vrot.slane %v518, 1
          %v592 = vunpack.c.l.b16 %v583
          %v593 = vunpack.c.l.b16 %v584
          %v594 = vunpack.c.l.b16 %v585
          %v595 = vunpack.c.l.b16 %v586
          %v596 = vpack.c.b16 %v593, %v592
          %v597 = vpack.c.b16 %v595, %v594
          %v601 = vsel %vm281, %v587, 0
          %603 = vmatprep.subr.bf16.mxu0 0
          %604 = vmatpush1.bf16.msra.mxu0 0
          %605 = vmatprep.subr.bf16.mxu0 0
          %606 = vmatpush1.bf16.msra.mxu0 0
          %607 = vmatprep.subr.bf16.mxu0 0
          %608 = vmatpush1.bf16.msra.mxu0 0
          %609 = vmatprep.subr.bf16.mxu0 0
          %610 = vmatpush1.bf16.msra.mxu0 0
          %611 = vmatprep.subr.bf16.mxu0 0
          %612 = vmatpush1.bf16.msra.mxu0 0
          %613 = vmatprep.subr.bf16.mxu0 0
          %614 = vmatpush1.bf16.msra.mxu0 0
          %615 = vmatprep.subr.bf16.mxu0 0
          %616 = vmatpush1.bf16.msra.mxu0 %v597
          %617 = vmatprep.subr.bf16.mxu0 0
          %618 = vmatpush1.bf16.msra.mxu0 %v596
          %619 = vmatprep.subr.bf16.mxu0 0
          %620 = vmatpush2.bf16.msra.mxu0 0
          %621 = vmatprep.subr.bf16.mxu0 0
          %622 = vmatpush2.bf16.msra.mxu0 0
          %623 = vmatprep.subr.bf16.mxu0 0
          %624 = vmatpush2.bf16.msra.mxu0 0
          %625 = vmatprep.subr.bf16.mxu0 0
          %626 = vmatpush2.bf16.msra.mxu0 0
          %627 = vmatprep.subr.bf16.mxu0 0
          %628 = vmatpush2.bf16.msra.mxu0 0
          %629 = vmatprep.subr.bf16.mxu0 0
          %630 = vmatpush2.bf16.msra.mxu0 0
          %631 = vmatprep.subr.bf16.mxu0 0
          %632 = vmatpush2.bf16.msra.mxu0 0
          %633 = vmatprep.subr.bf16.mxu0 0
          %634 = vmatpush2.bf16.msra.mxu0 0
          %635 = vmatprep.mubr.bf16.mxu0 0
          %636 = vmatmul.mubr.bf16.gmra.mxu0 %v601
          %v637 = vpop.f32.mrf.mxu0
          %v638 = vadd.f32 0.0, %v637
          %v639 = vpop.f32.mrf.mxu0
          %v640 = vpop.f32.mrf.mxu0
          %v641 = vpop.f32.mrf.mxu0
          %642 = vdwg.mxu0
          %v643 = vadd.f32 %v581, %v638
          %s644 = sadd.s32 %s236, 2
          %s645 = smul.u32 %s644, 2
          %s646 = smul.addr %s645, 4
          %s647 = scalar_lea.vmem %s220, %s646
          %v648 = vld [vmem:[%s647] sm:$0xf]
          %v649 = vld [vmem:[%s647 + $0x4] sm:$0x1]
          %s650 = scalar_lea.vmem [#allocation2], 96
          %v651 = vld [vmem:[%s650] sm:$0xf]
          %v652 = vld [vmem:[%s650 + $0x4] sm:$0xf]
          %v653 = vld [vmem:[%s650 + $0x8] sm:$0xf]
          %v654 = vld [vmem:[%s650 + $0xc] sm:$0xf]
          %v659 = vunpack.c.l.b16 %v651
          %v660 = vunpack.c.l.b16 %v652
          %v661 = vunpack.c.l.b16 %v653
          %v662 = vunpack.c.l.b16 %v654
          %v663 = vpack.c.b16 %v660, %v659
          %v664 = vpack.c.b16 %v662, %v661
          %v668 = vsel %vm281, %v648, 0
          %670 = vmatprep.subr.bf16.mxu0 0
          %671 = vmatpush1.bf16.msra.mxu0 0
          %672 = vmatprep.subr.bf16.mxu0 0
          %673 = vmatpush1.bf16.msra.mxu0 0
          %674 = vmatprep.subr.bf16.mxu0 0
          %675 = vmatpush1.bf16.msra.mxu0 0
          %676 = vmatprep.subr.bf16.mxu0 0
          %677 = vmatpush1.bf16.msra.mxu0 0
          %678 = vmatprep.subr.bf16.mxu0 0
          %679 = vmatpush1.bf16.msra.mxu0 0
          %680 = vmatprep.subr.bf16.mxu0 0
          %681 = vmatpush1.bf16.msra.mxu0 0
          %682 = vmatprep.subr.bf16.mxu0 0
          %683 = vmatpush1.bf16.msra.mxu0 %v664
          %684 = vmatprep.subr.bf16.mxu0 0
          %685 = vmatpush1.bf16.msra.mxu0 %v663
          %686 = vmatprep.subr.bf16.mxu0 0
          %687 = vmatpush2.bf16.msra.mxu0 0
          %688 = vmatprep.subr.bf16.mxu0 0
          %689 = vmatpush2.bf16.msra.mxu0 0
          %690 = vmatprep.subr.bf16.mxu0 0
          %691 = vmatpush2.bf16.msra.mxu0 0
          %692 = vmatprep.subr.bf16.mxu0 0
          %693 = vmatpush2.bf16.msra.mxu0 0
          %694 = vmatprep.subr.bf16.mxu0 0
          %695 = vmatpush2.bf16.msra.mxu0 0
          %696 = vmatprep.subr.bf16.mxu0 0
          %697 = vmatpush2.bf16.msra.mxu0 0
          %698 = vmatprep.subr.bf16.mxu0 0
          %699 = vmatpush2.bf16.msra.mxu0 0
          %700 = vmatprep.subr.bf16.mxu0 0
          %701 = vmatpush2.bf16.msra.mxu0 0
          %702 = vmatprep.mubr.bf16.mxu0 0
          %703 = vmatmul.mubr.bf16.gmra.mxu0 %v668
          %v704 = vpop.f32.mrf.mxu0
          %v705 = vadd.f32 0.0, %v704
          %v706 = vpop.f32.mrf.mxu0
          %v707 = vpop.f32.mrf.mxu0
          %v708 = vpop.f32.mrf.mxu0
          %709 = vdwg.mxu0
          %v710 = vadd.f32 %v643, %v705
          %s711 = scalar_lea.vmem [#allocation2], 112
          %v712 = vld [vmem:[%s711] sm:$0xf]
          %v713 = vld [vmem:[%s711 + $0x4] sm:$0xf]
          %v714 = vld [vmem:[%s711 + $0x8] sm:$0xf]
          %v715 = vld [vmem:[%s711 + $0xc] sm:$0xf]
          %v718 = vunpack.c.l.b16 %v648
          %v719 = vunpack.c.l.b16 %v649
          %v720 = vpack.c.b16 %v719, %v718
          %v722 = vshrl.u32 %v720, 16
          %v724 = vshll.u32 %v720, 16
          %v726 = vrot.slane %v724, 1
          %v727 = vor.u32 %v722, %v726
          %v732 = vunpack.c.l.b16 %v712
          %v733 = vunpack.c.l.b16 %v713
          %v734 = vunpack.c.l.b16 %v714
          %v735 = vunpack.c.l.b16 %v715
          %v736 = vpack.c.b16 %v733, %v732
          %v737 = vpack.c.b16 %v735, %v734
          %v741 = vsel %vm281, %v727, 0
          %743 = vmatprep.subr.bf16.mxu0 0
          %744 = vmatpush1.bf16.msra.mxu0 0
          %745 = vmatprep.subr.bf16.mxu0 0
          %746 = vmatpush1.bf16.msra.mxu0 0
          %747 = vmatprep.subr.bf16.mxu0 0
          %748 = vmatpush1.bf16.msra.mxu0 0
          %749 = vmatprep.subr.bf16.mxu0 0
          %750 = vmatpush1.bf16.msra.mxu0 0
          %751 = vmatprep.subr.bf16.mxu0 0
          %752 = vmatpush1.bf16.msra.mxu0 0
          %753 = vmatprep.subr.bf16.mxu0 0
          %754 = vmatpush1.bf16.msra.mxu0 0
          %755 = vmatprep.subr.bf16.mxu0 0
          %756 = vmatpush1.bf16.msra.mxu0 %v737
          %757 = vmatprep.subr.bf16.mxu0 0
          %758 = vmatpush1.bf16.msra.mxu0 %v736
          %759 = vmatprep.subr.bf16.mxu0 0
          %760 = vmatpush2.bf16.msra.mxu0 0
          %761 = vmatprep.subr.bf16.mxu0 0
          %762 = vmatpush2.bf16.msra.mxu0 0
          %763 = vmatprep.subr.bf16.mxu0 0
          %764 = vmatpush2.bf16.msra.mxu0 0
          %765 = vmatprep.subr.bf16.mxu0 0
          %766 = vmatpush2.bf16.msra.mxu0 0
          %767 = vmatprep.subr.bf16.mxu0 0
          %768 = vmatpush2.bf16.msra.mxu0 0
          %769 = vmatprep.subr.bf16.mxu0 0
          %770 = vmatpush2.bf16.msra.mxu0 0
          %771 = vmatprep.subr.bf16.mxu0 0
          %772 = vmatpush2.bf16.msra.mxu0 0
          %773 = vmatprep.subr.bf16.mxu0 0
          %774 = vmatpush2.bf16.msra.mxu0 0
          %775 = vmatprep.mubr.bf16.mxu0 0
          %776 = vmatmul.mubr.bf16.gmra.mxu0 %v741
          %v777 = vpop.f32.mrf.mxu0
          %v778 = vadd.f32 0.0, %v777
          %v779 = vpop.f32.mrf.mxu0
          %v780 = vpop.f32.mrf.mxu0
          %v781 = vpop.f32.mrf.mxu0
          %782 = vdwg.mxu0
          %v783 = vadd.f32 %v710, %v778
          %s784 = scalar_lea.vmem [#allocation2], 128
          %v785 = vld [vmem:[%s784] sm:$0xf]
          %v786 = vld [vmem:[%s784 + $0x4] sm:$0xf]
          %v787 = vld [vmem:[%s784 + $0x8] sm:$0xf]
          %v788 = vld [vmem:[%s784 + $0xc] sm:$0xf]
          %v789 = vrot.slane %v720, 1
          %v794 = vunpack.c.l.b16 %v785
          %v795 = vunpack.c.l.b16 %v786
          %v796 = vunpack.c.l.b16 %v787
          %v797 = vunpack.c.l.b16 %v788
          %v798 = vpack.c.b16 %v795, %v794
          %v799 = vpack.c.b16 %v797, %v796
          %v803 = vsel %vm281, %v789, 0
          %805 = vmatprep.subr.bf16.mxu0 0
          %806 = vmatpush1.bf16.msra.mxu0 0
          %807 = vmatprep.subr.bf16.mxu0 0
          %808 = vmatpush1.bf16.msra.mxu0 0
          %809 = vmatprep.subr.bf16.mxu0 0
          %810 = vmatpush1.bf16.msra.mxu0 0
          %811 = vmatprep.subr.bf16.mxu0 0
          %812 = vmatpush1.bf16.msra.mxu0 0
          %813 = vmatprep.subr.bf16.mxu0 0
          %814 = vmatpush1.bf16.msra.mxu0 0
          %815 = vmatprep.subr.bf16.mxu0 0
          %816 = vmatpush1.bf16.msra.mxu0 0
          %817 = vmatprep.subr.bf16.mxu0 0
          %818 = vmatpush1.bf16.msra.mxu0 %v799
          %819 = vmatprep.subr.bf16.mxu0 0
          %820 = vmatpush1.bf16.msra.mxu0 %v798
          %821 = vmatprep.subr.bf16.mxu0 0
          %822 = vmatpush2.bf16.msra.mxu0 0
          %823 = vmatprep.subr.bf16.mxu0 0
          %824 = vmatpush2.bf16.msra.mxu0 0
          %825 = vmatprep.subr.bf16.mxu0 0
          %826 = vmatpush2.bf16.msra.mxu0 0
          %827 = vmatprep.subr.bf16.mxu0 0
          %828 = vmatpush2.bf16.msra.mxu0 0
          %829 = vmatprep.subr.bf16.mxu0 0
          %830 = vmatpush2.bf16.msra.mxu0 0
          %831 = vmatprep.subr.bf16.mxu0 0
          %832 = vmatpush2.bf16.msra.mxu0 0
          %833 = vmatprep.subr.bf16.mxu0 0
          %834 = vmatpush2.bf16.msra.mxu0 0
          %835 = vmatprep.subr.bf16.mxu0 0
          %836 = vmatpush2.bf16.msra.mxu0 0
          %837 = vmatprep.mubr.bf16.mxu0 0
          %838 = vmatmul.mubr.bf16.gmra.mxu0 %v803
          %v839 = vpop.f32.mrf.mxu0
          %v840 = vadd.f32 0.0, %v839
          %v841 = vpop.f32.mrf.mxu0
          %v842 = vpop.f32.mrf.mxu0
          %v843 = vpop.f32.mrf.mxu0
          %844 = vdwg.mxu0
          %v845 = vadd.f32 %v783, %v840
          %v846 = vpack.c.bf16 %v845, %v845
          %s847 = smul.addr %s236, 4
          %s848 = scalar_lea.vmem %s225, %s847
          %849 = vst [vmem:[%s848] sm:$0xf] %v846
          %v850 = vrot.slane %v845, 4
          %v851 = vadd.f32 %v845, %v850
          %v852 = vrot.slane %v851, 2
          %v853 = vadd.f32 %v851, %v852
          %v854 = vrot.slane %v853, 1
          %v855 = vadd.f32 %v853, %v854
          %v856 = vadd.f32 %v241, %v855
          %v857 = vmul.f32 %v845, %v845
          %v858 = vrot.slane %v857, 4
          %v859 = vadd.f32 %v857, %v858
          %v860 = vrot.slane %v859, 2
          %v861 = vadd.f32 %v859, %v860
          %v862 = vrot.slane %v861, 1
          %v863 = vadd.f32 %v861, %v862
          %v864 = vadd.f32 %v242, %v863
        $region37: #{_lambda_.7} parent=27 // loop_footer
          %s240 = sadd.s32 1, %s236
        $region38: #{_lambda_.7} parent=27 // loop_footer_branch
          %235 = sbr.rel target = $region34
        $region39: #{_lambda_.7} parent=27 // loop_exit
          _
        %865 = vst [vmem:[%s229] sm:$0xff] %v241
        %866 = vst [vmem:[%s233] sm:$0xff] %v242
        %p867 = scmp.lt.s32.totalorder %s17, 1
        %s868 = scalar_select %p867, %s17, 1
        %s869 = smul.addr %s868, 8
        %s870 = smul.addr %s869, 4
        %s871 = scalar_lea.vmem %s2, %s870
        %p872 = scmp.lt.s32.totalorder %s17, 1
        %s873 = scalar_select %p872, %s17, 1
        %s874 = smul.addr %s873, 8
        %s875 = scalar_lea.vmem %s3, %s874
        %p876 = scmp.lt.s32.totalorder %s17, 1
        %s877 = scalar_select %p876, %s17, 1
        %s878 = smul.addr %s877, 8
        %s879 = scalar_lea.vmem %s4, %s878
        // Predicated region
        $region40: #{_lambda_.7} parent=27 // pred_check
          %p880 = pneg %p82
        $region41: #{_lambda_.7} parent=27 // pred_check_branch
          %882 = sbr.rel (%p880) target = $region43
        $region42: #{_lambda_.7} parent=27 // pred_region
          _
        $region43: #{_lambda_.7} parent=27 // pred_fallthru
          _
        // Predicated region
        $region44: #{_lambda_.7} parent=27 // pred_check
          %p883 = pneg %p108
        $region45: #{_lambda_.7} parent=27 // pred_check_branch
          %885 = sbr.rel (%p883) target = $region47
        $region46: #{_lambda_.7} parent=27 // pred_region
          _
        $region47: #{_lambda_.7} parent=27 // pred_fallthru
          _
        // Predicated region
        $region48: #{_lambda_.7} parent=27 // pred_check
          %p886 = pneg %p134
        $region49: #{_lambda_.7} parent=27 // pred_check_branch
          %888 = sbr.rel (%p886) target = $region51
        $region50: #{_lambda_.7} parent=27 // pred_region
          _
        $region51: #{_lambda_.7} parent=27 // pred_fallthru
          _
      $region28: #{_lambda_.7} parent=5 // pred_fallthru
        _
      %p889 = scmp.le.s32.totalorder 2, %s12
      // Predicated region
      $region52: #{_lambda_.7} parent=5 // pred_check
        %p890 = pneg %p889
      $region53: #{_lambda_.7} parent=5 // pred_check_branch
        %892 = sbr.rel (%p890) target = $region55
      $region54: #{_lambda_.7} parent=5 // pred_region
        %s893 = ssub.s32 %s12, 2
        // Predicated region
        $region56: #{_lambda_.7} parent=54 // pred_check
          %p894 = pneg %p88
        $region57: #{_lambda_.7} parent=54 // pred_check_branch
          %896 = sbr.rel (%p894) target = $region59
        $region58: #{_lambda_.7} parent=54 // pred_region
          %p897 = scmp.lt.s32.totalorder %s18, 1
          %s898 = scalar_select %p897, %s18, 1
          %s899 = smul.addr %s898, 8
          %s900 = smul.addr %s899, 4
          %s901 = scalar_lea.vmem %s2, %s900
        $region59: #{_lambda_.7} parent=54 // pred_fallthru
          _
        // Predicated region
        $region60: #{_lambda_.7} parent=54 // pred_check
          %p902 = pneg %p114
        $region61: #{_lambda_.7} parent=54 // pred_check_branch
          %904 = sbr.rel (%p902) target = $region63
        $region62: #{_lambda_.7} parent=54 // pred_region
          %p905 = scmp.lt.s32.totalorder %s18, 1
          %s906 = scalar_select %p905, %s18, 1
          %s907 = smul.addr %s906, 8
          %s908 = scalar_lea.vmem %s3, %s907
        $region63: #{_lambda_.7} parent=54 // pred_fallthru
          _
        // Predicated region
        $region64: #{_lambda_.7} parent=54 // pred_check
          %p909 = pneg %p140
        $region65: #{_lambda_.7} parent=54 // pred_check_branch
          %911 = sbr.rel (%p909) target = $region67
        $region66: #{_lambda_.7} parent=54 // pred_region
          %p912 = scmp.lt.s32.totalorder %s18, 1
          %s913 = scalar_select %p912, %s18, 1
          %s914 = smul.addr %s913, 8
          %s915 = scalar_lea.vmem %s4, %s914
        $region67: #{_lambda_.7} parent=54 // pred_fallthru
          _
      $region55: #{_lambda_.7} parent=5 // pred_fallthru
        _
    $region6: #{_lambda_.7} parent=1 // loop_footer
      %s16 = sadd.s32 1, %s12
    $region7: #{_lambda_.7} parent=1 // loop_footer_branch
      %11 = sbr.rel target = $region3
    $region8: #{_lambda_.7} parent=1 // loop_exit
      _
    %916 = vsyncpa [#allocation3], 1
    %s917 = scalar_lea.sflag [#allocation3], 1
    %918 = vsyncpa %s917, 1

// kernel: _lambda_.8
$region0: #{_lambda_.8}
  #allocation0 [shape = 'u32[]', space=smem, size = 0x4, offset = 0x4, fixed_abs, tag = 'smem constant byte address 0x4 - core index']
  #allocation1 [shape = 'u32[144,128]{1,0:T(1,128)}', space=vmem, size = 0x12000, scoped, tag = 'internal scratch']
  %s0 = inlined_call_operand.vmem [shape: bf16[2,18,18,16], index: 0, kind: input, shape index: {}]
  %s1 = inlined_call_operand.hbm [shape: bf16[9,16,128], index: 1, kind: input, shape index: {}]
  %s2 = inlined_call_operand.vmem [shape: bf16[2,16,16,128], index: 2, kind: output, shape index: {0}]
  %s3 = inlined_call_operand.vmem [shape: f32[2,8,128], index: 3, kind: output, shape index: {1}]
  %s4 = inlined_call_operand.vmem [shape: f32[2,8,128], index: 4, kind: output, shape index: {2}]
  %5 = xla_tuple %s2, %s3, %s4
  %s6 = sld [smem:[#allocation0]]
  $region68: #{_lambda_.8} parent=0
    _
  %s8 = ssub.s32 1, %s6
  %s9 = scalar_select 0, %s8, %s6
  $region1: #{_lambda_.8} parent=0
    #allocation2 [shape = 'u8[36864]{0}', space=vmem, size = 0x9000, scoped, tag = 'input window, operand 1, single buffered']
    #allocation3 [shape = 's32[2]{0}', space=sflag, size = 0x8, scoped, tag = 'scoped memory for _lambda_.8']
    %10 = vsyncpa [#allocation3], 0
    loop: start=0, step=1, limit=4
    $region2: #{_lambda_.8} parent=1 // loop_pre_header
      _
    $region3: #{_lambda_.8} parent=1 // loop_header
      %s12 = sphi 0, %s16
      %p13 = scmp.ge.s32.totalorder %s12, 4
      %s22 = sphi 0, %s24
      %s25 = sphi 0, %s22
      %s26 = sphi 0, %s25
      %s42 = sphi 0, %s26
      %s46 = sphi 0, %s46
      %s48 = sphi 0, %s46
      %s49 = sphi 0, %s48
      %s63 = sphi 0, %s49
      %s69 = sphi 0, %s71
      %s72 = sphi 0, %s69
      %s73 = sphi 0, %s72
      %s89 = sphi 0, %s73
      %s95 = sphi 0, %s97
      %s98 = sphi 0, %s95
      %s99 = sphi 0, %s98
      %s115 = sphi 0, %s99
      %s121 = sphi 0, %s123
      %s124 = sphi 0, %s121
      %s125 = sphi 0, %s124
      %s141 = sphi 0, %s125
    $region4: #{_lambda_.8} parent=1 // loop_header_branch
      %15 = sbr.rel (%p13) target = $region8
    $region5: #{_lambda_.8} parent=1 // loop_body
      %s17 = ssub.s32 %s12, 1
      %s18 = ssub.s32 %s12, 2
      %s19 = sadd.s32 %s12, 1
      %s20 = ssub.s32 %s12, %s19
      %p21 = scmp.eq.s32.totalorder %s20, 0
      %s23 = sadd.s32 %s22, 1
      %s24 = scalar_select %p21, %s22, %s23
      %p27 = pneg %p21
      %p28 = scmp.eq.s32.totalorder %s12, 1
      %p29 = por %p27, %p28
      %p30 = scmp.ne.s32.totalorder %s22, %s25
      %p31 = scmp.eq.s32.totalorder %s12, 0
      %p32 = por %p30, %p31
      %p33 = scmp.ne.s32.totalorder %s22, %s25
      %p34 = scmp.eq.s32.totalorder %s17, 1
      %p35 = por %p33, %p34
      %p36 = scmp.ne.s32.totalorder %s25, %s26
      %p37 = scmp.eq.s32.totalorder %s17, 0
      %p38 = por %p36, %p37
      %p39 = scmp.ne.s32.totalorder %s25, %s26
      %p40 = scmp.eq.s32.totalorder %s18, 1
      %p41 = por %p39, %p40
      %p43 = scmp.ne.s32.totalorder %s26, %s42
      %p44 = scmp.eq.s32.totalorder %s18, 0
      %p45 = por %p43, %p44
      %s47 = sadd.s32 %s46, 1
      %p50 = scmp.eq.s32.totalorder %s12, 1
      %p51 = scmp.ne.s32.totalorder %s46, %s48
      %p52 = scmp.eq.s32.totalorder %s12, 0
      %p53 = por %p51, %p52
      %p54 = scmp.ne.s32.totalorder %s46, %s48
      %p55 = scmp.eq.s32.totalorder %s17, 1
      %p56 = por %p54, %p55
      %p57 = scmp.ne.s32.totalorder %s48, %s49
      %p58 = scmp.eq.s32.totalorder %s17, 0
      %p59 = por %p57, %p58
      %p60 = scmp.ne.s32.totalorder %s48, %s49
      %p61 = scmp.eq.s32.totalorder %s18, 1
      %p62 = por %p60, %p61
      %p64 = scmp.ne.s32.totalorder %s49, %s63
      %p65 = scmp.eq.s32.totalorder %s18, 0
      %p66 = por %p64, %p65
      %s67 = ssub.s32 %s12, %s19
      %p68 = scmp.eq.s32.totalorder %s67, 0
      %s70 = sadd.s32 %s69, 1
      %s71 = scalar_select %p68, %s69, %s70
      %p74 = pneg %p68
      %p75 = scmp.eq.s32.totalorder %s12, 1
      %p76 = por %p74, %p75
      %p77 = scmp.ne.s32.totalorder %s69, %s72
      %p78 = scmp.eq.s32.totalorder %s12, 0
      %p79 = por %p77, %p78
      %p80 = scmp.ne.s32.totalorder %s69, %s72
      %p81 = scmp.eq.s32.totalorder %s17, 1
      %p82 = por %p80, %p81
      %p83 = scmp.ne.s32.totalorder %s72, %s73
      %p84 = scmp.eq.s32.totalorder %s17, 0
      %p85 = por %p83, %p84
      %p86 = scmp.ne.s32.totalorder %s72, %s73
      %p87 = scmp.eq.s32.totalorder %s18, 1
      %p88 = por %p86, %p87
      %p90 = scmp.ne.s32.totalorder %s73, %s89
      %p91 = scmp.eq.s32.totalorder %s18, 0
      %p92 = por %p90, %p91
      %s93 = ssub.s32 %s12, %s19
      %p94 = scmp.eq.s32.totalorder %s93, 0
      %s96 = sadd.s32 %s95, 1
      %s97 = scalar_select %p94, %s95, %s96
      %p100 = pneg %p94
      %p101 = scmp.eq.s32.totalorder %s12, 1
      %p102 = por %p100, %p101
      %p103 = scmp.ne.s32.totalorder %s95, %s98
      %p104 = scmp.eq.s32.totalorder %s12, 0
      %p105 = por %p103, %p104
      %p106 = scmp.ne.s32.totalorder %s95, %s98
      %p107 = scmp.eq.s32.totalorder %s17, 1
      %p108 = por %p106, %p107
      %p109 = scmp.ne.s32.totalorder %s98, %s99
      %p110 = scmp.eq.s32.totalorder %s17, 0
      %p111 = por %p109, %p110
      %p112 = scmp.ne.s32.totalorder %s98, %s99
      %p113 = scmp.eq.s32.totalorder %s18, 1
      %p114 = por %p112, %p113
      %p116 = scmp.ne.s32.totalorder %s99, %s115
      %p117 = scmp.eq.s32.totalorder %s18, 0
      %p118 = por %p116, %p117
      %s119 = ssub.s32 %s12, %s19
      %p120 = scmp.eq.s32.totalorder %s119, 0
      %s122 = sadd.s32 %s121, 1
      %s123 = scalar_select %p120, %s121, %s122
      %p126 = pneg %p120
      %p127 = scmp.eq.s32.totalorder %s12, 1
      %p128 = por %p126, %p127
      %p129 = scmp.ne.s32.totalorder %s121, %s124
      %p130 = scmp.eq.s32.totalorder %s12, 0
      %p131 = por %p129, %p130
      %p132 = scmp.ne.s32.totalorder %s121, %s124
      %p133 = scmp.eq.s32.totalorder %s17, 1
      %p134 = por %p132, %p133
      %p135 = scmp.ne.s32.totalorder %s124, %s125
      %p136 = scmp.eq.s32.totalorder %s17, 0
      %p137 = por %p135, %p136
      %p138 = scmp.ne.s32.totalorder %s124, %s125
      %p139 = scmp.eq.s32.totalorder %s18, 1
      %p140 = por %p138, %p139
      %p142 = scmp.ne.s32.totalorder %s125, %s141
      %p143 = scmp.eq.s32.totalorder %s18, 0
      %p144 = por %p142, %p143
      %p145 = scmp.le.s32.totalorder 1, %s12
      %p146 = scmp.lt.s32.totalorder %s12, 3
      %p147 = pnand %p145, %p146
      %p148 = pneg %p147
      // Predicated region
      $region9: #{_lambda_.8} parent=5 // pred_check
        _
      $region10: #{_lambda_.8} parent=5 // pred_check_branch
        %150 = sbr.rel (%p147) target = $region12
      $region11: #{_lambda_.8} parent=5 // pred_region
        %s151 = ssub.s32 %s12, 1
        // Predicated region
        $region13: #{_lambda_.8} parent=11 // pred_check
          %p152 = pneg %p59
        $region14: #{_lambda_.8} parent=11 // pred_check_branch
          %154 = sbr.rel (%p152) target = $region16
        $region15: #{_lambda_.8} parent=11 // pred_region
          %s156 = ssub.s32 1152, 1152
          %157 = vsyncadd [#allocation3], %s156
          %s158 = sshll.u32 [#allocation2], 4
          %s159 = int_to_ptr.vmem [resolvable:$true] %s158
          %164 = dma.hbm_to_vmem [thread:$0]  %s1, 1152, %s159, [#allocation3], 64, 64, 4
        $region16: #{_lambda_.8} parent=11 // pred_fallthru
          _
      $region12: #{_lambda_.8} parent=5 // pred_fallthru
        _
      %p165 = scmp.lt.s32.totalorder %s12, 2
      // Predicated region
      $region17: #{_lambda_.8} parent=5 // pred_check
        %p166 = pneg %p165
      $region18: #{_lambda_.8} parent=5 // pred_check_branch
        %168 = sbr.rel (%p166) target = $region20
      $region19: #{_lambda_.8} parent=5 // pred_region
        // Predicated region
        $region21: #{_lambda_.8} parent=19 // pred_check
          %p169 = pneg %p32
        $region22: #{_lambda_.8} parent=19 // pred_check_branch
          %171 = sbr.rel (%p169) target = $region24
        $region23: #{_lambda_.8} parent=19 // pred_region
          %p172 = scmp.lt.s32.totalorder %s12, 1
          %s173 = scalar_select %p172, %s12, 1
          %s174 = smul.addr %s173, 54
          %s175 = smul.addr %s174, 4
          %s176 = scalar_lea.vmem %s0, %s175
        $region24: #{_lambda_.8} parent=19 // pred_fallthru
          _
      $region20: #{_lambda_.8} parent=5 // pred_fallthru
        _
      %p177 = scmp.le.s32.totalorder 1, %s12
      %p178 = scmp.lt.s32.totalorder %s12, 3
      %p179 = pnand %p177, %p178
      %p180 = pneg %p179
      // Predicated region
      $region25: #{_lambda_.8} parent=5 // pred_check
        _
      $region26: #{_lambda_.8} parent=5 // pred_check_branch
        %182 = sbr.rel (%p179) target = $region28
      $region27: #{_lambda_.8} parent=5 // pred_region
        %s183 = ssub.s32 %s12, 1
        // Predicated region
        $region29: #{_lambda_.8} parent=27 // pred_check
          %p184 = pneg %p59
        $region30: #{_lambda_.8} parent=27 // pred_check_branch
          %186 = sbr.rel (%p184) target = $region32
        $region31: #{_lambda_.8} parent=27 // pred_region
          %187 = dma.done [#allocation3], 1152
        $region32: #{_lambda_.8} parent=27 // pred_fallthru
          _
        %p188 = scmp.lt.s32.totalorder %s17, 1
        %s189 = scalar_select %p188, %s17, 1
        %s190 = smul.addr %s189, 54
        %s191 = smul.addr %s190, 4
        %s192 = scalar_lea.vmem %s0, %s191
        %p193 = pneg %p38
        %p194 = pneg %p35
        %p195 = pneg %p59
        %p196 = pneg %p56
        %p197 = pneg %p85
        %p198 = pneg %p82
        %p199 = scmp.lt.s32.totalorder %s17, 1
        %s200 = scalar_select %p199, %s17, 1
        %s201 = smul.addr %s200, 32
        %s202 = smul.addr %s201, 4
        %s203 = scalar_lea.vmem %s2, %s202
        %p204 = pneg %p111
        %p205 = pneg %p108
        %p206 = scmp.lt.s32.totalorder %s17, 1
        %s207 = scalar_select %p206, %s17, 1
        %s208 = smul.addr %s207, 8
        %s209 = scalar_lea.vmem %s3, %s208
        %p210 = pneg %p137
        %p211 = pneg %p134
        %p212 = scmp.lt.s32.totalorder %s17, 1
        %s213 = scalar_select %p212, %s17, 1
        %s214 = smul.addr %s213, 8
        %s215 = scalar_lea.vmem %s4, %s214
        %p216 = scmp.lt.s32.totalorder %s17, 1
        %s217 = scalar_select %p216, %s17, 1
        %s218 = smul.addr %s217, 54
        %s219 = smul.addr %s218, 4
        %s220 = scalar_lea.vmem %s0, %s219
        %p221 = scmp.lt.s32.totalorder %s17, 1
        %s222 = scalar_select %p221, %s17, 1
        %s223 = smul.addr %s222, 32
        %s224 = smul.addr %s223, 4
        %s225 = scalar_lea.vmem %s2, %s224
        %p226 = scmp.lt.s32.totalorder %s17, 1
        %s227 = scalar_select %p226, %s17, 1
        %s228 = smul.addr %s227, 8
        %s229 = scalar_lea.vmem %s3, %s228
        %p230 = scmp.lt.s32.totalorder %s17, 1
        %s231 = scalar_select %p230, %s17, 1
        %s232 = smul.addr %s231, 8
        %s233 = scalar_lea.vmem %s4, %s232
        loop: start=0, step=1, limit=16
        $region33: #{_lambda_.8} parent=27 // loop_pre_header
          _
        $region34: #{_lambda_.8} parent=27 // loop_header
          %s236 = sphi 0, %s240
          %p237 = scmp.ge.s32.totalorder %s236, 16
          %v241 = vphi 0.0, %v842
          %v242 = vphi 0.0, %v852
        $region35: #{_lambda_.8} parent=27 // loop_header_branch
          %239 = sbr.rel (%p237) target = $region39
        $region36: #{_lambda_.8} parent=27 // loop_body
          %s243 = smul.u32 %s236, 3
          %s244 = smul.addr %s243, 4
          %s245 = scalar_lea.vmem %s220, %s244
          %v246 = vld [vmem:[%s245] sm:$0xf]
          %v247 = vld [vmem:[%s245 + $0x4] sm:$0xf]
          %v248 = vld [vmem:[%s245 + $0x8] sm:$0x1]
          %v249 = vld [vmem:[#allocation2] sm:$0xf]
          %v250 = vld [vmem:[#allocation2 + $0x4] sm:$0xf]
          %s251 = scalar_lea.vmem [#allocation2], 8
          %v252 = vld [vmem:[%s251] sm:$0xf]
          %v253 = vld [vmem:[%s251 + $0x4] sm:$0xf]
          %v257 = vunpack.c.l.b16 %v246
          %v258 = vunpack.c.l.b16 %v247
          %v259 = vunpack.c.l.b16 %v248
          %v260 = vpack.c.b16 %v258, %v257
          %v261 = vpack.c.b16 %v259, %v259
          %vm262 = vsmask.f32 7424
          %v264 = vshrl.u32 %v260, 16
          %v266 = vshll.u32 %v260, 16
          %v268 = vrot.slane %v266, 1
          %v269 = vor.u32 %v264, %v268
          %v271 = vshll.u32 %v261, 16
          %v273 = vrot.slane %v271, 1
          %v274 = vsel %vm262, %v269, %v273
          %v277 = vunpack.c.l.b16 %v252
          %v278 = vunpack.c.l.b16 %v253
          %v279 = vpack.c.b16 %v278, %v277
          %vm281 = vcmask 130048
          %v283 = vsel %vm281, %v274, 0
          %285 = vmatprep.subr.bf16.mxu0 0
          %286 = vmatpush1.bf16.msra.mxu0 0
          %287 = vmatprep.subr.bf16.mxu0 0
          %288 = vmatpush1.bf16.msra.mxu0 0
          %289 = vmatprep.subr.bf16.mxu0 0
          %290 = vmatpush1.bf16.msra.mxu0 0
          %291 = vmatprep.subr.bf16.mxu0 0
          %292 = vmatpush1.bf16.msra.mxu0 0
          %293 = vmatprep.subr.bf16.mxu0 0
          %294 = vmatpush1.bf16.msra.mxu0 0
          %295 = vmatprep.subr.bf16.mxu0 0
          %296 = vmatpush1.bf16.msra.mxu0 0
          %297 = vmatprep.subr.bf16.mxu0 0
          %298 = vmatpush1.bf16.msra.mxu0 0
          %299 = vmatprep.subr.bf16.mxu0 0
          %300 = vmatpush1.bf16.msra.mxu0 %v279
          %301 = vmatprep.subr.bf16.mxu0 0
          %302 = vmatpush2.bf16.msra.mxu0 0
          %303 = vmatprep.subr.bf16.mxu0 0
          %304 = vmatpush2.bf16.msra.mxu0 0
          %305 = vmatprep.subr.bf16.mxu0 0
          %306 = vmatpush2.bf16.msra.mxu0 0
          %307 = vmatprep.subr.bf16.mxu0 0
          %308 = vmatpush2.bf16.msra.mxu0 0
          %309 = vmatprep.subr.bf16.mxu0 0
          %310 = vmatpush2.bf16.msra.mxu0 0
          %311 = vmatprep.subr.bf16.mxu0 0
          %312 = vmatpush2.bf16.msra.mxu0 0
          %313 = vmatprep.subr.bf16.mxu0 0
          %314 = vmatpush2.bf16.msra.mxu0 0
          %315 = vmatprep.subr.bf16.mxu0 0
          %316 = vmatpush2.bf16.msra.mxu0 0
          %317 = vmatprep.mubr.bf16.mxu0 0
          %318 = vmatmul.mubr.bf16.gmra.mxu0 %v283
          %v319 = vpop.f32.mrf.mxu0
          %v320 = vadd.f32 0.0, %v319
          %v321 = vpop.f32.mrf.mxu0
          %v322 = vpop.f32.mrf.mxu0
          %v323 = vadd.f32 0.0, %v322
          %v324 = vpop.f32.mrf.mxu0
          %325 = vdwg.mxu0
          %v328 = vunpack.c.l.b16 %v249
          %v329 = vunpack.c.l.b16 %v250
          %v330 = vpack.c.b16 %v329, %v328
          %v332 = vsel %vm281, %v260, 0
          %334 = vmatprep.subr.bf16.mxu0 0
          %335 = vmatpush1.bf16.msra.mxu0 0
          %336 = vmatprep.subr.bf16.mxu0 0
          %337 = vmatpush1.bf16.msra.mxu0 0
          %338 = vmatprep.subr.bf16.mxu0 0
          %339 = vmatpush1.bf16.msra.mxu0 0
          %340 = vmatprep.subr.bf16.mxu0 0
          %341 = vmatpush1.bf16.msra.mxu0 0
          %342 = vmatprep.subr.bf16.mxu0 0
          %343 = vmatpush1.bf16.msra.mxu0 0
          %344 = vmatprep.subr.bf16.mxu0 0
          %345 = vmatpush1.bf16.msra.mxu0 0
          %346 = vmatprep.subr.bf16.mxu0 0
          %347 = vmatpush1.bf16.msra.mxu0 0
          %348 = vmatprep.subr.bf16.mxu0 0
          %349 = vmatpush1.bf16.msra.mxu0 %v330
          %350 = vmatprep.subr.bf16.mxu0 0
          %351 = vmatpush2.bf16.msra.mxu0 0
          %352 = vmatprep.subr.bf16.mxu0 0
          %353 = vmatpush2.bf16.msra.mxu0 0
          %354 = vmatprep.subr.bf16.mxu0 0
          %355 = vmatpush2.bf16.msra.mxu0 0
          %356 = vmatprep.subr.bf16.mxu0 0
          %357 = vmatpush2.bf16.msra.mxu0 0
          %358 = vmatprep.subr.bf16.mxu0 0
          %359 = vmatpush2.bf16.msra.mxu0 0
          %360 = vmatprep.subr.bf16.mxu0 0
          %361 = vmatpush2.bf16.msra.mxu0 0
          %362 = vmatprep.subr.bf16.mxu0 0
          %363 = vmatpush2.bf16.msra.mxu0 0
          %364 = vmatprep.subr.bf16.mxu0 0
          %365 = vmatpush2.bf16.msra.mxu0 0
          %366 = vmatprep.mubr.bf16.mxu0 0
          %367 = vmatmul.mubr.bf16.gmra.mxu0 %v332
          %v368 = vpop.f32.mrf.mxu0
          %v369 = vadd.f32 %v320, %v368
          %v370 = vpop.f32.mrf.mxu0
          %v371 = vpop.f32.mrf.mxu0
          %v372 = vadd.f32 %v323, %v371
          %v373 = vpop.f32.mrf.mxu0
          %374 = vdwg.mxu0
          %s375 = scalar_lea.vmem [#allocation2], 16
          %v376 = vld [vmem:[%s375] sm:$0xf]
          %v377 = vld [vmem:[%s375 + $0x4] sm:$0xf]
          %vm378 = vcmask 1046528
          %v379 = vrot.slane %v260, 1
          %v380 = vrot.slane %v261, 1
          %v381 = vsel %vm378, %v379, %v380
          %v384 = vunpack.c.l.b16 %v376
          %v385 = vunpack.c.l.b16 %v377
          %v386 = vpack.c.b16 %v385, %v384
          %v389 = vsel %vm281, %v381, 0
          %391 = vmatprep.subr.bf16.mxu0 0
          %392 = vmatpush1.bf16.msra.mxu0 0
          %393 = vmatprep.subr.bf16.mxu0 0
          %394 = vmatpush1.bf16.msra.mxu0 0
          %395 = vmatprep.subr.bf16.mxu0 0
          %396 = vmatpush1.bf16.msra.mxu0 0
          %397 = vmatprep.subr.bf16.mxu0 0
          %398 = vmatpush1.bf16.msra.mxu0 0
          %399 = vmatprep.subr.bf16.mxu0 0
          %400 = vmatpush1.bf16.msra.mxu0 0
          %401 = vmatprep.subr.bf16.mxu0 0
          %402 = vmatpush1.bf16.msra.mxu0 0
          %403 = vmatprep.subr.bf16.mxu0 0
          %404 = vmatpush1.bf16.msra.mxu0 0
          %405 = vmatprep.subr.bf16.mxu0 0
          %406 = vmatpush1.bf16.msra.mxu0 %v386
          %407 = vmatprep.subr.bf16.mxu0 0
          %408 = vmatpush2.bf16.msra.mxu0 0
          %409 = vmatprep.subr.bf16.mxu0 0
          %410 = vmatpush2.bf16.msra.mxu0 0
          %411 = vmatprep.subr.bf16.mxu0 0
          %412 = vmatpush2.bf16.msra.mxu0 0
          %413 = vmatprep.subr.bf16.mxu0 0
          %414 = vmatpush2.bf16.msra.mxu0 0
          %415 = vmatprep.subr.bf16.mxu0 0
          %416 = vmatpush2.bf16.msra.mxu0 0
          %417 = vmatprep.subr.bf16.mxu0 0
          %418 = vmatpush2.bf16.msra.mxu0 0
          %419 = vmatprep.subr.bf16.mxu0 0
          %420 = vmatpush2.bf16.msra.mxu0 0
          %421 = vmatprep.subr.bf16.mxu0 0
          %422 = vmatpush2.bf16.msra.mxu0 0
          %423 = vmatprep.mubr.bf16.mxu0 0
          %424 = vmatmul.mubr.bf16.gmra.mxu0 %v389
          %v425 = vpop.f32.mrf.mxu0
          %v426 = vadd.f32 0.0, %v425
          %v427 = vpop.f32.mrf.mxu0
          %v428 = vpop.f32.mrf.mxu0
          %v429 = vadd.f32 0.0, %v428
          %v430 = vpop.f32.mrf.mxu0
          %431 = vdwg.mxu0
          %v432 = vadd.f32 %v369, %v426
          %v433 = vadd.f32 %v372, %v429
          %s434 = sadd.s32 %s236, 1
          %s435 = smul.u32 %s434, 3
          %s436 = smul.addr %s435, 4
          %s437 = scalar_lea.vmem %s220, %s436
          %v438 = vld [vmem:[%s437] sm:$0xf]
          %v439 = vld [vmem:[%s437 + $0x4] sm:$0xf]
          %v440 = vld [vmem:[%s437 + $0x8] sm:$0x1]
          %s441 = scalar_lea.vmem [#allocation2], 24
          %v442 = vld [vmem:[%s441] sm:$0xf]
          %v443 = vld [vmem:[%s441 + $0x4] sm:$0xf]
          %v446 = vunpack.c.l.b16 %v438
          %v447 = vunpack.c.l.b16 %v439
          %v448 = vpack.c.b16 %v447, %v446
          %v451 = vunpack.c.l.b16 %v442
          %v452 = vunpack.c.l.b16 %v443
          %v453 = vpack.c.b16 %v452, %v451
          %v456 = vsel %vm281, %v448, 0
          %458 = vmatprep.subr.bf16.mxu0 0
          %459 = vmatpush1.bf16.msra.mxu0 0
          %460 = vmatprep.subr.bf16.mxu0 0
          %461 = vmatpush1.bf16.msra.mxu0 0
          %462 = vmatprep.subr.bf16.mxu0 0
          %463 = vmatpush1.bf16.msra.mxu0 0
          %464 = vmatprep.subr.bf16.mxu0 0
          %465 = vmatpush1.bf16.msra.mxu0 0
          %466 = vmatprep.subr.bf16.mxu0 0
          %467 = vmatpush1.bf16.msra.mxu0 0
          %468 = vmatprep.subr.bf16.mxu0 0
          %469 = vmatpush1.bf16.msra.mxu0 0
          %470 = vmatprep.subr.bf16.mxu0 0
          %471 = vmatpush1.bf16.msra.mxu0 0
          %472 = vmatprep.subr.bf16.mxu0 0
          %473 = vmatpush1.bf16.msra.mxu0 %v453
          %474 = vmatprep.subr.bf16.mxu0 0
          %475 = vmatpush2.bf16.msra.mxu0 0
          %476 = vmatprep.subr.bf16.mxu0 0
          %477 = vmatpush2.bf16.msra.mxu0 0
          %478 = vmatprep.subr.bf16.mxu0 0
          %479 = vmatpush2.bf16.msra.mxu0 0
          %480 = vmatprep.subr.bf16.mxu0 0
          %481 = vmatpush2.bf16.msra.mxu0 0
          %482 = vmatprep.subr.bf16.mxu0 0
          %483 = vmatpush2.bf16.msra.mxu0 0
          %484 = vmatprep.subr.bf16.mxu0 0
          %485 = vmatpush2.bf16.msra.mxu0 0
          %486 = vmatprep.subr.bf16.mxu0 0
          %487 = vmatpush2.bf16.msra.mxu0 0
          %488 = vmatprep.subr.bf16.mxu0 0
          %489 = vmatpush2.bf16.msra.mxu0 0
          %490 = vmatprep.mubr.bf16.mxu0 0
          %491 = vmatmul.mubr.bf16.gmra.mxu0 %v456
          %v492 = vpop.f32.mrf.mxu0
          %v493 = vadd.f32 0.0, %v492
          %v494 = vpop.f32.mrf.mxu0
          %v495 = vpop.f32.mrf.mxu0
          %v496 = vadd.f32 0.0, %v495
          %v497 = vpop.f32.mrf.mxu0
          %498 = vdwg.mxu0
          %v499 = vadd.f32 %v432, %v493
          %v500 = vadd.f32 %v433, %v496
          %s501 = scalar_lea.vmem [#allocation2], 32
          %v502 = vld [vmem:[%s501] sm:$0xf]
          %v503 = vld [vmem:[%s501 + $0x4] sm:$0xf]
          %v505 = vunpack.c.l.b16 %v440
          %v506 = vpack.c.b16 %v505, %v505
          %v507 = vshrl.u32 %v448, 16
          %v509 = vshll.u32 %v448, 16
          %v511 = vrot.slane %v509, 1
          %v512 = vor.u32 %v507, %v511
          %v514 = vshll.u32 %v506, 16
          %v516 = vrot.slane %v514, 1
          %v517 = vsel %vm262, %v512, %v516
          %v520 = vunpack.c.l.b16 %v502
          %v521 = vunpack.c.l.b16 %v503
          %v522 = vpack.c.b16 %v521, %v520
          %v525 = vsel %vm281, %v517, 0
          %527 = vmatprep.subr.bf16.mxu0 0
          %528 = vmatpush1.bf16.msra.mxu0 0
          %529 = vmatprep.subr.bf16.mxu0 0
          %530 = vmatpush1.bf16.msra.mxu0 0
          %531 = vmatprep.subr.bf16.mxu0 0
          %532 = vmatpush1.bf16.msra.mxu0 0
          %533 = vmatprep.subr.bf16.mxu0 0
          %534 = vmatpush1.bf16.msra.mxu0 0
          %535 = vmatprep.subr.bf16.mxu0 0
          %536 = vmatpush1.bf16.msra.mxu0 0
          %537 = vmatprep.subr.bf16.mxu0 0
          %538 = vmatpush1.bf16.msra.mxu0 0
          %539 = vmatprep.subr.bf16.mxu0 0
          %540 = vmatpush1.bf16.msra.mxu0 0
          %541 = vmatprep.subr.bf16.mxu0 0
          %542 = vmatpush1.bf16.msra.mxu0 %v522
          %543 = vmatprep.subr.bf16.mxu0 0
          %544 = vmatpush2.bf16.msra.mxu0 0
          %545 = vmatprep.subr.bf16.mxu0 0
          %546 = vmatpush2.bf16.msra.mxu0 0
          %547 = vmatprep.subr.bf16.mxu0 0
          %548 = vmatpush2.bf16.msra.mxu0 0
          %549 = vmatprep.subr.bf16.mxu0 0
          %550 = vmatpush2.bf16.msra.mxu0 0
          %551 = vmatprep.subr.bf16.mxu0 0
          %552 = vmatpush2.bf16.msra.mxu0 0
          %553 = vmatprep.subr.bf16.mxu0 0
          %554 = vmatpush2.bf16.msra.mxu0 0
          %555 = vmatprep.subr.bf16.mxu0 0
          %556 = vmatpush2.bf16.msra.mxu0 0
          %557 = vmatprep.subr.bf16.mxu0 0
          %558 = vmatpush2.bf16.msra.mxu0 0
          %559 = vmatprep.mubr.bf16.mxu0 0
          %560 = vmatmul.mubr.bf16.gmra.mxu0 %v525
          %v561 = vpop.f32.mrf.mxu0
          %v562 = vadd.f32 0.0, %v561
          %v563 = vpop.f32.mrf.mxu0
          %v564 = vpop.f32.mrf.mxu0
          %v565 = vadd.f32 0.0, %v564
          %v566 = vpop.f32.mrf.mxu0
          %567 = vdwg.mxu0
          %v568 = vadd.f32 %v499, %v562
          %v569 = vadd.f32 %v500, %v565
          %s570 = scalar_lea.vmem [#allocation2], 40
          %v571 = vld [vmem:[%s570] sm:$0xf]
          %v572 = vld [vmem:[%s570 + $0x4] sm:$0xf]
          %v573 = vrot.slane %v448, 1
          %v574 = vrot.slane %v506, 1
          %v575 = vsel %vm378, %v573, %v574
          %v578 = vunpack.c.l.b16 %v571
          %v579 = vunpack.c.l.b16 %v572
          %v580 = vpack.c.b16 %v579, %v578
          %v583 = vsel %vm281, %v575, 0
          %585 = vmatprep.subr.bf16.mxu0 0
          %586 = vmatpush1.bf16.msra.mxu0 0
          %587 = vmatprep.subr.bf16.mxu0 0
          %588 = vmatpush1.bf16.msra.mxu0 0
          %589 = vmatprep.subr.bf16.mxu0 0
          %590 = vmatpush1.bf16.msra.mxu0 0
          %591 = vmatprep.subr.bf16.mxu0 0
          %592 = vmatpush1.bf16.msra.mxu0 0
          %593 = vmatprep.subr.bf16.mxu0 0
          %594 = vmatpush1.bf16.msra.mxu0 0
          %595 = vmatprep.subr.bf16.mxu0 0
          %596 = vmatpush1.bf16.msra.mxu0 0
          %597 = vmatprep.subr.bf16.mxu0 0
          %598 = vmatpush1.bf16.msra.mxu0 0
          %599 = vmatprep.subr.bf16.mxu0 0
          %600 = vmatpush1.bf16.msra.mxu0 %v580
          %601 = vmatprep.subr.bf16.mxu0 0
          %602 = vmatpush2.bf16.msra.mxu0 0
          %603 = vmatprep.subr.bf16.mxu0 0
          %604 = vmatpush2.bf16.msra.mxu0 0
          %605 = vmatprep.subr.bf16.mxu0 0
          %606 = vmatpush2.bf16.msra.mxu0 0
          %607 = vmatprep.subr.bf16.mxu0 0
          %608 = vmatpush2.bf16.msra.mxu0 0
          %609 = vmatprep.subr.bf16.mxu0 0
          %610 = vmatpush2.bf16.msra.mxu0 0
          %611 = vmatprep.subr.bf16.mxu0 0
          %612 = vmatpush2.bf16.msra.mxu0 0
          %613 = vmatprep.subr.bf16.mxu0 0
          %614 = vmatpush2.bf16.msra.mxu0 0
          %615 = vmatprep.subr.bf16.mxu0 0
          %616 = vmatpush2.bf16.msra.mxu0 0
          %617 = vmatprep.mubr.bf16.mxu0 0
          %618 = vmatmul.mubr.bf16.gmra.mxu0 %v583
          %v619 = vpop.f32.mrf.mxu0
          %v620 = vadd.f32 0.0, %v619
          %v621 = vpop.f32.mrf.mxu0
          %v622 = vpop.f32.mrf.mxu0
          %v623 = vadd.f32 0.0, %v622
          %v624 = vpop.f32.mrf.mxu0
          %625 = vdwg.mxu0
          %v626 = vadd.f32 %v568, %v620
          %v627 = vadd.f32 %v569, %v623
          %s628 = sadd.s32 %s236, 2
          %s629 = smul.u32 %s628, 3
          %s630 = smul.addr %s629, 4
          %s631 = scalar_lea.vmem %s220, %s630
          %v632 = vld [vmem:[%s631] sm:$0xf]
          %v633 = vld [vmem:[%s631 + $0x4] sm:$0xf]
          %v634 = vld [vmem:[%s631 + $0x8] sm:$0x1]
          %s635 = scalar_lea.vmem [#allocation2], 48
          %v636 = vld [vmem:[%s635] sm:$0xf]
          %v637 = vld [vmem:[%s635 + $0x4] sm:$0xf]
          %v640 = vunpack.c.l.b16 %v632
          %v641 = vunpack.c.l.b16 %v633
          %v642 = vpack.c.b16 %v641, %v640
          %v645 = vunpack.c.l.b16 %v636
          %v646 = vunpack.c.l.b16 %v637
          %v647 = vpack.c.b16 %v646, %v645
          %v650 = vsel %vm281, %v642, 0
          %652 = vmatprep.subr.bf16.mxu0 0
          %653 = vmatpush1.bf16.msra.mxu0 0
          %654 = vmatprep.subr.bf16.mxu0 0
          %655 = vmatpush1.bf16.msra.mxu0 0
          %656 = vmatprep.subr.bf16.mxu0 0
          %657 = vmatpush1.bf16.msra.mxu0 0
          %658 = vmatprep.subr.bf16.mxu0 0
          %659 = vmatpush1.bf16.msra.mxu0 0
          %660 = vmatprep.subr.bf16.mxu0 0
          %661 = vmatpush1.bf16.msra.mxu0 0
          %662 = vmatprep.subr.bf16.mxu0 0
          %663 = vmatpush1.bf16.msra.mxu0 0
          %664 = vmatprep.subr.bf16.mxu0 0
          %665 = vmatpush1.bf16.msra.mxu0 0
          %666 = vmatprep.subr.bf16.mxu0 0
          %667 = vmatpush1.bf16.msra.mxu0 %v647
          %668 = vmatprep.subr.bf16.mxu0 0
          %669 = vmatpush2.bf16.msra.mxu0 0
          %670 = vmatprep.subr.bf16.mxu0 0
          %671 = vmatpush2.bf16.msra.mxu0 0
          %672 = vmatprep.subr.bf16.mxu0 0
          %673 = vmatpush2.bf16.msra.mxu0 0
          %674 = vmatprep.subr.bf16.mxu0 0
          %675 = vmatpush2.bf16.msra.mxu0 0
          %676 = vmatprep.subr.bf16.mxu0 0
          %677 = vmatpush2.bf16.msra.mxu0 0
          %678 = vmatprep.subr.bf16.mxu0 0
          %679 = vmatpush2.bf16.msra.mxu0 0
          %680 = vmatprep.subr.bf16.mxu0 0
          %681 = vmatpush2.bf16.msra.mxu0 0
          %682 = vmatprep.subr.bf16.mxu0 0
          %683 = vmatpush2.bf16.msra.mxu0 0
          %684 = vmatprep.mubr.bf16.mxu0 0
          %685 = vmatmul.mubr.bf16.gmra.mxu0 %v650
          %v686 = vpop.f32.mrf.mxu0
          %v687 = vadd.f32 0.0, %v686
          %v688 = vpop.f32.mrf.mxu0
          %v689 = vpop.f32.mrf.mxu0
          %v690 = vadd.f32 0.0, %v689
          %v691 = vpop.f32.mrf.mxu0
          %692 = vdwg.mxu0
          %v693 = vadd.f32 %v626, %v687
          %v694 = vadd.f32 %v627, %v690
          %s695 = scalar_lea.vmem [#allocation2], 56
          %v696 = vld [vmem:[%s695] sm:$0xf]
          %v697 = vld [vmem:[%s695 + $0x4] sm:$0xf]
          %v699 = vunpack.c.l.b16 %v634
          %v700 = vpack.c.b16 %v699, %v699
          %v701 = vshrl.u32 %v642, 16
          %v703 = vshll.u32 %v642, 16
          %v705 = vrot.slane %v703, 1
          %v706 = vor.u32 %v701, %v705
          %v708 = vshll.u32 %v700, 16
          %v710 = vrot.slane %v708, 1
          %v711 = vsel %vm262, %v706, %v710
          %v714 = vunpack.c.l.b16 %v696
          %v715 = vunpack.c.l.b16 %v697
          %v716 = vpack.c.b16 %v715, %v714
          %v719 = vsel %vm281, %v711, 0
          %721 = vmatprep.subr.bf16.mxu0 0
          %722 = vmatpush1.bf16.msra.mxu0 0
          %723 = vmatprep.subr.bf16.mxu0 0
          %724 = vmatpush1.bf16.msra.mxu0 0
          %725 = vmatprep.subr.bf16.mxu0 0
          %726 = vmatpush1.bf16.msra.mxu0 0
          %727 = vmatprep.subr.bf16.mxu0 0
          %728 = vmatpush1.bf16.msra.mxu0 0
          %729 = vmatprep.subr.bf16.mxu0 0
          %730 = vmatpush1.bf16.msra.mxu0 0
          %731 = vmatprep.subr.bf16.mxu0 0
          %732 = vmatpush1.bf16.msra.mxu0 0
          %733 = vmatprep.subr.bf16.mxu0 0
          %734 = vmatpush1.bf16.msra.mxu0 0
          %735 = vmatprep.subr.bf16.mxu0 0
          %736 = vmatpush1.bf16.msra.mxu0 %v716
          %737 = vmatprep.subr.bf16.mxu0 0
          %738 = vmatpush2.bf16.msra.mxu0 0
          %739 = vmatprep.subr.bf16.mxu0 0
          %740 = vmatpush2.bf16.msra.mxu0 0
          %741 = vmatprep.subr.bf16.mxu0 0
          %742 = vmatpush2.bf16.msra.mxu0 0
          %743 = vmatprep.subr.bf16.mxu0 0
          %744 = vmatpush2.bf16.msra.mxu0 0
          %745 = vmatprep.subr.bf16.mxu0 0
          %746 = vmatpush2.bf16.msra.mxu0 0
          %747 = vmatprep.subr.bf16.mxu0 0
          %748 = vmatpush2.bf16.msra.mxu0 0
          %749 = vmatprep.subr.bf16.mxu0 0
          %750 = vmatpush2.bf16.msra.mxu0 0
          %751 = vmatprep.subr.bf16.mxu0 0
          %752 = vmatpush2.bf16.msra.mxu0 0
          %753 = vmatprep.mubr.bf16.mxu0 0
          %754 = vmatmul.mubr.bf16.gmra.mxu0 %v719
          %v755 = vpop.f32.mrf.mxu0
          %v756 = vadd.f32 0.0, %v755
          %v757 = vpop.f32.mrf.mxu0
          %v758 = vpop.f32.mrf.mxu0
          %v759 = vadd.f32 0.0, %v758
          %v760 = vpop.f32.mrf.mxu0
          %761 = vdwg.mxu0
          %v762 = vadd.f32 %v693, %v756
          %v763 = vadd.f32 %v694, %v759
          %s764 = scalar_lea.vmem [#allocation2], 64
          %v765 = vld [vmem:[%s764] sm:$0xf]
          %v766 = vld [vmem:[%s764 + $0x4] sm:$0xf]
          %v767 = vrot.slane %v642, 1
          %v768 = vrot.slane %v700, 1
          %v769 = vsel %vm378, %v767, %v768
          %v772 = vunpack.c.l.b16 %v765
          %v773 = vunpack.c.l.b16 %v766
          %v774 = vpack.c.b16 %v773, %v772
          %v777 = vsel %vm281, %v769, 0
          %779 = vmatprep.subr.bf16.mxu0 0
          %780 = vmatpush1.bf16.msra.mxu0 0
          %781 = vmatprep.subr.bf16.mxu0 0
          %782 = vmatpush1.bf16.msra.mxu0 0
          %783 = vmatprep.subr.bf16.mxu0 0
          %784 = vmatpush1.bf16.msra.mxu0 0
          %785 = vmatprep.subr.bf16.mxu0 0
          %786 = vmatpush1.bf16.msra.mxu0 0
          %787 = vmatprep.subr.bf16.mxu0 0
          %788 = vmatpush1.bf16.msra.mxu0 0
          %789 = vmatprep.subr.bf16.mxu0 0
          %790 = vmatpush1.bf16.msra.mxu0 0
          %791 = vmatprep.subr.bf16.mxu0 0
          %792 = vmatpush1.bf16.msra.mxu0 0
          %793 = vmatprep.subr.bf16.mxu0 0
          %794 = vmatpush1.bf16.msra.mxu0 %v774
          %795 = vmatprep.subr.bf16.mxu0 0
          %796 = vmatpush2.bf16.msra.mxu0 0
          %797 = vmatprep.subr.bf16.mxu0 0
          %798 = vmatpush2.bf16.msra.mxu0 0
          %799 = vmatprep.subr.bf16.mxu0 0
          %800 = vmatpush2.bf16.msra.mxu0 0
          %801 = vmatprep.subr.bf16.mxu0 0
          %802 = vmatpush2.bf16.msra.mxu0 0
          %803 = vmatprep.subr.bf16.mxu0 0
          %804 = vmatpush2.bf16.msra.mxu0 0
          %805 = vmatprep.subr.bf16.mxu0 0
          %806 = vmatpush2.bf16.msra.mxu0 0
          %807 = vmatprep.subr.bf16.mxu0 0
          %808 = vmatpush2.bf16.msra.mxu0 0
          %809 = vmatprep.subr.bf16.mxu0 0
          %810 = vmatpush2.bf16.msra.mxu0 0
          %811 = vmatprep.mubr.bf16.mxu0 0
          %812 = vmatmul.mubr.bf16.gmra.mxu0 %v777
          %v813 = vpop.f32.mrf.mxu0
          %v814 = vadd.f32 0.0, %v813
          %v815 = vpop.f32.mrf.mxu0
          %v816 = vpop.f32.mrf.mxu0
          %v817 = vadd.f32 0.0, %v816
          %v818 = vpop.f32.mrf.mxu0
          %819 = vdwg.mxu0
          %v820 = vadd.f32 %v762, %v814
          %v821 = vadd.f32 %v763, %v817
          %v822 = vpack.c.bf16 %v821, %v820
          %v824 = vunpack.c.l.b16 %v822
          %v825 = vunpack.c.h.b16 %v822
          %v826 = vpack.c.b16 %v824, %v824
          %v827 = vpack.c.b16 %v825, %v825
          %s830 = smul.u32 %s236, 2
          %s831 = smul.addr %s830, 4
          %s832 = scalar_lea.vmem %s225, %s831
          %833 = vst [vmem:[%s832] sm:$0xf] %v826
          %834 = vst [vmem:[%s832 + $0x4] sm:$0xf] %v827
          %v835 = vadd.f32 %v820, %v821
          %v836 = vrot.slane %v835, 4
          %v837 = vadd.f32 %v835, %v836
          %v838 = vrot.slane %v837, 2
          %v839 = vadd.f32 %v837, %v838
          %v840 = vrot.slane %v839, 1
          %v841 = vadd.f32 %v839, %v840
          %v842 = vadd.f32 %v241, %v841
          %v843 = vmul.f32 %v820, %v820
          %v844 = vmul.f32 %v821, %v821
          %v845 = vadd.f32 %v843, %v844
          %v846 = vrot.slane %v845, 4
          %v847 = vadd.f32 %v845, %v846
          %v848 = vrot.slane %v847, 2
          %v849 = vadd.f32 %v847, %v848
          %v850 = vrot.slane %v849, 1
          %v851 = vadd.f32 %v849, %v850
          %v852 = vadd.f32 %v242, %v851
        $region37: #{_lambda_.8} parent=27 // loop_footer
          %s240 = sadd.s32 1, %s236
        $region38: #{_lambda_.8} parent=27 // loop_footer_branch
          %235 = sbr.rel target = $region34
        $region39: #{_lambda_.8} parent=27 // loop_exit
          _
        %853 = vst [vmem:[%s229] sm:$0xff] %v241
        %854 = vst [vmem:[%s233] sm:$0xff] %v242
        %p855 = scmp.lt.s32.totalorder %s17, 1
        %s856 = scalar_select %p855, %s17, 1
        %s857 = smul.addr %s856, 32
        %s858 = smul.addr %s857, 4
        %s859 = scalar_lea.vmem %s2, %s858
        %p860 = scmp.lt.s32.totalorder %s17, 1
        %s861 = scalar_select %p860, %s17, 1
        %s862 = smul.addr %s861, 8
        %s863 = scalar_lea.vmem %s3, %s862
        %p864 = scmp.lt.s32.totalorder %s17, 1
        %s865 = scalar_select %p864, %s17, 1
        %s866 = smul.addr %s865, 8
        %s867 = scalar_lea.vmem %s4, %s866
        // Predicated region
        $region40: #{_lambda_.8} parent=27 // pred_check
          %p868 = pneg %p82
        $region41: #{_lambda_.8} parent=27 // pred_check_branch
          %870 = sbr.rel (%p868) target = $region43
        $region42: #{_lambda_.8} parent=27 // pred_region
          _
        $region43: #{_lambda_.8} parent=27 // pred_fallthru
          _
        // Predicated region
        $region44: #{_lambda_.8} parent=27 // pred_check
          %p871 = pneg %p108
        $region45: #{_lambda_.8} parent=27 // pred_check_branch
          %873 = sbr.rel (%p871) target = $region47
        $region46: #{_lambda_.8} parent=27 // pred_region
          _
        $region47: #{_lambda_.8} parent=27 // pred_fallthru
          _
        // Predicated region
        $region48: #{_lambda_.8} parent=27 // pred_check
          %p874 = pneg %p134
        $region49: #{_lambda_.8} parent=27 // pred_check_branch
          %876 = sbr.rel (%p874) target = $region51
        $region50: #{_lambda_.8} parent=27 // pred_region
          _
        $region51: #{_lambda_.8} parent=27 // pred_fallthru
          _
      $region28: #{_lambda_.8} parent=5 // pred_fallthru
        _
      %p877 = scmp.le.s32.totalorder 2, %s12
      // Predicated region
      $region52: #{_lambda_.8} parent=5 // pred_check
        %p878 = pneg %p877
      $region53: #{_lambda_.8} parent=5 // pred_check_branch
        %880 = sbr.rel (%p878) target = $region55
      $region54: #{_lambda_.8} parent=5 // pred_region
        %s881 = ssub.s32 %s12, 2
        // Predicated region
        $region56: #{_lambda_.8} parent=54 // pred_check
          %p882 = pneg %p88
        $region57: #{_lambda_.8} parent=54 // pred_check_branch
          %884 = sbr.rel (%p882) target = $region59
        $region58: #{_lambda_.8} parent=54 // pred_region
          %p885 = scmp.lt.s32.totalorder %s18, 1
          %s886 = scalar_select %p885, %s18, 1
          %s887 = smul.addr %s886, 32
          %s888 = smul.addr %s887, 4
          %s889 = scalar_lea.vmem %s2, %s888
        $region59: #{_lambda_.8} parent=54 // pred_fallthru
          _
        // Predicated region
        $region60: #{_lambda_.8} parent=54 // pred_check
          %p890 = pneg %p114
        $region61: #{_lambda_.8} parent=54 // pred_check_branch
          %892 = sbr.rel (%p890) target = $region63
        $region62: #{_lambda_.8} parent=54 // pred_region
          %p893 = scmp.lt.s32.totalorder %s18, 1
          %s894 = scalar_select %p893, %s18, 1
          %s895 = smul.addr %s894, 8
          %s896 = scalar_lea.vmem %s3, %s895
        $region63: #{_lambda_.8} parent=54 // pred_fallthru
          _
        // Predicated region
        $region64: #{_lambda_.8} parent=54 // pred_check
          %p897 = pneg %p140
        $region65: #{_lambda_.8} parent=54 // pred_check_branch
          %899 = sbr.rel (%p897) target = $region67
        $region66: #{_lambda_.8} parent=54 // pred_region
          %p900 = scmp.lt.s32.totalorder %s18, 1
          %s901 = scalar_select %p900, %s18, 1
          %s902 = smul.addr %s901, 8
          %s903 = scalar_lea.vmem %s4, %s902
        $region67: #{_lambda_.8} parent=54 // pred_fallthru
          _
      $region55: #{_lambda_.8} parent=5 // pred_fallthru
        _
    $region6: #{_lambda_.8} parent=1 // loop_footer
      %s16 = sadd.s32 1, %s12
    $region7: #{_lambda_.8} parent=1 // loop_footer_branch
      %11 = sbr.rel target = $region3
    $region8: #{_lambda_.8} parent=1 // loop_exit
      _
    %904 = vsyncpa [#allocation3], 1
    %s905 = scalar_lea.sflag [#allocation3], 1
    %906 = vsyncpa %s905, 1

// kernel: _lambda_.9
$region0: #{_lambda_.9}
  #allocation0 [shape = 'u32[]', space=smem, size = 0x4, offset = 0x4, fixed_abs, tag = 'smem constant byte address 0x4 - core index']
  #allocation1 [shape = 'u32[144,128]{1,0:T(1,128)}', space=vmem, size = 0x12000, scoped, tag = 'internal scratch']
  %s0 = inlined_call_operand.vmem [shape: bf16[2,34,34,8], index: 0, kind: input, shape index: {}]
  %s1 = inlined_call_operand.hbm [shape: bf16[9,8,128], index: 1, kind: input, shape index: {}]
  %s2 = inlined_call_operand.vmem [shape: f32[2,32,32,128], index: 2, kind: output, shape index: {}]
  %s3 = sld [smem:[#allocation0]]
  $region52: #{_lambda_.9} parent=0
    _
  %s5 = ssub.s32 1, %s3
  %s6 = scalar_select 0, %s5, %s3
  $region1: #{_lambda_.9} parent=0
    #allocation2 [shape = 'u8[18432]{0}', space=vmem, size = 0x4800, scoped, tag = 'input window, operand 1, single buffered']
    #allocation3 [shape = 's32[2]{0}', space=sflag, size = 0x8, scoped, tag = 'scoped memory for _lambda_.9']
    %7 = vsyncpa [#allocation3], 0
    loop: start=0, step=1, limit=4
    $region2: #{_lambda_.9} parent=1 // loop_pre_header
      _
    $region3: #{_lambda_.9} parent=1 // loop_header
      %s9 = sphi 0, %s13
      %p10 = scmp.ge.s32.totalorder %s9, 4
      %s19 = sphi 0, %s21
      %s22 = sphi 0, %s19
      %s23 = sphi 0, %s22
      %s39 = sphi 0, %s23
      %s43 = sphi 0, %s43
      %s45 = sphi 0, %s43
      %s46 = sphi 0, %s45
      %s60 = sphi 0, %s46
      %s66 = sphi 0, %s68
      %s69 = sphi 0, %s66
      %s70 = sphi 0, %s69
      %s86 = sphi 0, %s70
    $region4: #{_lambda_.9} parent=1 // loop_header_branch
      %12 = sbr.rel (%p10) target = $region8
    $region5: #{_lambda_.9} parent=1 // loop_body
      %s14 = ssub.s32 %s9, 1
      %s15 = ssub.s32 %s9, 2
      %s16 = sadd.s32 %s9, 1
      %s17 = ssub.s32 %s9, %s16
      %p18 = scmp.eq.s32.totalorder %s17, 0
      %s20 = sadd.s32 %s19, 1
      %s21 = scalar_select %p18, %s19, %s20
      %p24 = pneg %p18
      %p25 = scmp.eq.s32.totalorder %s9, 1
      %p26 = por %p24, %p25
      %p27 = scmp.ne.s32.totalorder %s19, %s22
      %p28 = scmp.eq.s32.totalorder %s9, 0
      %p29 = por %p27, %p28
      %p30 = scmp.ne.s32.totalorder %s19, %s22
      %p31 = scmp.eq.s32.totalorder %s14, 1
      %p32 = por %p30, %p31
      %p33 = scmp.ne.s32.totalorder %s22, %s23
      %p34 = scmp.eq.s32.totalorder %s14, 0
      %p35 = por %p33, %p34
      %p36 = scmp.ne.s32.totalorder %s22, %s23
      %p37 = scmp.eq.s32.totalorder %s15, 1
      %p38 = por %p36, %p37
      %p40 = scmp.ne.s32.totalorder %s23, %s39
      %p41 = scmp.eq.s32.totalorder %s15, 0
      %p42 = por %p40, %p41
      %s44 = sadd.s32 %s43, 1
      %p47 = scmp.eq.s32.totalorder %s9, 1
      %p48 = scmp.ne.s32.totalorder %s43, %s45
      %p49 = scmp.eq.s32.totalorder %s9, 0
      %p50 = por %p48, %p49
      %p51 = scmp.ne.s32.totalorder %s43, %s45
      %p52 = scmp.eq.s32.totalorder %s14, 1
      %p53 = por %p51, %p52
      %p54 = scmp.ne.s32.totalorder %s45, %s46
      %p55 = scmp.eq.s32.totalorder %s14, 0
      %p56 = por %p54, %p55
      %p57 = scmp.ne.s32.totalorder %s45, %s46
      %p58 = scmp.eq.s32.totalorder %s15, 1
      %p59 = por %p57, %p58
      %p61 = scmp.ne.s32.totalorder %s46, %s60
      %p62 = scmp.eq.s32.totalorder %s15, 0
      %p63 = por %p61, %p62
      %s64 = ssub.s32 %s9, %s16
      %p65 = scmp.eq.s32.totalorder %s64, 0
      %s67 = sadd.s32 %s66, 1
      %s68 = scalar_select %p65, %s66, %s67
      %p71 = pneg %p65
      %p72 = scmp.eq.s32.totalorder %s9, 1
      %p73 = por %p71, %p72
      %p74 = scmp.ne.s32.totalorder %s66, %s69
      %p75 = scmp.eq.s32.totalorder %s9, 0
      %p76 = por %p74, %p75
      %p77 = scmp.ne.s32.totalorder %s66, %s69
      %p78 = scmp.eq.s32.totalorder %s14, 1
      %p79 = por %p77, %p78
      %p80 = scmp.ne.s32.totalorder %s69, %s70
      %p81 = scmp.eq.s32.totalorder %s14, 0
      %p82 = por %p80, %p81
      %p83 = scmp.ne.s32.totalorder %s69, %s70
      %p84 = scmp.eq.s32.totalorder %s15, 1
      %p85 = por %p83, %p84
      %p87 = scmp.ne.s32.totalorder %s70, %s86
      %p88 = scmp.eq.s32.totalorder %s15, 0
      %p89 = por %p87, %p88
      %p90 = scmp.le.s32.totalorder 1, %s9
      %p91 = scmp.lt.s32.totalorder %s9, 3
      %p92 = pnand %p90, %p91
      %p93 = pneg %p92
      // Predicated region
      $region9: #{_lambda_.9} parent=5 // pred_check
        _
      $region10: #{_lambda_.9} parent=5 // pred_check_branch
        %95 = sbr.rel (%p92) target = $region12
      $region11: #{_lambda_.9} parent=5 // pred_region
        %s96 = ssub.s32 %s9, 1
        // Predicated region
        $region13: #{_lambda_.9} parent=11 // pred_check
          %p97 = pneg %p56
        $region14: #{_lambda_.9} parent=11 // pred_check_branch
          %99 = sbr.rel (%p97) target = $region16
        $region15: #{_lambda_.9} parent=11 // pred_region
          %s101 = ssub.s32 576, 576
          %102 = vsyncadd [#allocation3], %s101
          %s103 = sshll.u32 [#allocation2], 4
          %s104 = int_to_ptr.vmem [resolvable:$true] %s103
          %109 = dma.hbm_to_vmem [thread:$0]  %s1, 576, %s104, [#allocation3], 64, 64, 4
        $region16: #{_lambda_.9} parent=11 // pred_fallthru
          _
      $region12: #{_lambda_.9} parent=5 // pred_fallthru
        _
      %p110 = scmp.lt.s32.totalorder %s9, 2
      // Predicated region
      $region17: #{_lambda_.9} parent=5 // pred_check
        %p111 = pneg %p110
      $region18: #{_lambda_.9} parent=5 // pred_check_branch
        %113 = sbr.rel (%p111) target = $region20
      $region19: #{_lambda_.9} parent=5 // pred_region
        // Predicated region
        $region21: #{_lambda_.9} parent=19 // pred_check
          %p114 = pneg %p29
        $region22: #{_lambda_.9} parent=19 // pred_check_branch
          %116 = sbr.rel (%p114) target = $region24
        $region23: #{_lambda_.9} parent=19 // pred_region
          %p117 = scmp.lt.s32.totalorder %s9, 1
          %s118 = scalar_select %p117, %s9, 1
          %s119 = smul.addr %s118, 170
          %s120 = smul.addr %s119, 4
          %s121 = scalar_lea.vmem %s0, %s120
        $region24: #{_lambda_.9} parent=19 // pred_fallthru
          _
      $region20: #{_lambda_.9} parent=5 // pred_fallthru
        _
      %p122 = scmp.le.s32.totalorder 1, %s9
      %p123 = scmp.lt.s32.totalorder %s9, 3
      %p124 = pnand %p122, %p123
      %p125 = pneg %p124
      // Predicated region
      $region25: #{_lambda_.9} parent=5 // pred_check
        _
      $region26: #{_lambda_.9} parent=5 // pred_check_branch
        %127 = sbr.rel (%p124) target = $region28
      $region27: #{_lambda_.9} parent=5 // pred_region
        %s128 = ssub.s32 %s9, 1
        // Predicated region
        $region29: #{_lambda_.9} parent=27 // pred_check
          %p129 = pneg %p56
        $region30: #{_lambda_.9} parent=27 // pred_check_branch
          %131 = sbr.rel (%p129) target = $region32
        $region31: #{_lambda_.9} parent=27 // pred_region
          %132 = dma.done [#allocation3], 576
        $region32: #{_lambda_.9} parent=27 // pred_fallthru
          _
        %p133 = scmp.lt.s32.totalorder %s14, 1
        %s134 = scalar_select %p133, %s14, 1
        %s135 = smul.addr %s134, 170
        %s136 = smul.addr %s135, 4
        %s137 = scalar_lea.vmem %s0, %s136
        %p138 = pneg %p35
        %p139 = pneg %p32
        %p140 = pneg %p56
        %p141 = pneg %p53
        %p142 = pneg %p82
        %p143 = pneg %p79
        %p144 = scmp.lt.s32.totalorder %s14, 1
        %s145 = scalar_select %p144, %s14, 1
        %s146 = smul.addr %s145, 128
        %s147 = smul.addr %s146, 8
        %s148 = scalar_lea.vmem %s2, %s147
        %p149 = scmp.lt.s32.totalorder %s14, 1
        %s150 = scalar_select %p149, %s14, 1
        %s151 = smul.addr %s150, 170
        %s152 = smul.addr %s151, 4
        %s153 = scalar_lea.vmem %s0, %s152
        %p154 = scmp.lt.s32.totalorder %s14, 1
        %s155 = scalar_select %p154, %s14, 1
        %s156 = smul.addr %s155, 128
        %s157 = smul.addr %s156, 8
        %s158 = scalar_lea.vmem %s2, %s157
        loop: start=0, step=1, limit=32
        $region33: #{_lambda_.9} parent=27 // loop_pre_header
          _
        $region34: #{_lambda_.9} parent=27 // loop_header
          %s161 = sphi 0, %s165
          %p162 = scmp.ge.s32.totalorder %s161, 32
        $region35: #{_lambda_.9} parent=27 // loop_header_branch
          %164 = sbr.rel (%p162) target = $region39
        $region36: #{_lambda_.9} parent=27 // loop_body
          %s166 = smul.u32 %s161, 5
          %s167 = smul.addr %s166, 4
          %s168 = scalar_lea.vmem %s153, %s167
          %v169 = vld [vmem:[%s168] sm:$0xf]
          %v170 = vld [vmem:[%s168 + $0x4] sm:$0xf]
          %v171 = vld [vmem:[%s168 + $0x8] sm:$0xf]
          %v172 = vld [vmem:[%s168 + $0xc] sm:$0xf]
          %v173 = vld [vmem:[%s168 + $0x10] sm:$0x1]
          %v174 = vld [vmem:[#allocation2] sm:$0xf]
          %s175 = scalar_lea.vmem [#allocation2], 4
          %v176 = vld [vmem:[%s175] sm:$0xf]
          %v182 = vunpack.c.l.b16 %v169
          %v183 = vunpack.c.l.b16 %v170
          %v184 = vunpack.c.l.b16 %v171
          %v185 = vunpack.c.l.b16 %v172
          %v186 = vunpack.c.l.b16 %v173
          %v187 = vpack.c.b16 %v183, %v182
          %v188 = vpack.c.b16 %v185, %v184
          %v189 = vpack.c.b16 %v186, %v186
          %vm190 = vsmask.f32 7424
          %v192 = vshrl.u32 %v187, 16
          %v194 = vshll.u32 %v187, 16
          %v196 = vrot.slane %v194, 1
          %v197 = vor.u32 %v192, %v196
          %v199 = vshll.u32 %v188, 16
          %v201 = vrot.slane %v199, 1
          %v202 = vsel %vm190, %v197, %v201
          %v203 = vshrl.u32 %v188, 16
          %v205 = vor.u32 %v203, %v201
          %v207 = vshll.u32 %v189, 16
          %v209 = vrot.slane %v207, 1
          %v210 = vsel %vm190, %v205, %v209
          %vm211 = vcmask 64512
          %v213 = vsel %vm211, %v202, 0
          %v216 = vsel %vm211, %v210, 0
          %vm218 = vcmask 1043456
          %v220 = vsel %vm218, %v176, 0
          %222 = vmatprep.subr.bf16.mxu0 0
          %223 = vmatpush1.bf16.msra.mxu0 0
          %224 = vmatprep.subr.bf16.mxu0 0
          %225 = vmatpush1.bf16.msra.mxu0 0
          %226 = vmatprep.subr.bf16.mxu0 0
          %227 = vmatpush1.bf16.msra.mxu0 0
          %228 = vmatprep.subr.bf16.mxu0 0
          %229 = vmatpush1.bf16.msra.mxu0 0
          %230 = vmatprep.subr.bf16.mxu0 0
          %231 = vmatpush1.bf16.msra.mxu0 0
          %232 = vmatprep.subr.bf16.mxu0 0
          %233 = vmatpush1.bf16.msra.mxu0 0
          %234 = vmatprep.subr.bf16.mxu0 0
          %235 = vmatpush1.bf16.msra.mxu0 0
          %236 = vmatprep.subr.bf16.mxu0 0
          %237 = vmatpush1.bf16.msra.mxu0 %v220
          %238 = vmatprep.subr.bf16.mxu0 0
          %239 = vmatpush2.bf16.msra.mxu0 0
          %240 = vmatprep.subr.bf16.mxu0 0
          %241 = vmatpush2.bf16.msra.mxu0 0
          %242 = vmatprep.subr.bf16.mxu0 0
          %243 = vmatpush2.bf16.msra.mxu0 0
          %244 = vmatprep.subr.bf16.mxu0 0
          %245 = vmatpush2.bf16.msra.mxu0 0
          %246 = vmatprep.subr.bf16.mxu0 0
          %247 = vmatpush2.bf16.msra.mxu0 0
          %248 = vmatprep.subr.bf16.mxu0 0
          %249 = vmatpush2.bf16.msra.mxu0 0
          %250 = vmatprep.subr.bf16.mxu0 0
          %251 = vmatpush2.bf16.msra.mxu0 0
          %252 = vmatprep.subr.bf16.mxu0 0
          %253 = vmatpush2.bf16.msra.mxu0 0
          %254 = vmatprep.mubr.bf16.mxu0 0
          %255 = vmatmul.mubr.bf16.gmra.mxu0 %v213
          %v256 = vpop.f32.mrf.mxu0
          %v257 = vadd.f32 0.0, %v256
          %v258 = vpop.f32.mrf.mxu0
          %v259 = vpop.f32.mrf.mxu0
          %v260 = vadd.f32 0.0, %v259
          %v261 = vpop.f32.mrf.mxu0
          %262 = vmatprep.mubr.bf16.mxu0 0
          %263 = vmatmul.mubr.bf16.gmra.mxu0 %v216
          %v264 = vpop.f32.mrf.mxu0
          %v265 = vadd.f32 0.0, %v264
          %v266 = vpop.f32.mrf.mxu0
          %v267 = vpop.f32.mrf.mxu0
          %v268 = vadd.f32 0.0, %v267
          %v269 = vpop.f32.mrf.mxu0
          %270 = vdwg.mxu0
          %v271 = vsel %vm211, %v187, 0
          %v273 = vsel %vm211, %v188, 0
          %v276 = vsel %vm218, %v174, 0
          %278 = vmatprep.subr.bf16.mxu0 0
          %279 = vmatpush1.bf16.msra.mxu0 0
          %280 = vmatprep.subr.bf16.mxu0 0
          %281 = vmatpush1.bf16.msra.mxu0 0
          %282 = vmatprep.subr.bf16.mxu0 0
          %283 = vmatpush1.bf16.msra.mxu0 0
          %284 = vmatprep.subr.bf16.mxu0 0
          %285 = vmatpush1.bf16.msra.mxu0 0
          %286 = vmatprep.subr.bf16.mxu0 0
          %287 = vmatpush1.bf16.msra.mxu0 0
          %288 = vmatprep.subr.bf16.mxu0 0
          %289 = vmatpush1.bf16.msra.mxu0 0
          %290 = vmatprep.subr.bf16.mxu0 0
          %291 = vmatpush1.bf16.msra.mxu0 0
          %292 = vmatprep.subr.bf16.mxu0 0
          %293 = vmatpush1.bf16.msra.mxu0 %v276
          %294 = vmatprep.subr.bf16.mxu0 0
          %295 = vmatpush2.bf16.msra.mxu0 0
          %296 = vmatprep.subr.bf16.mxu0 0
          %297 = vmatpush2.bf16.msra.mxu0 0
          %298 = vmatprep.subr.bf16.mxu0 0
          %299 = vmatpush2.bf16.msra.mxu0 0
          %300 = vmatprep.subr.bf16.mxu0 0
          %301 = vmatpush2.bf16.msra.mxu0 0
          %302 = vmatprep.subr.bf16.mxu0 0
          %303 = vmatpush2.bf16.msra.mxu0 0
          %304 = vmatprep.subr.bf16.mxu0 0
          %305 = vmatpush2.bf16.msra.mxu0 0
          %306 = vmatprep.subr.bf16.mxu0 0
          %307 = vmatpush2.bf16.msra.mxu0 0
          %308 = vmatprep.subr.bf16.mxu0 0
          %309 = vmatpush2.bf16.msra.mxu0 0
          %310 = vmatprep.mubr.bf16.mxu0 0
          %311 = vmatmul.mubr.bf16.gmra.mxu0 %v271
          %v312 = vpop.f32.mrf.mxu0
          %v313 = vadd.f32 %v257, %v312
          %v314 = vpop.f32.mrf.mxu0
          %v315 = vpop.f32.mrf.mxu0
          %v316 = vadd.f32 %v260, %v315
          %v317 = vpop.f32.mrf.mxu0
          %318 = vmatprep.mubr.bf16.mxu0 0
          %319 = vmatmul.mubr.bf16.gmra.mxu0 %v273
          %v320 = vpop.f32.mrf.mxu0
          %v321 = vadd.f32 %v265, %v320
          %v322 = vpop.f32.mrf.mxu0
          %v323 = vpop.f32.mrf.mxu0
          %v324 = vadd.f32 %v268, %v323
          %v325 = vpop.f32.mrf.mxu0
          %326 = vdwg.mxu0
          %s327 = scalar_lea.vmem [#allocation2], 8
          %v328 = vld [vmem:[%s327] sm:$0xf]
          %vm329 = vcmask 1046528
          %v330 = vrot.slane %v187, 1
          %v331 = vrot.slane %v188, 1
          %v332 = vsel %vm329, %v330, %v331
          %v333 = vrot.slane %v189, 1
          %v334 = vsel %vm329, %v331, %v333
          %v336 = vsel %vm211, %v332, 0
          %v339 = vsel %vm211, %v334, 0
          %v342 = vsel %vm218, %v328, 0
          %344 = vmatprep.subr.bf16.mxu0 0
          %345 = vmatpush1.bf16.msra.mxu0 0
          %346 = vmatprep.subr.bf16.mxu0 0
          %347 = vmatpush1.bf16.msra.mxu0 0
          %348 = vmatprep.subr.bf16.mxu0 0
          %349 = vmatpush1.bf16.msra.mxu0 0
          %350 = vmatprep.subr.bf16.mxu0 0
          %351 = vmatpush1.bf16.msra.mxu0 0
          %352 = vmatprep.subr.bf16.mxu0 0
          %353 = vmatpush1.bf16.msra.mxu0 0
          %354 = vmatprep.subr.bf16.mxu0 0
          %355 = vmatpush1.bf16.msra.mxu0 0
          %356 = vmatprep.subr.bf16.mxu0 0
          %357 = vmatpush1.bf16.msra.mxu0 0
          %358 = vmatprep.subr.bf16.mxu0 0
          %359 = vmatpush1.bf16.msra.mxu0 %v342
          %360 = vmatprep.subr.bf16.mxu0 0
          %361 = vmatpush2.bf16.msra.mxu0 0
          %362 = vmatprep.subr.bf16.mxu0 0
          %363 = vmatpush2.bf16.msra.mxu0 0
          %364 = vmatprep.subr.bf16.mxu0 0
          %365 = vmatpush2.bf16.msra.mxu0 0
          %366 = vmatprep.subr.bf16.mxu0 0
          %367 = vmatpush2.bf16.msra.mxu0 0
          %368 = vmatprep.subr.bf16.mxu0 0
          %369 = vmatpush2.bf16.msra.mxu0 0
          %370 = vmatprep.subr.bf16.mxu0 0
          %371 = vmatpush2.bf16.msra.mxu0 0
          %372 = vmatprep.subr.bf16.mxu0 0
          %373 = vmatpush2.bf16.msra.mxu0 0
          %374 = vmatprep.subr.bf16.mxu0 0
          %375 = vmatpush2.bf16.msra.mxu0 0
          %376 = vmatprep.mubr.bf16.mxu0 0
          %377 = vmatmul.mubr.bf16.gmra.mxu0 %v336
          %v378 = vpop.f32.mrf.mxu0
          %v379 = vadd.f32 0.0, %v378
          %v380 = vpop.f32.mrf.mxu0
          %v381 = vpop.f32.mrf.mxu0
          %v382 = vadd.f32 0.0, %v381
          %v383 = vpop.f32.mrf.mxu0
          %384 = vmatprep.mubr.bf16.mxu0 0
          %385 = vmatmul.mubr.bf16.gmra.mxu0 %v339
          %v386 = vpop.f32.mrf.mxu0
          %v387 = vadd.f32 0.0, %v386
          %v388 = vpop.f32.mrf.mxu0
          %v389 = vpop.f32.mrf.mxu0
          %v390 = vadd.f32 0.0, %v389
          %v391 = vpop.f32.mrf.mxu0
          %392 = vdwg.mxu0
          %v393 = vadd.f32 %v313, %v379
          %v394 = vadd.f32 %v316, %v382
          %v395 = vadd.f32 %v321, %v387
          %v396 = vadd.f32 %v324, %v390
          %s397 = sadd.s32 %s161, 1
          %s398 = smul.u32 %s397, 5
          %s399 = smul.addr %s398, 4
          %s400 = scalar_lea.vmem %s153, %s399
          %v401 = vld [vmem:[%s400] sm:$0xf]
          %v402 = vld [vmem:[%s400 + $0x4] sm:$0xf]
          %v403 = vld [vmem:[%s400 + $0x8] sm:$0xf]
          %v404 = vld [vmem:[%s400 + $0xc] sm:$0xf]
          %v405 = vld [vmem:[%s400 + $0x10] sm:$0x1]
          %s406 = scalar_lea.vmem [#allocation2], 12
          %v407 = vld [vmem:[%s406] sm:$0xf]
          %v412 = vunpack.c.l.b16 %v401
          %v413 = vunpack.c.l.b16 %v402
          %v414 = vunpack.c.l.b16 %v403
          %v415 = vunpack.c.l.b16 %v404
          %v416 = vpack.c.b16 %v413, %v412
          %v417 = vpack.c.b16 %v415, %v414
          %v419 = vsel %vm211, %v416, 0
          %v422 = vsel %vm211, %v417, 0
          %v425 = vsel %vm218, %v407, 0
          %427 = vmatprep.subr.bf16.mxu0 0
          %428 = vmatpush1.bf16.msra.mxu0 0
          %429 = vmatprep.subr.bf16.mxu0 0
          %430 = vmatpush1.bf16.msra.mxu0 0
          %431 = vmatprep.subr.bf16.mxu0 0
          %432 = vmatpush1.bf16.msra.mxu0 0
          %433 = vmatprep.subr.bf16.mxu0 0
          %434 = vmatpush1.bf16.msra.mxu0 0
          %435 = vmatprep.subr.bf16.mxu0 0
          %436 = vmatpush1.bf16.msra.mxu0 0
          %437 = vmatprep.subr.bf16.mxu0 0
          %438 = vmatpush1.bf16.msra.mxu0 0
          %439 = vmatprep.subr.bf16.mxu0 0
          %440 = vmatpush1.bf16.msra.mxu0 0
          %441 = vmatprep.subr.bf16.mxu0 0
          %442 = vmatpush1.bf16.msra.mxu0 %v425
          %443 = vmatprep.subr.bf16.mxu0 0
          %444 = vmatpush2.bf16.msra.mxu0 0
          %445 = vmatprep.subr.bf16.mxu0 0
          %446 = vmatpush2.bf16.msra.mxu0 0
          %447 = vmatprep.subr.bf16.mxu0 0
          %448 = vmatpush2.bf16.msra.mxu0 0
          %449 = vmatprep.subr.bf16.mxu0 0
          %450 = vmatpush2.bf16.msra.mxu0 0
          %451 = vmatprep.subr.bf16.mxu0 0
          %452 = vmatpush2.bf16.msra.mxu0 0
          %453 = vmatprep.subr.bf16.mxu0 0
          %454 = vmatpush2.bf16.msra.mxu0 0
          %455 = vmatprep.subr.bf16.mxu0 0
          %456 = vmatpush2.bf16.msra.mxu0 0
          %457 = vmatprep.subr.bf16.mxu0 0
          %458 = vmatpush2.bf16.msra.mxu0 0
          %459 = vmatprep.mubr.bf16.mxu0 0
          %460 = vmatmul.mubr.bf16.gmra.mxu0 %v419
          %v461 = vpop.f32.mrf.mxu0
          %v462 = vadd.f32 0.0, %v461
          %v463 = vpop.f32.mrf.mxu0
          %v464 = vpop.f32.mrf.mxu0
          %v465 = vadd.f32 0.0, %v464
          %v466 = vpop.f32.mrf.mxu0
          %467 = vmatprep.mubr.bf16.mxu0 0
          %468 = vmatmul.mubr.bf16.gmra.mxu0 %v422
          %v469 = vpop.f32.mrf.mxu0
          %v470 = vadd.f32 0.0, %v469
          %v471 = vpop.f32.mrf.mxu0
          %v472 = vpop.f32.mrf.mxu0
          %v473 = vadd.f32 0.0, %v472
          %v474 = vpop.f32.mrf.mxu0
          %475 = vdwg.mxu0
          %v476 = vadd.f32 %v393, %v462
          %v477 = vadd.f32 %v394, %v465
          %v478 = vadd.f32 %v395, %v470
          %v479 = vadd.f32 %v396, %v473
          %s480 = scalar_lea.vmem [#allocation2], 16
          %v481 = vld [vmem:[%s480] sm:$0xf]
          %v483 = vunpack.c.l.b16 %v405
          %v484 = vpack.c.b16 %v483, %v483
          %v485 = vshrl.u32 %v416, 16
          %v487 = vshll.u32 %v416, 16
          %v489 = vrot.slane %v487, 1
          %v490 = vor.u32 %v485, %v489
          %v491 = vshll.u32 %v417, 16
          %v493 = vrot.slane %v491, 1
          %v494 = vsel %vm190, %v490, %v493
          %v495 = vshrl.u32 %v417, 16
          %v497 = vor.u32 %v495, %v493
          %v499 = vshll.u32 %v484, 16
          %v501 = vrot.slane %v499, 1
          %v502 = vsel %vm190, %v497, %v501
          %v504 = vsel %vm211, %v494, 0
          %v507 = vsel %vm211, %v502, 0
          %v510 = vsel %vm218, %v481, 0
          %512 = vmatprep.subr.bf16.mxu0 0
          %513 = vmatpush1.bf16.msra.mxu0 0
          %514 = vmatprep.subr.bf16.mxu0 0
          %515 = vmatpush1.bf16.msra.mxu0 0
          %516 = vmatprep.subr.bf16.mxu0 0
          %517 = vmatpush1.bf16.msra.mxu0 0
          %518 = vmatprep.subr.bf16.mxu0 0
          %519 = vmatpush1.bf16.msra.mxu0 0
          %520 = vmatprep.subr.bf16.mxu0 0
          %521 = vmatpush1.bf16.msra.mxu0 0
          %522 = vmatprep.subr.bf16.mxu0 0
          %523 = vmatpush1.bf16.msra.mxu0 0
          %524 = vmatprep.subr.bf16.mxu0 0
          %525 = vmatpush1.bf16.msra.mxu0 0
          %526 = vmatprep.subr.bf16.mxu0 0
          %527 = vmatpush1.bf16.msra.mxu0 %v510
          %528 = vmatprep.subr.bf16.mxu0 0
          %529 = vmatpush2.bf16.msra.mxu0 0
          %530 = vmatprep.subr.bf16.mxu0 0
          %531 = vmatpush2.bf16.msra.mxu0 0
          %532 = vmatprep.subr.bf16.mxu0 0
          %533 = vmatpush2.bf16.msra.mxu0 0
          %534 = vmatprep.subr.bf16.mxu0 0
          %535 = vmatpush2.bf16.msra.mxu0 0
          %536 = vmatprep.subr.bf16.mxu0 0
          %537 = vmatpush2.bf16.msra.mxu0 0
          %538 = vmatprep.subr.bf16.mxu0 0
          %539 = vmatpush2.bf16.msra.mxu0 0
          %540 = vmatprep.subr.bf16.mxu0 0
          %541 = vmatpush2.bf16.msra.mxu0 0
          %542 = vmatprep.subr.bf16.mxu0 0
          %543 = vmatpush2.bf16.msra.mxu0 0
          %544 = vmatprep.mubr.bf16.mxu0 0
          %545 = vmatmul.mubr.bf16.gmra.mxu0 %v504
          %v546 = vpop.f32.mrf.mxu0
          %v547 = vadd.f32 0.0, %v546
          %v548 = vpop.f32.mrf.mxu0
          %v549 = vpop.f32.mrf.mxu0
          %v550 = vadd.f32 0.0, %v549
          %v551 = vpop.f32.mrf.mxu0
          %552 = vmatprep.mubr.bf16.mxu0 0
          %553 = vmatmul.mubr.bf16.gmra.mxu0 %v507
          %v554 = vpop.f32.mrf.mxu0
          %v555 = vadd.f32 0.0, %v554
          %v556 = vpop.f32.mrf.mxu0
          %v557 = vpop.f32.mrf.mxu0
          %v558 = vadd.f32 0.0, %v557
          %v559 = vpop.f32.mrf.mxu0
          %560 = vdwg.mxu0
          %v561 = vadd.f32 %v476, %v547
          %v562 = vadd.f32 %v477, %v550
          %v563 = vadd.f32 %v478, %v555
          %v564 = vadd.f32 %v479, %v558
          %s565 = scalar_lea.vmem [#allocation2], 20
          %v566 = vld [vmem:[%s565] sm:$0xf]
          %v567 = vrot.slane %v416, 1
          %v568 = vrot.slane %v417, 1
          %v569 = vsel %vm329, %v567, %v568
          %v570 = vrot.slane %v484, 1
          %v571 = vsel %vm329, %v568, %v570
          %v573 = vsel %vm211, %v569, 0
          %v576 = vsel %vm211, %v571, 0
          %v579 = vsel %vm218, %v566, 0
          %581 = vmatprep.subr.bf16.mxu0 0
          %582 = vmatpush1.bf16.msra.mxu0 0
          %583 = vmatprep.subr.bf16.mxu0 0
          %584 = vmatpush1.bf16.msra.mxu0 0
          %585 = vmatprep.subr.bf16.mxu0 0
          %586 = vmatpush1.bf16.msra.mxu0 0
          %587 = vmatprep.subr.bf16.mxu0 0
          %588 = vmatpush1.bf16.msra.mxu0 0
          %589 = vmatprep.subr.bf16.mxu0 0
          %590 = vmatpush1.bf16.msra.mxu0 0
          %591 = vmatprep.subr.bf16.mxu0 0
          %592 = vmatpush1.bf16.msra.mxu0 0
          %593 = vmatprep.subr.bf16.mxu0 0
          %594 = vmatpush1.bf16.msra.mxu0 0
          %595 = vmatprep.subr.bf16.mxu0 0
          %596 = vmatpush1.bf16.msra.mxu0 %v579
          %597 = vmatprep.subr.bf16.mxu0 0
          %598 = vmatpush2.bf16.msra.mxu0 0
          %599 = vmatprep.subr.bf16.mxu0 0
          %600 = vmatpush2.bf16.msra.mxu0 0
          %601 = vmatprep.subr.bf16.mxu0 0
          %602 = vmatpush2.bf16.msra.mxu0 0
          %603 = vmatprep.subr.bf16.mxu0 0
          %604 = vmatpush2.bf16.msra.mxu0 0
          %605 = vmatprep.subr.bf16.mxu0 0
          %606 = vmatpush2.bf16.msra.mxu0 0
          %607 = vmatprep.subr.bf16.mxu0 0
          %608 = vmatpush2.bf16.msra.mxu0 0
          %609 = vmatprep.subr.bf16.mxu0 0
          %610 = vmatpush2.bf16.msra.mxu0 0
          %611 = vmatprep.subr.bf16.mxu0 0
          %612 = vmatpush2.bf16.msra.mxu0 0
          %613 = vmatprep.mubr.bf16.mxu0 0
          %614 = vmatmul.mubr.bf16.gmra.mxu0 %v573
          %v615 = vpop.f32.mrf.mxu0
          %v616 = vadd.f32 0.0, %v615
          %v617 = vpop.f32.mrf.mxu0
          %v618 = vpop.f32.mrf.mxu0
          %v619 = vadd.f32 0.0, %v618
          %v620 = vpop.f32.mrf.mxu0
          %621 = vmatprep.mubr.bf16.mxu0 0
          %622 = vmatmul.mubr.bf16.gmra.mxu0 %v576
          %v623 = vpop.f32.mrf.mxu0
          %v624 = vadd.f32 0.0, %v623
          %v625 = vpop.f32.mrf.mxu0
          %v626 = vpop.f32.mrf.mxu0
          %v627 = vadd.f32 0.0, %v626
          %v628 = vpop.f32.mrf.mxu0
          %629 = vdwg.mxu0
          %v630 = vadd.f32 %v561, %v616
          %v631 = vadd.f32 %v562, %v619
          %v632 = vadd.f32 %v563, %v624
          %v633 = vadd.f32 %v564, %v627
          %s634 = sadd.s32 %s161, 2
          %s635 = smul.u32 %s634, 5
          %s636 = smul.addr %s635, 4
          %s637 = scalar_lea.vmem %s153, %s636
          %v638 = vld [vmem:[%s637] sm:$0xf]
          %v639 = vld [vmem:[%s637 + $0x4] sm:$0xf]
          %v640 = vld [vmem:[%s637 + $0x8] sm:$0xf]
          %v641 = vld [vmem:[%s637 + $0xc] sm:$0xf]
          %v642 = vld [vmem:[%s637 + $0x10] sm:$0x1]
          %s643 = scalar_lea.vmem [#allocation2], 24
          %v644 = vld [vmem:[%s643] sm:$0xf]
          %v649 = vunpack.c.l.b16 %v638
          %v650 = vunpack.c.l.b16 %v639
          %v651 = vunpack.c.l.b16 %v640
          %v652 = vunpack.c.l.b16 %v641
          %v653 = vpack.c.b16 %v650, %v649
          %v654 = vpack.c.b16 %v652, %v651
          %v656 = vsel %vm211, %v653, 0
          %v659 = vsel %vm211, %v654, 0
          %v662 = vsel %vm218, %v644, 0
          %664 = vmatprep.subr.bf16.mxu0 0
          %665 = vmatpush1.bf16.msra.mxu0 0
          %666 = vmatprep.subr.bf16.mxu0 0
          %667 = vmatpush1.bf16.msra.mxu0 0
          %668 = vmatprep.subr.bf16.mxu0 0
          %669 = vmatpush1.bf16.msra.mxu0 0
          %670 = vmatprep.subr.bf16.mxu0 0
          %671 = vmatpush1.bf16.msra.mxu0 0
          %672 = vmatprep.subr.bf16.mxu0 0
          %673 = vmatpush1.bf16.msra.mxu0 0
          %674 = vmatprep.subr.bf16.mxu0 0
          %675 = vmatpush1.bf16.msra.mxu0 0
          %676 = vmatprep.subr.bf16.mxu0 0
          %677 = vmatpush1.bf16.msra.mxu0 0
          %678 = vmatprep.subr.bf16.mxu0 0
          %679 = vmatpush1.bf16.msra.mxu0 %v662
          %680 = vmatprep.subr.bf16.mxu0 0
          %681 = vmatpush2.bf16.msra.mxu0 0
          %682 = vmatprep.subr.bf16.mxu0 0
          %683 = vmatpush2.bf16.msra.mxu0 0
          %684 = vmatprep.subr.bf16.mxu0 0
          %685 = vmatpush2.bf16.msra.mxu0 0
          %686 = vmatprep.subr.bf16.mxu0 0
          %687 = vmatpush2.bf16.msra.mxu0 0
          %688 = vmatprep.subr.bf16.mxu0 0
          %689 = vmatpush2.bf16.msra.mxu0 0
          %690 = vmatprep.subr.bf16.mxu0 0
          %691 = vmatpush2.bf16.msra.mxu0 0
          %692 = vmatprep.subr.bf16.mxu0 0
          %693 = vmatpush2.bf16.msra.mxu0 0
          %694 = vmatprep.subr.bf16.mxu0 0
          %695 = vmatpush2.bf16.msra.mxu0 0
          %696 = vmatprep.mubr.bf16.mxu0 0
          %697 = vmatmul.mubr.bf16.gmra.mxu0 %v656
          %v698 = vpop.f32.mrf.mxu0
          %v699 = vadd.f32 0.0, %v698
          %v700 = vpop.f32.mrf.mxu0
          %v701 = vpop.f32.mrf.mxu0
          %v702 = vadd.f32 0.0, %v701
          %v703 = vpop.f32.mrf.mxu0
          %704 = vmatprep.mubr.bf16.mxu0 0
          %705 = vmatmul.mubr.bf16.gmra.mxu0 %v659
          %v706 = vpop.f32.mrf.mxu0
          %v707 = vadd.f32 0.0, %v706
          %v708 = vpop.f32.mrf.mxu0
          %v709 = vpop.f32.mrf.mxu0
          %v710 = vadd.f32 0.0, %v709
          %v711 = vpop.f32.mrf.mxu0
          %712 = vdwg.mxu0
          %v713 = vadd.f32 %v630, %v699
          %v714 = vadd.f32 %v631, %v702
          %v715 = vadd.f32 %v632, %v707
          %v716 = vadd.f32 %v633, %v710
          %s717 = scalar_lea.vmem [#allocation2], 28
          %v718 = vld [vmem:[%s717] sm:$0xf]
          %v720 = vunpack.c.l.b16 %v642
          %v721 = vpack.c.b16 %v720, %v720
          %v722 = vshrl.u32 %v653, 16
          %v724 = vshll.u32 %v653, 16
          %v726 = vrot.slane %v724, 1
          %v727 = vor.u32 %v722, %v726
          %v728 = vshll.u32 %v654, 16
          %v730 = vrot.slane %v728, 1
          %v731 = vsel %vm190, %v727, %v730
          %v732 = vshrl.u32 %v654, 16
          %v734 = vor.u32 %v732, %v730
          %v736 = vshll.u32 %v721, 16
          %v738 = vrot.slane %v736, 1
          %v739 = vsel %vm190, %v734, %v738
          %v741 = vsel %vm211, %v731, 0
          %v744 = vsel %vm211, %v739, 0
          %v747 = vsel %vm218, %v718, 0
          %749 = vmatprep.subr.bf16.mxu0 0
          %750 = vmatpush1.bf16.msra.mxu0 0
          %751 = vmatprep.subr.bf16.mxu0 0
          %752 = vmatpush1.bf16.msra.mxu0 0
          %753 = vmatprep.subr.bf16.mxu0 0
          %754 = vmatpush1.bf16.msra.mxu0 0
          %755 = vmatprep.subr.bf16.mxu0 0
          %756 = vmatpush1.bf16.msra.mxu0 0
          %757 = vmatprep.subr.bf16.mxu0 0
          %758 = vmatpush1.bf16.msra.mxu0 0
          %759 = vmatprep.subr.bf16.mxu0 0
          %760 = vmatpush1.bf16.msra.mxu0 0
          %761 = vmatprep.subr.bf16.mxu0 0
          %762 = vmatpush1.bf16.msra.mxu0 0
          %763 = vmatprep.subr.bf16.mxu0 0
          %764 = vmatpush1.bf16.msra.mxu0 %v747
          %765 = vmatprep.subr.bf16.mxu0 0
          %766 = vmatpush2.bf16.msra.mxu0 0
          %767 = vmatprep.subr.bf16.mxu0 0
          %768 = vmatpush2.bf16.msra.mxu0 0
          %769 = vmatprep.subr.bf16.mxu0 0
          %770 = vmatpush2.bf16.msra.mxu0 0
          %771 = vmatprep.subr.bf16.mxu0 0
          %772 = vmatpush2.bf16.msra.mxu0 0
          %773 = vmatprep.subr.bf16.mxu0 0
          %774 = vmatpush2.bf16.msra.mxu0 0
          %775 = vmatprep.subr.bf16.mxu0 0
          %776 = vmatpush2.bf16.msra.mxu0 0
          %777 = vmatprep.subr.bf16.mxu0 0
          %778 = vmatpush2.bf16.msra.mxu0 0
          %779 = vmatprep.subr.bf16.mxu0 0
          %780 = vmatpush2.bf16.msra.mxu0 0
          %781 = vmatprep.mubr.bf16.mxu0 0
          %782 = vmatmul.mubr.bf16.gmra.mxu0 %v741
          %v783 = vpop.f32.mrf.mxu0
          %v784 = vadd.f32 0.0, %v783
          %v785 = vpop.f32.mrf.mxu0
          %v786 = vpop.f32.mrf.mxu0
          %v787 = vadd.f32 0.0, %v786
          %v788 = vpop.f32.mrf.mxu0
          %789 = vmatprep.mubr.bf16.mxu0 0
          %790 = vmatmul.mubr.bf16.gmra.mxu0 %v744
          %v791 = vpop.f32.mrf.mxu0
          %v792 = vadd.f32 0.0, %v791
          %v793 = vpop.f32.mrf.mxu0
          %v794 = vpop.f32.mrf.mxu0
          %v795 = vadd.f32 0.0, %v794
          %v796 = vpop.f32.mrf.mxu0
          %797 = vdwg.mxu0
          %v798 = vadd.f32 %v713, %v784
          %v799 = vadd.f32 %v714, %v787
          %v800 = vadd.f32 %v715, %v792
          %v801 = vadd.f32 %v716, %v795
          %s802 = scalar_lea.vmem [#allocation2], 32
          %v803 = vld [vmem:[%s802] sm:$0xf]
          %v804 = vrot.slane %v653, 1
          %v805 = vrot.slane %v654, 1
          %v806 = vsel %vm329, %v804, %v805
          %v807 = vrot.slane %v721, 1
          %v808 = vsel %vm329, %v805, %v807
          %v810 = vsel %vm211, %v806, 0
          %v813 = vsel %vm211, %v808, 0
          %v816 = vsel %vm218, %v803, 0
          %818 = vmatprep.subr.bf16.mxu0 0
          %819 = vmatpush1.bf16.msra.mxu0 0
          %820 = vmatprep.subr.bf16.mxu0 0
          %821 = vmatpush1.bf16.msra.mxu0 0
          %822 = vmatprep.subr.bf16.mxu0 0
          %823 = vmatpush1.bf16.msra.mxu0 0
          %824 = vmatprep.subr.bf16.mxu0 0
          %825 = vmatpush1.bf16.msra.mxu0 0
          %826 = vmatprep.subr.bf16.mxu0 0
          %827 = vmatpush1.bf16.msra.mxu0 0
          %828 = vmatprep.subr.bf16.mxu0 0
          %829 = vmatpush1.bf16.msra.mxu0 0
          %830 = vmatprep.subr.bf16.mxu0 0
          %831 = vmatpush1.bf16.msra.mxu0 0
          %832 = vmatprep.subr.bf16.mxu0 0
          %833 = vmatpush1.bf16.msra.mxu0 %v816
          %834 = vmatprep.subr.bf16.mxu0 0
          %835 = vmatpush2.bf16.msra.mxu0 0
          %836 = vmatprep.subr.bf16.mxu0 0
          %837 = vmatpush2.bf16.msra.mxu0 0
          %838 = vmatprep.subr.bf16.mxu0 0
          %839 = vmatpush2.bf16.msra.mxu0 0
          %840 = vmatprep.subr.bf16.mxu0 0
          %841 = vmatpush2.bf16.msra.mxu0 0
          %842 = vmatprep.subr.bf16.mxu0 0
          %843 = vmatpush2.bf16.msra.mxu0 0
          %844 = vmatprep.subr.bf16.mxu0 0
          %845 = vmatpush2.bf16.msra.mxu0 0
          %846 = vmatprep.subr.bf16.mxu0 0
          %847 = vmatpush2.bf16.msra.mxu0 0
          %848 = vmatprep.subr.bf16.mxu0 0
          %849 = vmatpush2.bf16.msra.mxu0 0
          %850 = vmatprep.mubr.bf16.mxu0 0
          %851 = vmatmul.mubr.bf16.gmra.mxu0 %v810
          %v852 = vpop.f32.mrf.mxu0
          %v853 = vadd.f32 0.0, %v852
          %v854 = vpop.f32.mrf.mxu0
          %v855 = vpop.f32.mrf.mxu0
          %v856 = vadd.f32 0.0, %v855
          %v857 = vpop.f32.mrf.mxu0
          %858 = vmatprep.mubr.bf16.mxu0 0
          %859 = vmatmul.mubr.bf16.gmra.mxu0 %v813
          %v860 = vpop.f32.mrf.mxu0
          %v861 = vadd.f32 0.0, %v860
          %v862 = vpop.f32.mrf.mxu0
          %v863 = vpop.f32.mrf.mxu0
          %v864 = vadd.f32 0.0, %v863
          %v865 = vpop.f32.mrf.mxu0
          %866 = vdwg.mxu0
          %v867 = vadd.f32 %v798, %v853
          %v868 = vadd.f32 %v799, %v856
          %v869 = vadd.f32 %v800, %v861
          %v870 = vadd.f32 %v801, %v864
          %v871 = vtanh.pop %v867
          %v872 = vtanh.pop %v868
          %v873 = vtanh.pop %v869
          %v874 = vtanh.pop %v870
          %s875 = smul.u32 %s161, 32
          %s876 = scalar_lea.vmem %s158, %s875
          %877 = vst [vmem:[%s876] sm:$0xff] %v871
          %878 = vst [vmem:[%s876 + $0x8] sm:$0xff] %v872
          %879 = vst [vmem:[%s876 + $0x10] sm:$0xff] %v873
          %880 = vst [vmem:[%s876 + $0x18] sm:$0xff] %v874
        $region37: #{_lambda_.9} parent=27 // loop_footer
          %s165 = sadd.s32 1, %s161
        $region38: #{_lambda_.9} parent=27 // loop_footer_branch
          %160 = sbr.rel target = $region34
        $region39: #{_lambda_.9} parent=27 // loop_exit
          _
        %p881 = scmp.lt.s32.totalorder %s14, 1
        %s882 = scalar_select %p881, %s14, 1
        %s883 = smul.addr %s882, 128
        %s884 = smul.addr %s883, 8
        %s885 = scalar_lea.vmem %s2, %s884
        // Predicated region
        $region40: #{_lambda_.9} parent=27 // pred_check
          %p886 = pneg %p79
        $region41: #{_lambda_.9} parent=27 // pred_check_branch
          %888 = sbr.rel (%p886) target = $region43
        $region42: #{_lambda_.9} parent=27 // pred_region
          _
        $region43: #{_lambda_.9} parent=27 // pred_fallthru
          _
      $region28: #{_lambda_.9} parent=5 // pred_fallthru
        _
      %p889 = scmp.le.s32.totalorder 2, %s9
      // Predicated region
      $region44: #{_lambda_.9} parent=5 // pred_check
        %p890 = pneg %p889
      $region45: #{_lambda_.9} parent=5 // pred_check_branch
        %892 = sbr.rel (%p890) target = $region47
      $region46: #{_lambda_.9} parent=5 // pred_region
        %s893 = ssub.s32 %s9, 2
        // Predicated region
        $region48: #{_lambda_.9} parent=46 // pred_check
          %p894 = pneg %p85
        $region49: #{_lambda_.9} parent=46 // pred_check_branch
          %896 = sbr.rel (%p894) target = $region51
        $region50: #{_lambda_.9} parent=46 // pred_region
          %p897 = scmp.lt.s32.totalorder %s15, 1
          %s898 = scalar_select %p897, %s15, 1
          %s899 = smul.addr %s898, 128
          %s900 = smul.addr %s899, 8
          %s901 = scalar_lea.vmem %s2, %s900
        $region51: #{_lambda_.9} parent=46 // pred_fallthru
          _
      $region47: #{_lambda_.9} parent=5 // pred_fallthru
        _
    $region6: #{_lambda_.9} parent=1 // loop_footer
      %s13 = sadd.s32 1, %s9
    $region7: #{_lambda_.9} parent=1 // loop_footer_branch
      %8 = sbr.rel target = $region3
    $region8: #{_lambda_.9} parent=1 // loop_exit
      _
    %902 = vsyncpa [#allocation3], 1
    %s903 = scalar_lea.sflag [#allocation3], 1
    %904 = vsyncpa %s903, 1

</llo_original>
